<compile_context>
chip_gen: v5e
topology: v5e:2x2
jax: 0.10.0
libtpu: 0.0.40
codegen_flags: <defaults>
</compile_context>

<pallas_src>
import functools

import jax
import jax.numpy as jnp
from jax import lax
from jax.experimental import pallas as pl
from jax.experimental.pallas import tpu as pltpu

C_PAD = 128          # lane-padded channel count used for all internal activations
CONV1_OUT = 10
CONV2_OUT = 16


# ---------------------------------------------------------------------------
# Pallas kernels
# ---------------------------------------------------------------------------
def _matmul_bias_act_kernel(x_ref, w_ref, b_ref, o_ref, *, apply_relu):
    # x: [TM, K] bf16, w: [K, 128] bf16, b: [1, 128] f32  ->  o: [TM, 128]
    acc = jnp.dot(x_ref[...], w_ref[...], preferred_element_type=jnp.float32)
    acc = acc + b_ref[...]
    if apply_relu:
        acc = jnp.maximum(acc, 0.0)
    o_ref[...] = acc.astype(o_ref.dtype)


def matmul_bias_act(x, w, b, *, apply_relu, out_dtype=jnp.bfloat16, tile_m=256):
    """[M, K] @ [Kp, 128] + b with fused ReLU. Grid over M rows (parallel)."""
    M, K = x.shape
    Kp, N = w.shape
    assert Kp >= K and Kp % 128 == 0 and N % 128 == 0
    Mp = pl.cdiv(M, tile_m) * tile_m
    if Mp != M or Kp != K:
        # zero-pad rows (M) and contraction dim (K) so every block is (8,128)-aligned
        x = jnp.pad(x, ((0, Mp - M), (0, Kp - K)))
    kernel = functools.partial(_matmul_bias_act_kernel, apply_relu=apply_relu)
    out = pl.pallas_call(
        kernel,
        out_shape=jax.ShapeDtypeStruct((Mp, N), out_dtype),
        grid=(Mp // tile_m,),
        in_specs=[
            pl.BlockSpec((tile_m, Kp), lambda i: (i, 0)),
            pl.BlockSpec((Kp, N), lambda i: (0, 0)),
            pl.BlockSpec((1, N), lambda i: (0, 0)),
        ],
        out_specs=pl.BlockSpec((tile_m, N), lambda i: (i, 0)),
        compiler_params=pltpu.CompilerParams(dimension_semantics=("parallel",)),
    )(x, w, b)
    return out[:M]


def _maxpool2x2_kernel(x_ref, o_ref):
    # x_ref: [H, Wo, 2*C]  (one image, W-pairs folded into the lane dim)
    # o_ref: [Ho, Wo, C]
    Ho, Wo, C = o_ref.shape
    x = x_ref[...]
    h = jnp.maximum(x[..., :C], x[..., C:])        # horizontal (W) max — dense lane halves
    h = h.reshape(Ho, 2, Wo, C)                    # split H row-pairs on an untiled dim
    o_ref[...] = jnp.maximum(h[:, 0], h[:, 1])     # vertical (H) max


def maxpool2x2(x2d, *, B, H, W, C):
    """2x2 stride-2 max pool. x2d: [B*H*W, C] rows in (b, y, x) order, C lane-dense.
    Returns [B*Ho, Wo, C] (same memory order, free to reshape further)."""
    Ho, Wo = H // 2, W // 2
    xr = x2d.reshape(B * H, Wo, 2 * C)             # pure dim regroup -> no data movement
    return pl.pallas_call(
        _maxpool2x2_kernel,
        out_shape=jax.ShapeDtypeStruct((B * Ho, Wo, C), x2d.dtype),
        grid=(B,),
        in_specs=[pl.BlockSpec((H, Wo, 2 * C), lambda b: (b, 0, 0))],
        out_specs=pl.BlockSpec((Ho, Wo, C), lambda b: (b, 0, 0)),
        compiler_params=pltpu.CompilerParams(dimension_semantics=("parallel",)),
    )(xr)


def _fc_fused_kernel(x_ref, w1_ref, b1_ref, w2_ref, b2_ref, w3_ref, b3_ref, o_ref):
    # fc1 -> ReLU -> fc2 -> ReLU -> fc3, all N padded to 128, f32 epilogues.
    h = jnp.dot(x_ref[...], w1_ref[...], preferred_element_type=jnp.float32)
    h = jnp.maximum(h + b1_ref[...], 0.0)
    h = jnp.dot(h.astype(w2_ref.dtype), w2_ref[...], preferred_element_type=jnp.float32)
    h = jnp.maximum(h + b2_ref[...], 0.0)
    h = jnp.dot(h.astype(w3_ref.dtype), w3_ref[...], preferred_element_type=jnp.float32)
    o_ref[...] = (h + b3_ref[...]).astype(o_ref.dtype)


def fc_fused(x, params):
    B, K = x.shape
    full = lambda s: pl.BlockSpec(s, lambda: (0,) * len(s))
    return pl.pallas_call(
        _fc_fused_kernel,
        out_shape=jax.ShapeDtypeStruct((B, 128), jnp.float32),
        in_specs=[
            full((B, K)),
            full((K, 128)), full((1, 128)),
            full((128, 128)), full((1, 128)),
            full((128, 128)), full((1, 128)),
        ],
        out_specs=full((B, 128)),
    )(x, params["fc1_w"], params["fc1_b"], params["fc2_w"], params["fc2_b"],
      params["fc3_w"], params["fc3_b"])


# ---------------------------------------------------------------------------
# Glue: single-op patch extraction (im2col) in NHWC
# ---------------------------------------------------------------------------
def _extract_patches(x_nhwc, k):
    # [B, H, W, C] -> [B, H-k+1, W-k+1, C*k*k]; feature dim = flattened patch
    return lax.conv_general_dilated_patches(
        x_nhwc, (k, k), (1, 1), "VALID",
        dimension_numbers=("NHWC", "HWIO", "NHWC"))


# ---------------------------------------------------------------------------
# Parameters (deterministic synthetic init; shapes match Net.__init__,
# stored pre-padded / pre-flattened for the lane-dense kernels)
# ---------------------------------------------------------------------------
def init_params(key):
    ks = jax.random.split(key, 10)

    def uniform(k, shape, fan_in):
        bound = fan_in ** -0.5
        return jax.random.uniform(k, shape, jnp.float32, -bound, bound)

    bf = jnp.bfloat16

    def pad_w(w, kp, np_=128):
        k, n = w.shape
        return jnp.pad(w, ((0, kp - k), (0, np_ - n))).astype(bf)

    def pad_b(b, np_=128):
        return jnp.pad(b, (0, np_ - b.shape[0])).reshape(1, np_).astype(jnp.float32)

    # Conv weights kept directly in flattened-patch form [Cin*kh*kw, Cout].
    # (Real PyTorch weights would map via w.reshape(Cout, Cin*5*5).T, matching the
    #  channel-major patch ordering of lax.conv_general_dilated_patches.)
    w1 = uniform(ks[0], (3 * 5 * 5, CONV1_OUT), 3 * 5 * 5)
    b1 = uniform(ks[1], (CONV1_OUT,), 3 * 5 * 5)
    w2 = uniform(ks[2], (CONV1_OUT * 5 * 5, CONV2_OUT), CONV1_OUT * 5 * 5)
    b2 = uniform(ks[3], (CONV2_OUT,), CONV1_OUT * 5 * 5)

    fw1 = uniform(ks[4], (16 * 5 * 5, 120), 400)   # rows in (h, w, c) order of NHWC flatten
    fb1 = uniform(ks[5], (120,), 400)
    fw2 = uniform(ks[6], (120, 64), 120)
    fb2 = uniform(ks[7], (64,), 120)
    fw3 = uniform(ks[8], (64, 10), 64)
    fb3 = uniform(ks[9], (10,), 64)

    # Embed fc1's 16 real input channels into the 128-channel padded NHWC flatten.
    fw1 = fw1.reshape(5, 5, CONV2_OUT, 120)
    fw1 = jnp.pad(fw1, ((0, 0), (0, 0), (0, C_PAD - CONV2_OUT), (0, 0)))
    fw1 = fw1.reshape(5 * 5 * C_PAD, 120)

    return dict(
        conv1_w=pad_w(w1, 128), conv1_b=pad_b(b1),
        conv2_w=pad_w(w2, 256), conv2_b=pad_b(b2),
        fc1_w=pad_w(fw1, 5 * 5 * C_PAD), fc1_b=pad_b(fb1),
        fc2_w=pad_w(fw2, 128), fc2_b=pad_b(fb2),
        fc3_w=pad_w(fw3, 128), fc3_b=pad_b(fb3),
    )


# ---------------------------------------------------------------------------
# Forward pass (mirrors Net.forward)
# ---------------------------------------------------------------------------
@jax.jit
def net_forward(params, x):
    # x: [B, 3, 32, 32] NCHW float32 (PyTorch-style external interface)
    B = x.shape[0]
    x = jnp.transpose(x, (0, 2, 3, 1)).astype(jnp.bfloat16)       # -> NHWC [B,32,32,3]

    # conv1 + ReLU (im2col -> MXU matmul, Cout padded to 128 lanes), then 2x2 pool
    p1 = _extract_patches(x, 5)                                    # [B,28,28,75]
    _, H1, W1, K1 = p1.shape
    y1 = matmul_bias_act(p1.reshape(B * H1 * W1, K1),
                         params["conv1_w"], params["conv1_b"], apply_relu=True)
    y1 = maxpool2x2(y1, B=B, H=H1, W=W1, C=C_PAD)                  # [B*14, 14, 128]

    # conv2 + ReLU, then 2x2 pool
    x2 = y1.reshape(B, H1 // 2, W1 // 2, C_PAD)[..., :CONV1_OUT]   # drop channel padding
    p2 = _extract_patches(x2, 5)                                   # [B,10,10,250]
    _, H2, W2, K2 = p2.shape
    y2 = matmul_bias_act(p2.reshape(B * H2 * W2, K2),
                         params["conv2_w"], params["conv2_b"], apply_relu=True)
    y2 = maxpool2x2(y2, B=B, H=H2, W=W2, C=C_PAD)                  # [B*5, 5, 128]

    # fused fc1 -> fc2 -> fc3 (padded lanes carry exact zeros end-to-end)
    xf = y2.reshape(B, (H2 // 2) * (W2 // 2) * C_PAD)              # [B, 3200], free reshape
    logits = fc_fused(xf, params)                                  # [B, 128] f32
    return logits[:, :10]


if __name__ == "__main__":
    key = jax.random.PRNGKey(0)
    pkey, xkey = jax.random.split(key)
    params = init_params(pkey)
    x = jax.random.normal(xkey, (2, 3, 32, 32), jnp.float32)       # NCHW like PyTorch
    out = net_forward(params, x)
    jax.block_until_ready(out)
    assert out.shape == (2, 10) and out.dtype == jnp.float32
    print("KERNEL_OK")
</pallas_src>

<mosaic_0001>
module attributes {stable_mosaic.version = 11 : i64} {
  func.func @_matmul_bias_act_kernel(%arg0: i32, %arg1: memref<256x128xbf16, #tpu.memory_space<vmem>>, %arg2: memref<128x128xbf16, #tpu.memory_space<vmem>>, %arg3: memref<1x128xf32, #tpu.memory_space<vmem>>, %arg4: memref<256x128xbf16, #tpu.memory_space<vmem>>) attributes {dimension_semantics = [#tpu.dimension_semantics<parallel>], iteration_bounds = array<i64: 7>, scalar_prefetch = 0 : i64, scratch_operands = 0 : i64, tpu.core_type = #tpu.core_type<tc>, window_params = [{transform_indices = @transform_0, window_bounds = array<i64: 256, 128>}, {pipeline_mode = #tpu.pipeline_mode<synchronous>, transform_indices = @transform_1, window_bounds = array<i64: 128, 128>}, {pipeline_mode = #tpu.pipeline_mode<synchronous>, transform_indices = @transform_2, window_bounds = array<i64: 1, 128>}, {transform_indices = @transform_3, window_bounds = array<i64: 256, 128>}]} {
    %c0 = arith.constant 0 : index
    %c0_0 = arith.constant 0 : index
    %0 = vector.load %arg1[%c0, %c0_0] : memref<256x128xbf16, #tpu.memory_space<vmem>>, vector<256x128xbf16>
    %c0_1 = arith.constant 0 : index
    %c0_2 = arith.constant 0 : index
    %1 = vector.load %arg2[%c0_1, %c0_2] : memref<128x128xbf16, #tpu.memory_space<vmem>>, vector<128x128xbf16>
    %cst = arith.constant dense<0.000000e+00> : vector<256x128xf32>
    %2 = tpu.matmul %0, %1, %cst {dimension_numbers = #tpu.dot_dimension_numbers<[1], [0], [0], [1], [0, 0, 1, 1], [], []>} : vector<256x128xbf16>, vector<128x128xbf16>, vector<256x128xf32> -> vector<256x128xf32>
    %c0_3 = arith.constant 0 : index
    %c0_4 = arith.constant 0 : index
    %3 = vector.load %arg3[%c0_3, %c0_4] : memref<1x128xf32, #tpu.memory_space<vmem>>, vector<1x128xf32>
    %4 = vector.broadcast %3 : vector<1x128xf32> to vector<256x128xf32>
    %5 = arith.addf %2, %4 : vector<256x128xf32>
    %cst_5 = arith.constant 0.000000e+00 : f32
    %6 = vector.broadcast %cst_5 : f32 to vector<256x128xf32>
    %7 = arith.maximumf %5, %6 : vector<256x128xf32>
    %8 = arith.truncf %7 : vector<256x128xf32> to vector<256x128xbf16>
    %c0_6 = arith.constant 0 : index
    %c0_7 = arith.constant 0 : index
    %9 = vector.load %arg4[%c0_6, %c0_7] : memref<256x128xbf16, #tpu.memory_space<vmem>>, vector<256x128xbf16>
    tpu.vector_store %arg4[%c0_6, %c0_7], %8 {strides = array<i32>} : memref<256x128xbf16, #tpu.memory_space<vmem>>, vector<256x128xbf16>,
    return
  }
  func.func @transform_0(%arg0: i32) -> (i32, i32) {
    %c0_i32 = arith.constant 0 : i32
    %c0_i32_0 = arith.constant 0 : i32
    return %arg0, %c0_i32 : i32, i32
  }
  func.func @transform_1(%arg0: i32) -> (i32, i32) {
    %c0_i32 = arith.constant 0 : i32
    %c0_i32_0 = arith.constant 0 : i32
    %c0_i32_1 = arith.constant 0 : i32
    return %c0_i32, %c0_i32_0 : i32, i32
  }
  func.func @transform_2(%arg0: i32) -> (i32, i32) {
    %c0_i32 = arith.constant 0 : i32
    %c0_i32_0 = arith.constant 0 : i32
    %c0_i32_1 = arith.constant 0 : i32
    return %c0_i32, %c0_i32_0 : i32, i32
  }
  func.func @transform_3(%arg0: i32) -> (i32, i32) {
    %c0_i32 = arith.constant 0 : i32
    %c0_i32_0 = arith.constant 0 : i32
    return %arg0, %c0_i32 : i32, i32
  }
}

module attributes {stable_mosaic.version = 11 : i64} {
  func.func @_maxpool2x2_kernel(%arg0: i32, %arg1: memref<28x14x256xbf16, #tpu.memory_space<vmem>>, %arg2: memref<14x14x128xbf16, #tpu.memory_space<vmem>>) attributes {dimension_semantics = [#tpu.dimension_semantics<parallel>], iteration_bounds = array<i64: 2>, scalar_prefetch = 0 : i64, scratch_operands = 0 : i64, tpu.core_type = #tpu.core_type<tc>, window_params = [{transform_indices = @transform_0, window_bounds = array<i64: 28, 14, 256>}, {transform_indices = @transform_1, window_bounds = array<i64: 14, 14, 128>}]} {
    %c0 = arith.constant 0 : index
    %c0_0 = arith.constant 0 : index
    %c0_1 = arith.constant 0 : index
    %0 = vector.load %arg1[%c0, %c0_0, %c0_1] : memref<28x14x256xbf16, #tpu.memory_space<vmem>>, vector<28x14x256xbf16>
    %1 = vector.extract_strided_slice %0 {offsets = [0, 0, 0], sizes = [28, 14, 128], strides = [1, 1, 1]} : vector<28x14x256xbf16> to vector<28x14x128xbf16>
    %2 = vector.extract_strided_slice %0 {offsets = [0, 0, 128], sizes = [28, 14, 128], strides = [1, 1, 1]} : vector<28x14x256xbf16> to vector<28x14x128xbf16>
    %3 = arith.maximumf %1, %2 : vector<28x14x128xbf16>
    %4 = vector.shape_cast %3 : vector<28x14x128xbf16> to vector<14x2x14x128xbf16>
    %5 = vector.extract_strided_slice %4 {offsets = [0, 0, 0, 0], sizes = [14, 1, 14, 128], strides = [1, 1, 1, 1]} : vector<14x2x14x128xbf16> to vector<14x1x14x128xbf16>
    %6 = vector.shape_cast %5 : vector<14x1x14x128xbf16> to vector<14x14x128xbf16>
    %7 = vector.extract_strided_slice %4 {offsets = [0, 1, 0, 0], sizes = [14, 1, 14, 128], strides = [1, 1, 1, 1]} : vector<14x2x14x128xbf16> to vector<14x1x14x128xbf16>
    %8 = vector.shape_cast %7 : vector<14x1x14x128xbf16> to vector<14x14x128xbf16>
    %9 = arith.maximumf %6, %8 : vector<14x14x128xbf16>
    %c0_2 = arith.constant 0 : index
    %c0_3 = arith.constant 0 : index
    %c0_4 = arith.constant 0 : index
    %10 = vector.load %arg2[%c0_2, %c0_3, %c0_4] : memref<14x14x128xbf16, #tpu.memory_space<vmem>>, vector<14x14x128xbf16>
    tpu.vector_store %arg2[%c0_2, %c0_3, %c0_4], %9 {strides = array<i32>} : memref<14x14x128xbf16, #tpu.memory_space<vmem>>, vector<14x14x128xbf16>,
    return
  }
  func.func @transform_0(%arg0: i32) -> (i32, i32, i32) {
    %c0_i32 = arith.constant 0 : i32
    %c0_i32_0 = arith.constant 0 : i32
    %c0_i32_1 = arith.constant 0 : i32
    return %arg0, %c0_i32, %c0_i32_0 : i32, i32, i32
  }
  func.func @transform_1(%arg0: i32) -> (i32, i32, i32) {
    %c0_i32 = arith.constant 0 : i32
    %c0_i32_0 = arith.constant 0 : i32
    %c0_i32_1 = arith.constant 0 : i32
    return %arg0, %c0_i32, %c0_i32_0 : i32, i32, i32
  }
}

module attributes {stable_mosaic.version = 11 : i64} {
  func.func @_matmul_bias_act_kernel(%arg0: i32, %arg1: memref<256x256xbf16, #tpu.memory_space<vmem>>, %arg2: memref<256x128xbf16, #tpu.memory_space<vmem>>, %arg3: memref<1x128xf32, #tpu.memory_space<vmem>>, %arg4: memref<256x128xbf16, #tpu.memory_space<vmem>>) attributes {dimension_semantics = [#tpu.dimension_semantics<parallel>], iteration_bounds = array<i64: 1>, scalar_prefetch = 0 : i64, scratch_operands = 0 : i64, tpu.core_type = #tpu.core_type<tc>, window_params = [{transform_indices = @transform_0, window_bounds = array<i64: 256, 256>}, {pipeline_mode = #tpu.pipeline_mode<synchronous>, transform_indices = @transform_1, window_bounds = array<i64: 256, 128>}, {pipeline_mode = #tpu.pipeline_mode<synchronous>, transform_indices = @transform_2, window_bounds = array<i64: 1, 128>}, {transform_indices = @transform_3, window_bounds = array<i64: 256, 128>}]} {
    %c0 = arith.constant 0 : index
    %c0_0 = arith.constant 0 : index
    %0 = vector.load %arg1[%c0, %c0_0] : memref<256x256xbf16, #tpu.memory_space<vmem>>, vector<256x256xbf16>
    %c0_1 = arith.constant 0 : index
    %c0_2 = arith.constant 0 : index
    %1 = vector.load %arg2[%c0_1, %c0_2] : memref<256x128xbf16, #tpu.memory_space<vmem>>, vector<256x128xbf16>
    %cst = arith.constant dense<0.000000e+00> : vector<256x128xf32>
    %2 = tpu.matmul %0, %1, %cst {dimension_numbers = #tpu.dot_dimension_numbers<[1], [0], [0], [1], [0, 0, 1, 1], [], []>} : vector<256x256xbf16>, vector<256x128xbf16>, vector<256x128xf32> -> vector<256x128xf32>
    %c0_3 = arith.constant 0 : index
    %c0_4 = arith.constant 0 : index
    %3 = vector.load %arg3[%c0_3, %c0_4] : memref<1x128xf32, #tpu.memory_space<vmem>>, vector<1x128xf32>
    %4 = vector.broadcast %3 : vector<1x128xf32> to vector<256x128xf32>
    %5 = arith.addf %2, %4 : vector<256x128xf32>
    %cst_5 = arith.constant 0.000000e+00 : f32
    %6 = vector.broadcast %cst_5 : f32 to vector<256x128xf32>
    %7 = arith.maximumf %5, %6 : vector<256x128xf32>
    %8 = arith.truncf %7 : vector<256x128xf32> to vector<256x128xbf16>
    %c0_6 = arith.constant 0 : index
    %c0_7 = arith.constant 0 : index
    %9 = vector.load %arg4[%c0_6, %c0_7] : memref<256x128xbf16, #tpu.memory_space<vmem>>, vector<256x128xbf16>
    tpu.vector_store %arg4[%c0_6, %c0_7], %8 {strides = array<i32>} : memref<256x128xbf16, #tpu.memory_space<vmem>>, vector<256x128xbf16>,
    return
  }
  func.func @transform_0(%arg0: i32) -> (i32, i32) {
    %c0_i32 = arith.constant 0 : i32
    %c0_i32_0 = arith.constant 0 : i32
    return %arg0, %c0_i32 : i32, i32
  }
  func.func @transform_1(%arg0: i32) -> (i32, i32) {
    %c0_i32 = arith.constant 0 : i32
    %c0_i32_0 = arith.constant 0 : i32
    %c0_i32_1 = arith.constant 0 : i32
    return %c0_i32, %c0_i32_0 : i32, i32
  }
  func.func @transform_2(%arg0: i32) -> (i32, i32) {
    %c0_i32 = arith.constant 0 : i32
    %c0_i32_0 = arith.constant 0 : i32
    %c0_i32_1 = arith.constant 0 : i32
    return %c0_i32, %c0_i32_0 : i32, i32
  }
  func.func @transform_3(%arg0: i32) -> (i32, i32) {
    %c0_i32 = arith.constant 0 : i32
    %c0_i32_0 = arith.constant 0 : i32
    return %arg0, %c0_i32 : i32, i32
  }
}

module attributes {stable_mosaic.version = 11 : i64} {
  func.func @_maxpool2x2_kernel(%arg0: i32, %arg1: memref<10x5x256xbf16, #tpu.memory_space<vmem>>, %arg2: memref<5x5x128xbf16, #tpu.memory_space<vmem>>) attributes {dimension_semantics = [#tpu.dimension_semantics<parallel>], iteration_bounds = array<i64: 2>, scalar_prefetch = 0 : i64, scratch_operands = 0 : i64, tpu.core_type = #tpu.core_type<tc>, window_params = [{transform_indices = @transform_0, window_bounds = array<i64: 10, 5, 256>}, {transform_indices = @transform_1, window_bounds = array<i64: 5, 5, 128>}]} {
    %c0 = arith.constant 0 : index
    %c0_0 = arith.constant 0 : index
    %c0_1 = arith.constant 0 : index
    %0 = vector.load %arg1[%c0, %c0_0, %c0_1] : memref<10x5x256xbf16, #tpu.memory_space<vmem>>, vector<10x5x256xbf16>
    %1 = vector.extract_strided_slice %0 {offsets = [0, 0, 0], sizes = [10, 5, 128], strides = [1, 1, 1]} : vector<10x5x256xbf16> to vector<10x5x128xbf16>
    %2 = vector.extract_strided_slice %0 {offsets = [0, 0, 128], sizes = [10, 5, 128], strides = [1, 1, 1]} : vector<10x5x256xbf16> to vector<10x5x128xbf16>
    %3 = arith.maximumf %1, %2 : vector<10x5x128xbf16>
    %4 = vector.shape_cast %3 : vector<10x5x128xbf16> to vector<5x2x5x128xbf16>
    %5 = vector.extract_strided_slice %4 {offsets = [0, 0, 0, 0], sizes = [5, 1, 5, 128], strides = [1, 1, 1, 1]} : vector<5x2x5x128xbf16> to vector<5x1x5x128xbf16>
    %6 = vector.shape_cast %5 : vector<5x1x5x128xbf16> to vector<5x5x128xbf16>
    %7 = vector.extract_strided_slice %4 {offsets = [0, 1, 0, 0], sizes = [5, 1, 5, 128], strides = [1, 1, 1, 1]} : vector<5x2x5x128xbf16> to vector<5x1x5x128xbf16>
    %8 = vector.shape_cast %7 : vector<5x1x5x128xbf16> to vector<5x5x128xbf16>
    %9 = arith.maximumf %6, %8 : vector<5x5x128xbf16>
    %c0_2 = arith.constant 0 : index
    %c0_3 = arith.constant 0 : index
    %c0_4 = arith.constant 0 : index
    %10 = vector.load %arg2[%c0_2, %c0_3, %c0_4] : memref<5x5x128xbf16, #tpu.memory_space<vmem>>, vector<5x5x128xbf16>
    tpu.vector_store %arg2[%c0_2, %c0_3, %c0_4], %9 {strides = array<i32>} : memref<5x5x128xbf16, #tpu.memory_space<vmem>>, vector<5x5x128xbf16>,
    return
  }
  func.func @transform_0(%arg0: i32) -> (i32, i32, i32) {
    %c0_i32 = arith.constant 0 : i32
    %c0_i32_0 = arith.constant 0 : i32
    %c0_i32_1 = arith.constant 0 : i32
    return %arg0, %c0_i32, %c0_i32_0 : i32, i32, i32
  }
  func.func @transform_1(%arg0: i32) -> (i32, i32, i32) {
    %c0_i32 = arith.constant 0 : i32
    %c0_i32_0 = arith.constant 0 : i32
    %c0_i32_1 = arith.constant 0 : i32
    return %arg0, %c0_i32, %c0_i32_0 : i32, i32, i32
  }
}

module attributes {stable_mosaic.version = 11 : i64} {
  func.func @_fc_fused_kernel(%arg0: memref<2x3200xbf16, #tpu.memory_space<vmem>>, %arg1: memref<3200x128xbf16, #tpu.memory_space<vmem>>, %arg2: memref<1x128xf32, #tpu.memory_space<vmem>>, %arg3: memref<128x128xbf16, #tpu.memory_space<vmem>>, %arg4: memref<1x128xf32, #tpu.memory_space<vmem>>, %arg5: memref<128x128xbf16, #tpu.memory_space<vmem>>, %arg6: memref<1x128xf32, #tpu.memory_space<vmem>>, %arg7: memref<2x128xf32, #tpu.memory_space<vmem>>) attributes {dimension_semantics = [], scalar_prefetch = 0 : i64, scratch_operands = 0 : i64, tpu.core_type = #tpu.core_type<tc>} {
    %c0 = arith.constant 0 : index
    %c0_0 = arith.constant 0 : index
    %0 = vector.load %arg0[%c0, %c0_0] : memref<2x3200xbf16, #tpu.memory_space<vmem>>, vector<2x3200xbf16>
    %c0_1 = arith.constant 0 : index
    %c0_2 = arith.constant 0 : index
    %1 = vector.load %arg1[%c0_1, %c0_2] : memref<3200x128xbf16, #tpu.memory_space<vmem>>, vector<3200x128xbf16>
    %cst = arith.constant dense<0.000000e+00> : vector<2x128xf32>
    %2 = tpu.matmul %0, %1, %cst {dimension_numbers = #tpu.dot_dimension_numbers<[1], [0], [0], [1], [0, 0, 1, 1], [], []>} : vector<2x3200xbf16>, vector<3200x128xbf16>, vector<2x128xf32> -> vector<2x128xf32>
    %c0_3 = arith.constant 0 : index
    %c0_4 = arith.constant 0 : index
    %3 = vector.load %arg2[%c0_3, %c0_4] : memref<1x128xf32, #tpu.memory_space<vmem>>, vector<1x128xf32>
    %4 = vector.broadcast %3 : vector<1x128xf32> to vector<2x128xf32>
    %5 = arith.addf %2, %4 : vector<2x128xf32>
    %cst_5 = arith.constant 0.000000e+00 : f32
    %6 = vector.broadcast %cst_5 : f32 to vector<2x128xf32>
    %7 = arith.maximumf %5, %6 : vector<2x128xf32>
    %8 = arith.truncf %7 : vector<2x128xf32> to vector<2x128xbf16>
    %c0_6 = arith.constant 0 : index
    %c0_7 = arith.constant 0 : index
    %9 = vector.load %arg3[%c0_6, %c0_7] : memref<128x128xbf16, #tpu.memory_space<vmem>>, vector<128x128xbf16>
    %cst_8 = arith.constant dense<0.000000e+00> : vector<2x128xf32>
    %10 = tpu.matmul %8, %9, %cst_8 {dimension_numbers = #tpu.dot_dimension_numbers<[1], [0], [0], [1], [0, 0, 1, 1], [], []>} : vector<2x128xbf16>, vector<128x128xbf16>, vector<2x128xf32> -> vector<2x128xf32>
    %c0_9 = arith.constant 0 : index
    %c0_10 = arith.constant 0 : index
    %11 = vector.load %arg4[%c0_9, %c0_10] : memref<1x128xf32, #tpu.memory_space<vmem>>, vector<1x128xf32>
    %12 = vector.broadcast %11 : vector<1x128xf32> to vector<2x128xf32>
    %13 = arith.addf %10, %12 : vector<2x128xf32>
    %cst_11 = arith.constant 0.000000e+00 : f32
    %14 = vector.broadcast %cst_11 : f32 to vector<2x128xf32>
    %15 = arith.maximumf %13, %14 : vector<2x128xf32>
    %16 = arith.truncf %15 : vector<2x128xf32> to vector<2x128xbf16>
    %c0_12 = arith.constant 0 : index
    %c0_13 = arith.constant 0 : index
    %17 = vector.load %arg5[%c0_12, %c0_13] : memref<128x128xbf16, #tpu.memory_space<vmem>>, vector<128x128xbf16>
    %cst_14 = arith.constant dense<0.000000e+00> : vector<2x128xf32>
    %18 = tpu.matmul %16, %17, %cst_14 {dimension_numbers = #tpu.dot_dimension_numbers<[1], [0], [0], [1], [0, 0, 1, 1], [], []>} : vector<2x128xbf16>, vector<128x128xbf16>, vector<2x128xf32> -> vector<2x128xf32>
    %c0_15 = arith.constant 0 : index
    %c0_16 = arith.constant 0 : index
    %19 = vector.load %arg6[%c0_15, %c0_16] : memref<1x128xf32, #tpu.memory_space<vmem>>, vector<1x128xf32>
    %20 = vector.broadcast %19 : vector<1x128xf32> to vector<2x128xf32>
    %21 = arith.addf %18, %20 : vector<2x128xf32>
    %c0_17 = arith.constant 0 : index
    %c0_18 = arith.constant 0 : index
    %22 = vector.load %arg7[%c0_17, %c0_18] : memref<2x128xf32, #tpu.memory_space<vmem>>, vector<2x128xf32>
    tpu.vector_store %arg7[%c0_17, %c0_18], %21 {strides = array<i32>} : memref<2x128xf32, #tpu.memory_space<vmem>>, vector<2x128xf32>,
    return
  }
}

</mosaic_0001>

<llo_original>
// kernel: net_forward.5
$region0: #{net_forward.5}
  #allocation0 [shape = 'u32[]', space=smem, size = 0x4, offset = 0x4, fixed_abs, tag = 'smem constant byte address 0x4 - core index']
  #allocation1 [shape = 'u32[72,128]{1,0:T(1,128)}', space=vmem, size = 0x9000, scoped, tag = 'internal scratch']
  %s0 = inlined_call_operand.vmem [shape: bf16[1792,128], index: 0, kind: input, shape index: {}]
  %s1 = inlined_call_operand.vmem [shape: bf16[128,128], index: 1, kind: input, shape index: {}]
  %s2 = inlined_call_operand.vmem [shape: f32[1,128], index: 2, kind: input, shape index: {}]
  %s3 = inlined_call_operand.vmem [shape: bf16[1792,128], index: 3, kind: output, shape index: {}]
  %s4 = sld [smem:[#allocation0]]
  $region45: #{net_forward.5} parent=0
    _
  %s6 = ssub.s32 1, %s4
  %s7 = scalar_select 0, %s6, %s4
  loop: start=0, step=1, limit=9
  $region2: #{net_forward.5} parent=0 // loop_pre_header
    _
  $region3: #{net_forward.5} parent=0 // loop_header
    %s9 = sphi 0, %s13
    %p10 = scmp.ge.s32.totalorder %s9, 9
    %s19 = sphi 0, %s21
    %s22 = sphi 0, %s19
    %s23 = sphi 0, %s22
    %s39 = sphi 0, %s23
    %s43 = sphi 0, %s43
    %s45 = sphi 0, %s43
    %s46 = sphi 0, %s45
    %s60 = sphi 0, %s46
    %s64 = sphi 0, %s64
    %s66 = sphi 0, %s64
    %s67 = sphi 0, %s66
    %s81 = sphi 0, %s67
    %s87 = sphi 0, %s89
    %s90 = sphi 0, %s87
    %s91 = sphi 0, %s90
    %s107 = sphi 0, %s91
  $region4: #{net_forward.5} parent=0 // loop_header_branch
    %12 = sbr.rel (%p10) target = $region8
  $region5: #{net_forward.5} parent=0 // loop_body
    %s14 = ssub.s32 %s9, 1
    %s15 = ssub.s32 %s9, 2
    %s16 = sadd.s32 %s9, 1
    %s17 = ssub.s32 %s9, %s16
    %p18 = scmp.eq.s32.totalorder %s17, 0
    %s20 = sadd.s32 %s19, 1
    %s21 = scalar_select %p18, %s19, %s20
    %p24 = pneg %p18
    %p25 = scmp.eq.s32.totalorder %s9, 6
    %p26 = por %p24, %p25
    %p27 = scmp.ne.s32.totalorder %s19, %s22
    %p28 = scmp.eq.s32.totalorder %s9, 0
    %p29 = por %p27, %p28
    %p30 = scmp.ne.s32.totalorder %s19, %s22
    %p31 = scmp.eq.s32.totalorder %s14, 6
    %p32 = por %p30, %p31
    %p33 = scmp.ne.s32.totalorder %s22, %s23
    %p34 = scmp.eq.s32.totalorder %s14, 0
    %p35 = por %p33, %p34
    %p36 = scmp.ne.s32.totalorder %s22, %s23
    %p37 = scmp.eq.s32.totalorder %s15, 6
    %p38 = por %p36, %p37
    %p40 = scmp.ne.s32.totalorder %s23, %s39
    %p41 = scmp.eq.s32.totalorder %s15, 0
    %p42 = por %p40, %p41
    %s44 = sadd.s32 %s43, 1
    %p47 = scmp.eq.s32.totalorder %s9, 6
    %p48 = scmp.ne.s32.totalorder %s43, %s45
    %p49 = scmp.eq.s32.totalorder %s9, 0
    %p50 = por %p48, %p49
    %p51 = scmp.ne.s32.totalorder %s43, %s45
    %p52 = scmp.eq.s32.totalorder %s14, 6
    %p53 = por %p51, %p52
    %p54 = scmp.ne.s32.totalorder %s45, %s46
    %p55 = scmp.eq.s32.totalorder %s14, 0
    %p56 = por %p54, %p55
    %p57 = scmp.ne.s32.totalorder %s45, %s46
    %p58 = scmp.eq.s32.totalorder %s15, 6
    %p59 = por %p57, %p58
    %p61 = scmp.ne.s32.totalorder %s46, %s60
    %p62 = scmp.eq.s32.totalorder %s15, 0
    %p63 = por %p61, %p62
    %s65 = sadd.s32 %s64, 1
    %p68 = scmp.eq.s32.totalorder %s9, 6
    %p69 = scmp.ne.s32.totalorder %s64, %s66
    %p70 = scmp.eq.s32.totalorder %s9, 0
    %p71 = por %p69, %p70
    %p72 = scmp.ne.s32.totalorder %s64, %s66
    %p73 = scmp.eq.s32.totalorder %s14, 6
    %p74 = por %p72, %p73
    %p75 = scmp.ne.s32.totalorder %s66, %s67
    %p76 = scmp.eq.s32.totalorder %s14, 0
    %p77 = por %p75, %p76
    %p78 = scmp.ne.s32.totalorder %s66, %s67
    %p79 = scmp.eq.s32.totalorder %s15, 6
    %p80 = por %p78, %p79
    %p82 = scmp.ne.s32.totalorder %s67, %s81
    %p83 = scmp.eq.s32.totalorder %s15, 0
    %p84 = por %p82, %p83
    %s85 = ssub.s32 %s9, %s16
    %p86 = scmp.eq.s32.totalorder %s85, 0
    %s88 = sadd.s32 %s87, 1
    %s89 = scalar_select %p86, %s87, %s88
    %p92 = pneg %p86
    %p93 = scmp.eq.s32.totalorder %s9, 6
    %p94 = por %p92, %p93
    %p95 = scmp.ne.s32.totalorder %s87, %s90
    %p96 = scmp.eq.s32.totalorder %s9, 0
    %p97 = por %p95, %p96
    %p98 = scmp.ne.s32.totalorder %s87, %s90
    %p99 = scmp.eq.s32.totalorder %s14, 6
    %p100 = por %p98, %p99
    %p101 = scmp.ne.s32.totalorder %s90, %s91
    %p102 = scmp.eq.s32.totalorder %s14, 0
    %p103 = por %p101, %p102
    %p104 = scmp.ne.s32.totalorder %s90, %s91
    %p105 = scmp.eq.s32.totalorder %s15, 6
    %p106 = por %p104, %p105
    %p108 = scmp.ne.s32.totalorder %s91, %s107
    %p109 = scmp.eq.s32.totalorder %s15, 0
    %p110 = por %p108, %p109
    %p111 = scmp.le.s32.totalorder 1, %s9
    %p112 = scmp.lt.s32.totalorder %s9, 8
    %p113 = pnand %p111, %p112
    %p114 = pneg %p113
    // Predicated region
    $region9: #{net_forward.5} parent=5 // pred_check
      _
    $region10: #{net_forward.5} parent=5 // pred_check_branch
      %116 = sbr.rel (%p113) target = $region12
    $region11: #{net_forward.5} parent=5 // pred_region
      %s117 = ssub.s32 %s9, 1
      // Predicated region
      $region13: #{net_forward.5} parent=11 // pred_check
        %p118 = pneg %p56
      $region14: #{net_forward.5} parent=11 // pred_check_branch
        %120 = sbr.rel (%p118) target = $region16
      $region15: #{net_forward.5} parent=11 // pred_region
        _
      $region16: #{net_forward.5} parent=11 // pred_fallthru
        _
      // Predicated region
      $region17: #{net_forward.5} parent=11 // pred_check
        %p121 = pneg %p77
      $region18: #{net_forward.5} parent=11 // pred_check_branch
        %123 = sbr.rel (%p121) target = $region20
      $region19: #{net_forward.5} parent=11 // pred_region
        _
      $region20: #{net_forward.5} parent=11 // pred_fallthru
        _
    $region12: #{net_forward.5} parent=5 // pred_fallthru
      _
    %p124 = scmp.lt.s32.totalorder %s9, 7
    // Predicated region
    $region21: #{net_forward.5} parent=5 // pred_check
      %p125 = pneg %p124
    $region22: #{net_forward.5} parent=5 // pred_check_branch
      %127 = sbr.rel (%p125) target = $region24
    $region23: #{net_forward.5} parent=5 // pred_region
      // Predicated region
      $region25: #{net_forward.5} parent=23 // pred_check
        %p128 = pneg %p29
      $region26: #{net_forward.5} parent=23 // pred_check_branch
        %130 = sbr.rel (%p128) target = $region28
      $region27: #{net_forward.5} parent=23 // pred_region
        %s131 = smul.u32 32, %s9
        %p132 = scmp.lt.s32.totalorder %s131, 223
        %s133 = scalar_select %p132, %s131, 223
        %s134 = smul.addr %s133, 4
        %s135 = scalar_lea.vmem %s0, %s134
        %s136 = smul.u32 32, %s9
      $region28: #{net_forward.5} parent=23 // pred_fallthru
        _
    $region24: #{net_forward.5} parent=5 // pred_fallthru
      _
    %p137 = scmp.le.s32.totalorder 1, %s9
    %p138 = scmp.lt.s32.totalorder %s9, 8
    %p139 = pnand %p137, %p138
    %p140 = pneg %p139
    // Predicated region
    $region29: #{net_forward.5} parent=5 // pred_check
      _
    $region30: #{net_forward.5} parent=5 // pred_check_branch
      %142 = sbr.rel (%p139) target = $region32
    $region31: #{net_forward.5} parent=5 // pred_region
      %s143 = ssub.s32 %s9, 1
      %s144 = smul.u32 32, %s14
      %p145 = scmp.lt.s32.totalorder %s144, 223
      %s146 = scalar_select %p145, %s144, 223
      %s147 = smul.addr %s146, 4
      %s148 = scalar_lea.vmem %s0, %s147
      %p149 = pneg %p35
      %p150 = pneg %p32
      %p151 = pneg %p56
      %p152 = pneg %p53
      %p153 = pneg %p77
      %p154 = pneg %p74
      %p155 = pneg %p103
      %p156 = pneg %p100
      %s157 = smul.u32 32, %s14
      %p158 = scmp.lt.s32.totalorder %s157, 223
      %s159 = scalar_select %p158, %s157, 223
      %s160 = smul.addr %s159, 4
      %s161 = scalar_lea.vmem %s3, %s160
      %s162 = smul.u32 32, %s14
      %p163 = scmp.lt.s32.totalorder %s162, 223
      %s164 = scalar_select %p163, %s162, 223
      %s165 = smul.addr %s164, 4
      %s166 = scalar_lea.vmem %s0, %s165
      %s167 = smul.u32 32, %s14
      %s168 = smul.u32 32, %s14
      %p169 = scmp.lt.s32.totalorder %s168, 223
      %s170 = scalar_select %p169, %s168, 223
      %s171 = smul.addr %s170, 4
      %s172 = scalar_lea.vmem %s3, %s171
      %s173 = smul.u32 32, %s14
      %v174 = vld [vmem:[%s166] sm:$0xf]
      %v175 = vld [vmem:[%s166 + $0x4] sm:$0xf]
      %v176 = vld [vmem:[%s166 + $0x8] sm:$0xf]
      %v177 = vld [vmem:[%s166 + $0xc] sm:$0xf]
      %v178 = vld [vmem:[%s166 + $0x10] sm:$0xf]
      %v179 = vld [vmem:[%s166 + $0x14] sm:$0xf]
      %v180 = vld [vmem:[%s166 + $0x18] sm:$0xf]
      %v181 = vld [vmem:[%s166 + $0x1c] sm:$0xf]
      %v182 = vld [vmem:[%s166 + $0x20] sm:$0xf]
      %v183 = vld [vmem:[%s166 + $0x24] sm:$0xf]
      %v184 = vld [vmem:[%s166 + $0x28] sm:$0xf]
      %v185 = vld [vmem:[%s166 + $0x2c] sm:$0xf]
      %v186 = vld [vmem:[%s166 + $0x30] sm:$0xf]
      %v187 = vld [vmem:[%s166 + $0x34] sm:$0xf]
      %v188 = vld [vmem:[%s166 + $0x38] sm:$0xf]
      %v189 = vld [vmem:[%s166 + $0x3c] sm:$0xf]
      %v190 = vld [vmem:[%s166 + $0x40] sm:$0xf]
      %v191 = vld [vmem:[%s166 + $0x44] sm:$0xf]
      %v192 = vld [vmem:[%s166 + $0x48] sm:$0xf]
      %v193 = vld [vmem:[%s166 + $0x4c] sm:$0xf]
      %v194 = vld [vmem:[%s166 + $0x50] sm:$0xf]
      %v195 = vld [vmem:[%s166 + $0x54] sm:$0xf]
      %v196 = vld [vmem:[%s166 + $0x58] sm:$0xf]
      %v197 = vld [vmem:[%s166 + $0x5c] sm:$0xf]
      %v198 = vld [vmem:[%s166 + $0x60] sm:$0xf]
      %v199 = vld [vmem:[%s166 + $0x64] sm:$0xf]
      %v200 = vld [vmem:[%s166 + $0x68] sm:$0xf]
      %v201 = vld [vmem:[%s166 + $0x6c] sm:$0xf]
      %v202 = vld [vmem:[%s166 + $0x70] sm:$0xf]
      %v203 = vld [vmem:[%s166 + $0x74] sm:$0xf]
      %v204 = vld [vmem:[%s166 + $0x78] sm:$0xf]
      %v205 = vld [vmem:[%s166 + $0x7c] sm:$0xf]
      %v206 = vld [vmem:[%s1] sm:$0xf]
      %v207 = vld [vmem:[%s1 + $0x4] sm:$0xf]
      %v208 = vld [vmem:[%s1 + $0x8] sm:$0xf]
      %v209 = vld [vmem:[%s1 + $0xc] sm:$0xf]
      %v210 = vld [vmem:[%s1 + $0x10] sm:$0xf]
      %v211 = vld [vmem:[%s1 + $0x14] sm:$0xf]
      %v212 = vld [vmem:[%s1 + $0x18] sm:$0xf]
      %v213 = vld [vmem:[%s1 + $0x1c] sm:$0xf]
      %v214 = vld [vmem:[%s1 + $0x20] sm:$0xf]
      %v215 = vld [vmem:[%s1 + $0x24] sm:$0xf]
      %v216 = vld [vmem:[%s1 + $0x28] sm:$0xf]
      %v217 = vld [vmem:[%s1 + $0x2c] sm:$0xf]
      %v218 = vld [vmem:[%s1 + $0x30] sm:$0xf]
      %v219 = vld [vmem:[%s1 + $0x34] sm:$0xf]
      %v220 = vld [vmem:[%s1 + $0x38] sm:$0xf]
      %v221 = vld [vmem:[%s1 + $0x3c] sm:$0xf]
      %v222 = vld [vmem:[%s2] sm:$0x1]
      %v224 = vperm.slane %v222, 0
      %v258 = vunpack.c.l.b16 %v174
      %v259 = vunpack.c.l.b16 %v175
      %v260 = vunpack.c.l.b16 %v176
      %v261 = vunpack.c.l.b16 %v177
      %v262 = vunpack.c.l.b16 %v178
      %v263 = vunpack.c.l.b16 %v179
      %v264 = vunpack.c.l.b16 %v180
      %v265 = vunpack.c.l.b16 %v181
      %v266 = vunpack.c.l.b16 %v182
      %v267 = vunpack.c.l.b16 %v183
      %v268 = vunpack.c.l.b16 %v184
      %v269 = vunpack.c.l.b16 %v185
      %v270 = vunpack.c.l.b16 %v186
      %v271 = vunpack.c.l.b16 %v187
      %v272 = vunpack.c.l.b16 %v188
      %v273 = vunpack.c.l.b16 %v189
      %v274 = vunpack.c.l.b16 %v190
      %v275 = vunpack.c.l.b16 %v191
      %v276 = vunpack.c.l.b16 %v192
      %v277 = vunpack.c.l.b16 %v193
      %v278 = vunpack.c.l.b16 %v194
      %v279 = vunpack.c.l.b16 %v195
      %v280 = vunpack.c.l.b16 %v196
      %v281 = vunpack.c.l.b16 %v197
      %v282 = vunpack.c.l.b16 %v198
      %v283 = vunpack.c.l.b16 %v199
      %v284 = vunpack.c.l.b16 %v200
      %v285 = vunpack.c.l.b16 %v201
      %v286 = vunpack.c.l.b16 %v202
      %v287 = vunpack.c.l.b16 %v203
      %v288 = vunpack.c.l.b16 %v204
      %v289 = vunpack.c.l.b16 %v205
      %v290 = vpack.c.b16 %v259, %v258
      %v291 = vpack.c.b16 %v261, %v260
      %v292 = vpack.c.b16 %v263, %v262
      %v293 = vpack.c.b16 %v265, %v264
      %v294 = vpack.c.b16 %v267, %v266
      %v295 = vpack.c.b16 %v269, %v268
      %v296 = vpack.c.b16 %v271, %v270
      %v297 = vpack.c.b16 %v273, %v272
      %v298 = vpack.c.b16 %v275, %v274
      %v299 = vpack.c.b16 %v277, %v276
      %v300 = vpack.c.b16 %v279, %v278
      %v301 = vpack.c.b16 %v281, %v280
      %v302 = vpack.c.b16 %v283, %v282
      %v303 = vpack.c.b16 %v285, %v284
      %v304 = vpack.c.b16 %v287, %v286
      %v305 = vpack.c.b16 %v289, %v288
      %v338 = vunpack.c.l.b16 %v206
      %v339 = vunpack.c.l.b16 %v207
      %v340 = vunpack.c.l.b16 %v208
      %v341 = vunpack.c.l.b16 %v209
      %v342 = vunpack.c.l.b16 %v210
      %v343 = vunpack.c.l.b16 %v211
      %v344 = vunpack.c.l.b16 %v212
      %v345 = vunpack.c.l.b16 %v213
      %v346 = vunpack.c.l.b16 %v214
      %v347 = vunpack.c.l.b16 %v215
      %v348 = vunpack.c.l.b16 %v216
      %v349 = vunpack.c.l.b16 %v217
      %v350 = vunpack.c.l.b16 %v218
      %v351 = vunpack.c.l.b16 %v219
      %v352 = vunpack.c.l.b16 %v220
      %v353 = vunpack.c.l.b16 %v221
      %v354 = vpack.c.b16 %v339, %v338
      %v355 = vpack.c.b16 %v341, %v340
      %v356 = vpack.c.b16 %v343, %v342
      %v357 = vpack.c.b16 %v345, %v344
      %v358 = vpack.c.b16 %v347, %v346
      %v359 = vpack.c.b16 %v349, %v348
      %v360 = vpack.c.b16 %v351, %v350
      %v361 = vpack.c.b16 %v353, %v352
      %370 = vmatpush.bf16.msra.mxu0 %v361
      %371 = vmatpush.bf16.msra.mxu0 %v360
      %372 = vmatpush.bf16.msra.mxu0 %v359
      %373 = vmatpush.bf16.msra.mxu0 %v358
      %374 = vmatpush.bf16.msra.mxu0 %v357
      %375 = vmatpush.bf16.msra.mxu0 %v356
      %376 = vmatpush.bf16.msra.mxu0 %v355
      %377 = vmatpush.bf16.msra.mxu0 %v354
      %378 = vmatmul.bf16.gmra.mxu0 %v290
      %v379 = vpop.f32.mrf.mxu0
      %v380 = vadd.f32 %v224, %v379
      %v381 = vpop.f32.mrf.mxu0
      %v382 = vadd.f32 %v224, %v381
      %383 = vmatmul.bf16.gmra.mxu0 %v291
      %v384 = vpop.f32.mrf.mxu0
      %v385 = vadd.f32 %v224, %v384
      %v386 = vpop.f32.mrf.mxu0
      %v387 = vadd.f32 %v224, %v386
      %388 = vmatmul.bf16.gmra.mxu0 %v292
      %v389 = vpop.f32.mrf.mxu0
      %v390 = vadd.f32 %v224, %v389
      %v391 = vpop.f32.mrf.mxu0
      %v392 = vadd.f32 %v224, %v391
      %393 = vmatmul.bf16.gmra.mxu0 %v293
      %v394 = vpop.f32.mrf.mxu0
      %v395 = vadd.f32 %v224, %v394
      %v396 = vpop.f32.mrf.mxu0
      %v397 = vadd.f32 %v224, %v396
      %398 = vmatmul.bf16.gmra.mxu0 %v294
      %v399 = vpop.f32.mrf.mxu0
      %v400 = vadd.f32 %v224, %v399
      %v401 = vpop.f32.mrf.mxu0
      %v402 = vadd.f32 %v224, %v401
      %403 = vmatmul.bf16.gmra.mxu0 %v295
      %v404 = vpop.f32.mrf.mxu0
      %v405 = vadd.f32 %v224, %v404
      %v406 = vpop.f32.mrf.mxu0
      %v407 = vadd.f32 %v224, %v406
      %408 = vmatmul.bf16.gmra.mxu0 %v296
      %v409 = vpop.f32.mrf.mxu0
      %v410 = vadd.f32 %v224, %v409
      %v411 = vpop.f32.mrf.mxu0
      %v412 = vadd.f32 %v224, %v411
      %413 = vmatmul.bf16.gmra.mxu0 %v297
      %v414 = vpop.f32.mrf.mxu0
      %v415 = vadd.f32 %v224, %v414
      %v416 = vpop.f32.mrf.mxu0
      %v417 = vadd.f32 %v224, %v416
      %418 = vmatmul.bf16.gmra.mxu0 %v298
      %v419 = vpop.f32.mrf.mxu0
      %v420 = vadd.f32 %v224, %v419
      %v421 = vpop.f32.mrf.mxu0
      %v422 = vadd.f32 %v224, %v421
      %423 = vmatmul.bf16.gmra.mxu0 %v299
      %v424 = vpop.f32.mrf.mxu0
      %v425 = vadd.f32 %v224, %v424
      %v426 = vpop.f32.mrf.mxu0
      %v427 = vadd.f32 %v224, %v426
      %428 = vmatmul.bf16.gmra.mxu0 %v300
      %v429 = vpop.f32.mrf.mxu0
      %v430 = vadd.f32 %v224, %v429
      %v431 = vpop.f32.mrf.mxu0
      %v432 = vadd.f32 %v224, %v431
      %433 = vmatmul.bf16.gmra.mxu0 %v301
      %v434 = vpop.f32.mrf.mxu0
      %v435 = vadd.f32 %v224, %v434
      %v436 = vpop.f32.mrf.mxu0
      %v437 = vadd.f32 %v224, %v436
      %438 = vmatmul.bf16.gmra.mxu0 %v302
      %v439 = vpop.f32.mrf.mxu0
      %v440 = vadd.f32 %v224, %v439
      %v441 = vpop.f32.mrf.mxu0
      %v442 = vadd.f32 %v224, %v441
      %443 = vmatmul.bf16.gmra.mxu0 %v303
      %v444 = vpop.f32.mrf.mxu0
      %v445 = vadd.f32 %v224, %v444
      %v446 = vpop.f32.mrf.mxu0
      %v447 = vadd.f32 %v224, %v446
      %448 = vmatmul.bf16.gmra.mxu0 %v304
      %v449 = vpop.f32.mrf.mxu0
      %v450 = vadd.f32 %v224, %v449
      %v451 = vpop.f32.mrf.mxu0
      %v452 = vadd.f32 %v224, %v451
      %453 = vmatmul.bf16.gmra.mxu0 %v305
      %v454 = vpop.f32.mrf.mxu0
      %v455 = vadd.f32 %v224, %v454
      %v456 = vpop.f32.mrf.mxu0
      %v457 = vadd.f32 %v224, %v456
      %458 = vdwg.mxu0
      %v459 = vmax.f32 %v380, 0.0
      %v460 = vmax.f32 %v382, 0.0
      %v461 = vmax.f32 %v385, 0.0
      %v462 = vmax.f32 %v387, 0.0
      %v463 = vmax.f32 %v390, 0.0
      %v464 = vmax.f32 %v392, 0.0
      %v465 = vmax.f32 %v395, 0.0
      %v466 = vmax.f32 %v397, 0.0
      %v467 = vmax.f32 %v400, 0.0
      %v468 = vmax.f32 %v402, 0.0
      %v469 = vmax.f32 %v405, 0.0
      %v470 = vmax.f32 %v407, 0.0
      %v471 = vmax.f32 %v410, 0.0
      %v472 = vmax.f32 %v412, 0.0
      %v473 = vmax.f32 %v415, 0.0
      %v474 = vmax.f32 %v417, 0.0
      %v475 = vmax.f32 %v420, 0.0
      %v476 = vmax.f32 %v422, 0.0
      %v477 = vmax.f32 %v425, 0.0
      %v478 = vmax.f32 %v427, 0.0
      %v479 = vmax.f32 %v430, 0.0
      %v480 = vmax.f32 %v432, 0.0
      %v481 = vmax.f32 %v435, 0.0
      %v482 = vmax.f32 %v437, 0.0
      %v483 = vmax.f32 %v440, 0.0
      %v484 = vmax.f32 %v442, 0.0
      %v485 = vmax.f32 %v445, 0.0
      %v486 = vmax.f32 %v447, 0.0
      %v487 = vmax.f32 %v450, 0.0
      %v488 = vmax.f32 %v452, 0.0
      %v489 = vmax.f32 %v455, 0.0
      %v490 = vmax.f32 %v457, 0.0
      %v491 = vpack.c.bf16 %v459, %v459
      %v492 = vpack.c.bf16 %v460, %v460
      %v493 = vpack.c.bf16 %v461, %v461
      %v494 = vpack.c.bf16 %v462, %v462
      %v495 = vpack.c.bf16 %v463, %v463
      %v496 = vpack.c.bf16 %v464, %v464
      %v497 = vpack.c.bf16 %v465, %v465
      %v498 = vpack.c.bf16 %v466, %v466
      %v499 = vpack.c.bf16 %v467, %v467
      %v500 = vpack.c.bf16 %v468, %v468
      %v501 = vpack.c.bf16 %v469, %v469
      %v502 = vpack.c.bf16 %v470, %v470
      %v503 = vpack.c.bf16 %v471, %v471
      %v504 = vpack.c.bf16 %v472, %v472
      %v505 = vpack.c.bf16 %v473, %v473
      %v506 = vpack.c.bf16 %v474, %v474
      %v507 = vpack.c.bf16 %v475, %v475
      %v508 = vpack.c.bf16 %v476, %v476
      %v509 = vpack.c.bf16 %v477, %v477
      %v510 = vpack.c.bf16 %v478, %v478
      %v511 = vpack.c.bf16 %v479, %v479
      %v512 = vpack.c.bf16 %v480, %v480
      %v513 = vpack.c.bf16 %v481, %v481
      %v514 = vpack.c.bf16 %v482, %v482
      %v515 = vpack.c.bf16 %v483, %v483
      %v516 = vpack.c.bf16 %v484, %v484
      %v517 = vpack.c.bf16 %v485, %v485
      %v518 = vpack.c.bf16 %v486, %v486
      %v519 = vpack.c.bf16 %v487, %v487
      %v520 = vpack.c.bf16 %v488, %v488
      %v521 = vpack.c.bf16 %v489, %v489
      %v522 = vpack.c.bf16 %v490, %v490
      %523 = vst [vmem:[%s172] sm:$0xf] %v491
      %524 = vst [vmem:[%s172 + $0x4] sm:$0xf] %v492
      %525 = vst [vmem:[%s172 + $0x8] sm:$0xf] %v493
      %526 = vst [vmem:[%s172 + $0xc] sm:$0xf] %v494
      %527 = vst [vmem:[%s172 + $0x10] sm:$0xf] %v495
      %528 = vst [vmem:[%s172 + $0x14] sm:$0xf] %v496
      %529 = vst [vmem:[%s172 + $0x18] sm:$0xf] %v497
      %530 = vst [vmem:[%s172 + $0x1c] sm:$0xf] %v498
      %531 = vst [vmem:[%s172 + $0x20] sm:$0xf] %v499
      %532 = vst [vmem:[%s172 + $0x24] sm:$0xf] %v500
      %533 = vst [vmem:[%s172 + $0x28] sm:$0xf] %v501
      %534 = vst [vmem:[%s172 + $0x2c] sm:$0xf] %v502
      %535 = vst [vmem:[%s172 + $0x30] sm:$0xf] %v503
      %536 = vst [vmem:[%s172 + $0x34] sm:$0xf] %v504
      %537 = vst [vmem:[%s172 + $0x38] sm:$0xf] %v505
      %538 = vst [vmem:[%s172 + $0x3c] sm:$0xf] %v506
      %539 = vst [vmem:[%s172 + $0x40] sm:$0xf] %v507
      %540 = vst [vmem:[%s172 + $0x44] sm:$0xf] %v508
      %541 = vst [vmem:[%s172 + $0x48] sm:$0xf] %v509
      %542 = vst [vmem:[%s172 + $0x4c] sm:$0xf] %v510
      %543 = vst [vmem:[%s172 + $0x50] sm:$0xf] %v511
      %544 = vst [vmem:[%s172 + $0x54] sm:$0xf] %v512
      %545 = vst [vmem:[%s172 + $0x58] sm:$0xf] %v513
      %546 = vst [vmem:[%s172 + $0x5c] sm:$0xf] %v514
      %547 = vst [vmem:[%s172 + $0x60] sm:$0xf] %v515
      %548 = vst [vmem:[%s172 + $0x64] sm:$0xf] %v516
      %549 = vst [vmem:[%s172 + $0x68] sm:$0xf] %v517
      %550 = vst [vmem:[%s172 + $0x6c] sm:$0xf] %v518
      %551 = vst [vmem:[%s172 + $0x70] sm:$0xf] %v519
      %552 = vst [vmem:[%s172 + $0x74] sm:$0xf] %v520
      %553 = vst [vmem:[%s172 + $0x78] sm:$0xf] %v521
      %554 = vst [vmem:[%s172 + $0x7c] sm:$0xf] %v522
      %s555 = smul.u32 32, %s14
      %p556 = scmp.lt.s32.totalorder %s555, 223
      %s557 = scalar_select %p556, %s555, 223
      %s558 = smul.addr %s557, 4
      %s559 = scalar_lea.vmem %s3, %s558
      // Predicated region
      $region33: #{net_forward.5} parent=31 // pred_check
        %p560 = pneg %p100
      $region34: #{net_forward.5} parent=31 // pred_check_branch
        %562 = sbr.rel (%p560) target = $region36
      $region35: #{net_forward.5} parent=31 // pred_region
        %s563 = smul.u32 32, %s14
      $region36: #{net_forward.5} parent=31 // pred_fallthru
        _
    $region32: #{net_forward.5} parent=5 // pred_fallthru
      _
    %p564 = scmp.le.s32.totalorder 2, %s9
    // Predicated region
    $region37: #{net_forward.5} parent=5 // pred_check
      %p565 = pneg %p564
    $region38: #{net_forward.5} parent=5 // pred_check_branch
      %567 = sbr.rel (%p565) target = $region40
    $region39: #{net_forward.5} parent=5 // pred_region
      %s568 = ssub.s32 %s9, 2
      // Predicated region
      $region41: #{net_forward.5} parent=39 // pred_check
        %p569 = pneg %p106
      $region42: #{net_forward.5} parent=39 // pred_check_branch
        %571 = sbr.rel (%p569) target = $region44
      $region43: #{net_forward.5} parent=39 // pred_region
        %s572 = smul.u32 32, %s15
        %p573 = scmp.lt.s32.totalorder %s572, 223
        %s574 = scalar_select %p573, %s572, 223
        %s575 = smul.addr %s574, 4
        %s576 = scalar_lea.vmem %s3, %s575
      $region44: #{net_forward.5} parent=39 // pred_fallthru
        _
    $region40: #{net_forward.5} parent=5 // pred_fallthru
      _
  $region6: #{net_forward.5} parent=0 // loop_footer
    %s13 = sadd.s32 1, %s9
  $region7: #{net_forward.5} parent=0 // loop_footer_branch
    %8 = sbr.rel target = $region3
  $region8: #{net_forward.5} parent=0 // loop_exit
    _

// kernel: net_forward.6
$region0: #{net_forward.6}
  #allocation0 [shape = 'u32[]', space=smem, size = 0x4, offset = 0x4, fixed_abs, tag = 'smem constant byte address 0x4 - core index']
  #allocation1 [shape = 'u32[72,128]{1,0:T(1,128)}', space=vmem, size = 0x9000, scoped, tag = 'internal scratch']
  %s0 = inlined_call_operand.vmem [shape: bf16[56,14,256], index: 0, kind: input, shape index: {}]
  %s1 = inlined_call_operand.vmem [shape: bf16[28,14,128], index: 1, kind: output, shape index: {}]
  %s2 = sld [smem:[#allocation0]]
  $region37: #{net_forward.6} parent=0
    _
  %s4 = ssub.s32 1, %s2
  %s5 = scalar_select 0, %s4, %s2
  loop: start=0, step=1, limit=4
  $region2: #{net_forward.6} parent=0 // loop_pre_header
    _
  $region3: #{net_forward.6} parent=0 // loop_header
    %s7 = sphi 0, %s11
    %p8 = scmp.ge.s32.totalorder %s7, 4
    %s17 = sphi 0, %s19
    %s20 = sphi 0, %s17
    %s21 = sphi 0, %s20
    %s37 = sphi 0, %s21
    %s43 = sphi 0, %s45
    %s46 = sphi 0, %s43
    %s47 = sphi 0, %s46
    %s63 = sphi 0, %s47
  $region4: #{net_forward.6} parent=0 // loop_header_branch
    %10 = sbr.rel (%p8) target = $region8
  $region5: #{net_forward.6} parent=0 // loop_body
    %s12 = ssub.s32 %s7, 1
    %s13 = ssub.s32 %s7, 2
    %s14 = sadd.s32 %s7, 1
    %s15 = ssub.s32 %s7, %s14
    %p16 = scmp.eq.s32.totalorder %s15, 0
    %s18 = sadd.s32 %s17, 1
    %s19 = scalar_select %p16, %s17, %s18
    %p22 = pneg %p16
    %p23 = scmp.eq.s32.totalorder %s7, 1
    %p24 = por %p22, %p23
    %p25 = scmp.ne.s32.totalorder %s17, %s20
    %p26 = scmp.eq.s32.totalorder %s7, 0
    %p27 = por %p25, %p26
    %p28 = scmp.ne.s32.totalorder %s17, %s20
    %p29 = scmp.eq.s32.totalorder %s12, 1
    %p30 = por %p28, %p29
    %p31 = scmp.ne.s32.totalorder %s20, %s21
    %p32 = scmp.eq.s32.totalorder %s12, 0
    %p33 = por %p31, %p32
    %p34 = scmp.ne.s32.totalorder %s20, %s21
    %p35 = scmp.eq.s32.totalorder %s13, 1
    %p36 = por %p34, %p35
    %p38 = scmp.ne.s32.totalorder %s21, %s37
    %p39 = scmp.eq.s32.totalorder %s13, 0
    %p40 = por %p38, %p39
    %s41 = ssub.s32 %s7, %s14
    %p42 = scmp.eq.s32.totalorder %s41, 0
    %s44 = sadd.s32 %s43, 1
    %s45 = scalar_select %p42, %s43, %s44
    %p48 = pneg %p42
    %p49 = scmp.eq.s32.totalorder %s7, 1
    %p50 = por %p48, %p49
    %p51 = scmp.ne.s32.totalorder %s43, %s46
    %p52 = scmp.eq.s32.totalorder %s7, 0
    %p53 = por %p51, %p52
    %p54 = scmp.ne.s32.totalorder %s43, %s46
    %p55 = scmp.eq.s32.totalorder %s12, 1
    %p56 = por %p54, %p55
    %p57 = scmp.ne.s32.totalorder %s46, %s47
    %p58 = scmp.eq.s32.totalorder %s12, 0
    %p59 = por %p57, %p58
    %p60 = scmp.ne.s32.totalorder %s46, %s47
    %p61 = scmp.eq.s32.totalorder %s13, 1
    %p62 = por %p60, %p61
    %p64 = scmp.ne.s32.totalorder %s47, %s63
    %p65 = scmp.eq.s32.totalorder %s13, 0
    %p66 = por %p64, %p65
    %p67 = scmp.le.s32.totalorder 1, %s7
    %p68 = scmp.lt.s32.totalorder %s7, 3
    %p69 = pnand %p67, %p68
    %p70 = pneg %p69
    // Predicated region
    $region9: #{net_forward.6} parent=5 // pred_check
      _
    $region10: #{net_forward.6} parent=5 // pred_check_branch
      %72 = sbr.rel (%p69) target = $region12
    $region11: #{net_forward.6} parent=5 // pred_region
      %s73 = ssub.s32 %s7, 1
    $region12: #{net_forward.6} parent=5 // pred_fallthru
      _
    %p74 = scmp.lt.s32.totalorder %s7, 2
    // Predicated region
    $region13: #{net_forward.6} parent=5 // pred_check
      %p75 = pneg %p74
    $region14: #{net_forward.6} parent=5 // pred_check_branch
      %77 = sbr.rel (%p75) target = $region16
    $region15: #{net_forward.6} parent=5 // pred_region
      // Predicated region
      $region17: #{net_forward.6} parent=15 // pred_check
        %p78 = pneg %p27
      $region18: #{net_forward.6} parent=15 // pred_check_branch
        %80 = sbr.rel (%p78) target = $region20
      $region19: #{net_forward.6} parent=15 // pred_region
        %s81 = smul.u32 28, %s7
        %p82 = scmp.lt.s32.totalorder %s81, 55
        %s83 = scalar_select %p82, %s81, 55
        %s84 = smul.addr %s83, 4
        %s85 = smul.addr %s84, 4
        %s86 = scalar_lea.vmem %s0, %s85
        %s87 = smul.u32 28, %s7
      $region20: #{net_forward.6} parent=15 // pred_fallthru
        _
    $region16: #{net_forward.6} parent=5 // pred_fallthru
      _
    %p88 = scmp.le.s32.totalorder 1, %s7
    %p89 = scmp.lt.s32.totalorder %s7, 3
    %p90 = pnand %p88, %p89
    %p91 = pneg %p90
    // Predicated region
    $region21: #{net_forward.6} parent=5 // pred_check
      _
    $region22: #{net_forward.6} parent=5 // pred_check_branch
      %93 = sbr.rel (%p90) target = $region24
    $region23: #{net_forward.6} parent=5 // pred_region
      %s94 = ssub.s32 %s7, 1
      %s95 = smul.u32 28, %s12
      %p96 = scmp.lt.s32.totalorder %s95, 55
      %s97 = scalar_select %p96, %s95, 55
      %s98 = smul.addr %s97, 4
      %s99 = smul.addr %s98, 4
      %s100 = scalar_lea.vmem %s0, %s99
      %p101 = pneg %p33
      %p102 = pneg %p30
      %p103 = pneg %p59
      %p104 = pneg %p56
      %s105 = smul.u32 14, %s12
      %p106 = scmp.lt.s32.totalorder %s105, 27
      %s107 = scalar_select %p106, %s105, 27
      %s108 = smul.addr %s107, 2
      %s109 = smul.addr %s108, 4
      %s110 = scalar_lea.vmem %s1, %s109
      %s111 = smul.u32 28, %s12
      %p112 = scmp.lt.s32.totalorder %s111, 55
      %s113 = scalar_select %p112, %s111, 55
      %s114 = smul.addr %s113, 4
      %s115 = smul.addr %s114, 4
      %s116 = scalar_lea.vmem %s0, %s115
      %s117 = smul.u32 28, %s12
      %s118 = smul.u32 14, %s12
      %p119 = scmp.lt.s32.totalorder %s118, 27
      %s120 = scalar_select %p119, %s118, 27
      %s121 = smul.addr %s120, 2
      %s122 = smul.addr %s121, 4
      %s123 = scalar_lea.vmem %s1, %s122
      %s124 = smul.u32 14, %s12
      %v125 = vld [vmem:[%s116] sm:$0xff]
      %v126 = vld [vmem:[%s116 + $0x8] sm:$0x77]
      %v127 = vld [vmem:[%s116 + $0x10] sm:$0xff]
      %v128 = vld [vmem:[%s116 + $0x18] sm:$0x77]
      %v129 = vld [vmem:[%s116 + $0x20] sm:$0xff]
      %v130 = vld [vmem:[%s116 + $0x28] sm:$0x77]
      %v131 = vld [vmem:[%s116 + $0x30] sm:$0xff]
      %v132 = vld [vmem:[%s116 + $0x38] sm:$0x77]
      %v133 = vld [vmem:[%s116 + $0x40] sm:$0xff]
      %v134 = vld [vmem:[%s116 + $0x48] sm:$0x77]
      %v135 = vld [vmem:[%s116 + $0x50] sm:$0xff]
      %v136 = vld [vmem:[%s116 + $0x58] sm:$0x77]
      %v137 = vld [vmem:[%s116 + $0x60] sm:$0xff]
      %v138 = vld [vmem:[%s116 + $0x68] sm:$0x77]
      %v139 = vld [vmem:[%s116 + $0x70] sm:$0xff]
      %v140 = vld [vmem:[%s116 + $0x78] sm:$0x77]
      %v141 = vld [vmem:[%s116 + $0x80] sm:$0xff]
      %v142 = vld [vmem:[%s116 + $0x88] sm:$0x77]
      %v143 = vld [vmem:[%s116 + $0x90] sm:$0xff]
      %v144 = vld [vmem:[%s116 + $0x98] sm:$0x77]
      %v145 = vld [vmem:[%s116 + $0xa0] sm:$0xff]
      %v146 = vld [vmem:[%s116 + $0xa8] sm:$0x77]
      %v147 = vld [vmem:[%s116 + $0xb0] sm:$0xff]
      %v148 = vld [vmem:[%s116 + $0xb8] sm:$0x77]
      %v149 = vld [vmem:[%s116 + $0xc0] sm:$0xff]
      %v150 = vld [vmem:[%s116 + $0xc8] sm:$0x77]
      %v151 = vld [vmem:[%s116 + $0xd0] sm:$0xff]
      %v152 = vld [vmem:[%s116 + $0xd8] sm:$0x77]
      %v153 = vld [vmem:[%s116 + $0xe0] sm:$0xff]
      %v154 = vld [vmem:[%s116 + $0xe8] sm:$0x77]
      %v155 = vld [vmem:[%s116 + $0xf0] sm:$0xff]
      %v156 = vld [vmem:[%s116 + $0xf8] sm:$0x77]
      %v157 = vld [vmem:[%s116 + $0x100] sm:$0xff]
      %v158 = vld [vmem:[%s116 + $0x108] sm:$0x77]
      %v159 = vld [vmem:[%s116 + $0x110] sm:$0xff]
      %v160 = vld [vmem:[%s116 + $0x118] sm:$0x77]
      %v161 = vld [vmem:[%s116 + $0x120] sm:$0xff]
      %v162 = vld [vmem:[%s116 + $0x128] sm:$0x77]
      %v163 = vld [vmem:[%s116 + $0x130] sm:$0xff]
      %v164 = vld [vmem:[%s116 + $0x138] sm:$0x77]
      %v165 = vld [vmem:[%s116 + $0x140] sm:$0xff]
      %v166 = vld [vmem:[%s116 + $0x148] sm:$0x77]
      %v167 = vld [vmem:[%s116 + $0x150] sm:$0xff]
      %v168 = vld [vmem:[%s116 + $0x158] sm:$0x77]
      %v169 = vld [vmem:[%s116 + $0x160] sm:$0xff]
      %v170 = vld [vmem:[%s116 + $0x168] sm:$0x77]
      %v171 = vld [vmem:[%s116 + $0x170] sm:$0xff]
      %v172 = vld [vmem:[%s116 + $0x178] sm:$0x77]
      %v173 = vld [vmem:[%s116 + $0x180] sm:$0xff]
      %v174 = vld [vmem:[%s116 + $0x188] sm:$0x77]
      %v175 = vld [vmem:[%s116 + $0x190] sm:$0xff]
      %v176 = vld [vmem:[%s116 + $0x198] sm:$0x77]
      %v177 = vld [vmem:[%s116 + $0x1a0] sm:$0xff]
      %v178 = vld [vmem:[%s116 + $0x1a8] sm:$0x77]
      %v179 = vld [vmem:[%s116 + $0x1b0] sm:$0xff]
      %v180 = vld [vmem:[%s116 + $0x1b8] sm:$0x77]
      %v181 = vunpack.c.l.bf16 %v125
      %v182 = vunpack.c.l.bf16 %v126
      %v183 = vunpack.c.l.bf16 %v127
      %v184 = vunpack.c.l.bf16 %v128
      %v185 = vunpack.c.l.bf16 %v129
      %v186 = vunpack.c.l.bf16 %v130
      %v187 = vunpack.c.l.bf16 %v131
      %v188 = vunpack.c.l.bf16 %v132
      %v189 = vunpack.c.l.bf16 %v133
      %v190 = vunpack.c.l.bf16 %v134
      %v191 = vunpack.c.l.bf16 %v135
      %v192 = vunpack.c.l.bf16 %v136
      %v193 = vunpack.c.l.bf16 %v137
      %v194 = vunpack.c.l.bf16 %v138
      %v195 = vunpack.c.l.bf16 %v139
      %v196 = vunpack.c.l.bf16 %v140
      %v197 = vunpack.c.l.bf16 %v141
      %v198 = vunpack.c.l.bf16 %v142
      %v199 = vunpack.c.l.bf16 %v143
      %v200 = vunpack.c.l.bf16 %v144
      %v201 = vunpack.c.l.bf16 %v145
      %v202 = vunpack.c.l.bf16 %v146
      %v203 = vunpack.c.l.bf16 %v147
      %v204 = vunpack.c.l.bf16 %v148
      %v205 = vunpack.c.l.bf16 %v149
      %v206 = vunpack.c.l.bf16 %v150
      %v207 = vunpack.c.l.bf16 %v151
      %v208 = vunpack.c.l.bf16 %v152
      %v209 = vunpack.c.l.bf16 %v153
      %v210 = vunpack.c.l.bf16 %v154
      %v211 = vunpack.c.l.bf16 %v155
      %v212 = vunpack.c.l.bf16 %v156
      %v213 = vunpack.c.l.bf16 %v157
      %v214 = vunpack.c.l.bf16 %v158
      %v215 = vunpack.c.l.bf16 %v159
      %v216 = vunpack.c.l.bf16 %v160
      %v217 = vunpack.c.l.bf16 %v161
      %v218 = vunpack.c.l.bf16 %v162
      %v219 = vunpack.c.l.bf16 %v163
      %v220 = vunpack.c.l.bf16 %v164
      %v221 = vunpack.c.l.bf16 %v165
      %v222 = vunpack.c.l.bf16 %v166
      %v223 = vunpack.c.l.bf16 %v167
      %v224 = vunpack.c.l.bf16 %v168
      %v225 = vunpack.c.l.bf16 %v169
      %v226 = vunpack.c.l.bf16 %v170
      %v227 = vunpack.c.l.bf16 %v171
      %v228 = vunpack.c.l.bf16 %v172
      %v229 = vunpack.c.l.bf16 %v173
      %v230 = vunpack.c.l.bf16 %v174
      %v231 = vunpack.c.l.bf16 %v175
      %v232 = vunpack.c.l.bf16 %v176
      %v233 = vunpack.c.l.bf16 %v177
      %v234 = vunpack.c.l.bf16 %v178
      %v235 = vunpack.c.l.bf16 %v179
      %v236 = vunpack.c.l.bf16 %v180
      %v293 = vrot.slane %v125, 4
      %v294 = vrot.slane %v126, 4
      %v295 = vrot.slane %v127, 4
      %v296 = vrot.slane %v128, 4
      %v297 = vrot.slane %v129, 4
      %v298 = vrot.slane %v130, 4
      %v299 = vrot.slane %v131, 4
      %v300 = vrot.slane %v132, 4
      %v301 = vrot.slane %v133, 4
      %v302 = vrot.slane %v134, 4
      %v303 = vrot.slane %v135, 4
      %v304 = vrot.slane %v136, 4
      %v305 = vrot.slane %v137, 4
      %v306 = vrot.slane %v138, 4
      %v307 = vrot.slane %v139, 4
      %v308 = vrot.slane %v140, 4
      %v309 = vrot.slane %v141, 4
      %v310 = vrot.slane %v142, 4
      %v311 = vrot.slane %v143, 4
      %v312 = vrot.slane %v144, 4
      %v313 = vrot.slane %v145, 4
      %v314 = vrot.slane %v146, 4
      %v315 = vrot.slane %v147, 4
      %v316 = vrot.slane %v148, 4
      %v317 = vrot.slane %v149, 4
      %v318 = vrot.slane %v150, 4
      %v319 = vrot.slane %v151, 4
      %v320 = vrot.slane %v152, 4
      %v321 = vrot.slane %v153, 4
      %v322 = vrot.slane %v154, 4
      %v323 = vrot.slane %v155, 4
      %v324 = vrot.slane %v156, 4
      %v325 = vrot.slane %v157, 4
      %v326 = vrot.slane %v158, 4
      %v327 = vrot.slane %v159, 4
      %v328 = vrot.slane %v160, 4
      %v329 = vrot.slane %v161, 4
      %v330 = vrot.slane %v162, 4
      %v331 = vrot.slane %v163, 4
      %v332 = vrot.slane %v164, 4
      %v333 = vrot.slane %v165, 4
      %v334 = vrot.slane %v166, 4
      %v335 = vrot.slane %v167, 4
      %v336 = vrot.slane %v168, 4
      %v337 = vrot.slane %v169, 4
      %v338 = vrot.slane %v170, 4
      %v339 = vrot.slane %v171, 4
      %v340 = vrot.slane %v172, 4
      %v341 = vrot.slane %v173, 4
      %v342 = vrot.slane %v174, 4
      %v343 = vrot.slane %v175, 4
      %v344 = vrot.slane %v176, 4
      %v345 = vrot.slane %v177, 4
      %v346 = vrot.slane %v178, 4
      %v347 = vrot.slane %v179, 4
      %v348 = vrot.slane %v180, 4
      %v405 = vunpack.c.l.bf16 %v293
      %v406 = vunpack.c.l.bf16 %v294
      %v407 = vunpack.c.l.bf16 %v295
      %v408 = vunpack.c.l.bf16 %v296
      %v409 = vunpack.c.l.bf16 %v297
      %v410 = vunpack.c.l.bf16 %v298
      %v411 = vunpack.c.l.bf16 %v299
      %v412 = vunpack.c.l.bf16 %v300
      %v413 = vunpack.c.l.bf16 %v301
      %v414 = vunpack.c.l.bf16 %v302
      %v415 = vunpack.c.l.bf16 %v303
      %v416 = vunpack.c.l.bf16 %v304
      %v417 = vunpack.c.l.bf16 %v305
      %v418 = vunpack.c.l.bf16 %v306
      %v419 = vunpack.c.l.bf16 %v307
      %v420 = vunpack.c.l.bf16 %v308
      %v421 = vunpack.c.l.bf16 %v309
      %v422 = vunpack.c.l.bf16 %v310
      %v423 = vunpack.c.l.bf16 %v311
      %v424 = vunpack.c.l.bf16 %v312
      %v425 = vunpack.c.l.bf16 %v313
      %v426 = vunpack.c.l.bf16 %v314
      %v427 = vunpack.c.l.bf16 %v315
      %v428 = vunpack.c.l.bf16 %v316
      %v429 = vunpack.c.l.bf16 %v317
      %v430 = vunpack.c.l.bf16 %v318
      %v431 = vunpack.c.l.bf16 %v319
      %v432 = vunpack.c.l.bf16 %v320
      %v433 = vunpack.c.l.bf16 %v321
      %v434 = vunpack.c.l.bf16 %v322
      %v435 = vunpack.c.l.bf16 %v323
      %v436 = vunpack.c.l.bf16 %v324
      %v437 = vunpack.c.l.bf16 %v325
      %v438 = vunpack.c.l.bf16 %v326
      %v439 = vunpack.c.l.bf16 %v327
      %v440 = vunpack.c.l.bf16 %v328
      %v441 = vunpack.c.l.bf16 %v329
      %v442 = vunpack.c.l.bf16 %v330
      %v443 = vunpack.c.l.bf16 %v331
      %v444 = vunpack.c.l.bf16 %v332
      %v445 = vunpack.c.l.bf16 %v333
      %v446 = vunpack.c.l.bf16 %v334
      %v447 = vunpack.c.l.bf16 %v335
      %v448 = vunpack.c.l.bf16 %v336
      %v449 = vunpack.c.l.bf16 %v337
      %v450 = vunpack.c.l.bf16 %v338
      %v451 = vunpack.c.l.bf16 %v339
      %v452 = vunpack.c.l.bf16 %v340
      %v453 = vunpack.c.l.bf16 %v341
      %v454 = vunpack.c.l.bf16 %v342
      %v455 = vunpack.c.l.bf16 %v343
      %v456 = vunpack.c.l.bf16 %v344
      %v457 = vunpack.c.l.bf16 %v345
      %v458 = vunpack.c.l.bf16 %v346
      %v459 = vunpack.c.l.bf16 %v347
      %v460 = vunpack.c.l.bf16 %v348
      %v461 = vmax.f32 %v181, %v405
      %v462 = vmax.f32 %v182, %v406
      %v463 = vmax.f32 %v183, %v407
      %v464 = vmax.f32 %v184, %v408
      %v465 = vmax.f32 %v185, %v409
      %v466 = vmax.f32 %v186, %v410
      %v467 = vmax.f32 %v187, %v411
      %v468 = vmax.f32 %v188, %v412
      %v469 = vmax.f32 %v189, %v413
      %v470 = vmax.f32 %v190, %v414
      %v471 = vmax.f32 %v191, %v415
      %v472 = vmax.f32 %v192, %v416
      %v473 = vmax.f32 %v193, %v417
      %v474 = vmax.f32 %v194, %v418
      %v475 = vmax.f32 %v195, %v419
      %v476 = vmax.f32 %v196, %v420
      %v477 = vmax.f32 %v197, %v421
      %v478 = vmax.f32 %v198, %v422
      %v479 = vmax.f32 %v199, %v423
      %v480 = vmax.f32 %v200, %v424
      %v481 = vmax.f32 %v201, %v425
      %v482 = vmax.f32 %v202, %v426
      %v483 = vmax.f32 %v203, %v427
      %v484 = vmax.f32 %v204, %v428
      %v485 = vmax.f32 %v205, %v429
      %v486 = vmax.f32 %v206, %v430
      %v487 = vmax.f32 %v207, %v431
      %v488 = vmax.f32 %v208, %v432
      %v489 = vmax.f32 %v209, %v433
      %v490 = vmax.f32 %v210, %v434
      %v491 = vmax.f32 %v211, %v435
      %v492 = vmax.f32 %v212, %v436
      %v493 = vmax.f32 %v213, %v437
      %v494 = vmax.f32 %v214, %v438
      %v495 = vmax.f32 %v215, %v439
      %v496 = vmax.f32 %v216, %v440
      %v497 = vmax.f32 %v217, %v441
      %v498 = vmax.f32 %v218, %v442
      %v499 = vmax.f32 %v219, %v443
      %v500 = vmax.f32 %v220, %v444
      %v501 = vmax.f32 %v221, %v445
      %v502 = vmax.f32 %v222, %v446
      %v503 = vmax.f32 %v223, %v447
      %v504 = vmax.f32 %v224, %v448
      %v505 = vmax.f32 %v225, %v449
      %v506 = vmax.f32 %v226, %v450
      %v507 = vmax.f32 %v227, %v451
      %v508 = vmax.f32 %v228, %v452
      %v509 = vmax.f32 %v229, %v453
      %v510 = vmax.f32 %v230, %v454
      %v511 = vmax.f32 %v231, %v455
      %v512 = vmax.f32 %v232, %v456
      %v513 = vmax.f32 %v233, %v457
      %v514 = vmax.f32 %v234, %v458
      %v515 = vmax.f32 %v235, %v459
      %v516 = vmax.f32 %v236, %v460
      %v517 = vpack.c.bf16 %v461, %v461
      %v518 = vpack.c.bf16 %v462, %v462
      %v519 = vpack.c.bf16 %v463, %v463
      %v520 = vpack.c.bf16 %v464, %v464
      %v521 = vpack.c.bf16 %v465, %v465
      %v522 = vpack.c.bf16 %v466, %v466
      %v523 = vpack.c.bf16 %v467, %v467
      %v524 = vpack.c.bf16 %v468, %v468
      %v525 = vpack.c.bf16 %v469, %v469
      %v526 = vpack.c.bf16 %v470, %v470
      %v527 = vpack.c.bf16 %v471, %v471
      %v528 = vpack.c.bf16 %v472, %v472
      %v529 = vpack.c.bf16 %v473, %v473
      %v530 = vpack.c.bf16 %v474, %v474
      %v531 = vpack.c.bf16 %v475, %v475
      %v532 = vpack.c.bf16 %v476, %v476
      %v533 = vpack.c.bf16 %v477, %v477
      %v534 = vpack.c.bf16 %v478, %v478
      %v535 = vpack.c.bf16 %v479, %v479
      %v536 = vpack.c.bf16 %v480, %v480
      %v537 = vpack.c.bf16 %v481, %v481
      %v538 = vpack.c.bf16 %v482, %v482
      %v539 = vpack.c.bf16 %v483, %v483
      %v540 = vpack.c.bf16 %v484, %v484
      %v541 = vpack.c.bf16 %v485, %v485
      %v542 = vpack.c.bf16 %v486, %v486
      %v543 = vpack.c.bf16 %v487, %v487
      %v544 = vpack.c.bf16 %v488, %v488
      %v545 = vpack.c.bf16 %v489, %v489
      %v546 = vpack.c.bf16 %v490, %v490
      %v547 = vpack.c.bf16 %v491, %v491
      %v548 = vpack.c.bf16 %v492, %v492
      %v549 = vpack.c.bf16 %v493, %v493
      %v550 = vpack.c.bf16 %v494, %v494
      %v551 = vpack.c.bf16 %v495, %v495
      %v552 = vpack.c.bf16 %v496, %v496
      %v553 = vpack.c.bf16 %v497, %v497
      %v554 = vpack.c.bf16 %v498, %v498
      %v555 = vpack.c.bf16 %v499, %v499
      %v556 = vpack.c.bf16 %v500, %v500
      %v557 = vpack.c.bf16 %v501, %v501
      %v558 = vpack.c.bf16 %v502, %v502
      %v559 = vpack.c.bf16 %v503, %v503
      %v560 = vpack.c.bf16 %v504, %v504
      %v561 = vpack.c.bf16 %v505, %v505
      %v562 = vpack.c.bf16 %v506, %v506
      %v563 = vpack.c.bf16 %v507, %v507
      %v564 = vpack.c.bf16 %v508, %v508
      %v565 = vpack.c.bf16 %v509, %v509
      %v566 = vpack.c.bf16 %v510, %v510
      %v567 = vpack.c.bf16 %v511, %v511
      %v568 = vpack.c.bf16 %v512, %v512
      %v569 = vpack.c.bf16 %v513, %v513
      %v570 = vpack.c.bf16 %v514, %v514
      %v571 = vpack.c.bf16 %v515, %v515
      %v572 = vpack.c.bf16 %v516, %v516
      %v573 = vunpack.c.l.bf16 %v517
      %v574 = vunpack.c.l.bf16 %v518
      %v575 = vunpack.c.l.bf16 %v521
      %v576 = vunpack.c.l.bf16 %v522
      %v577 = vunpack.c.l.bf16 %v525
      %v578 = vunpack.c.l.bf16 %v526
      %v579 = vunpack.c.l.bf16 %v529
      %v580 = vunpack.c.l.bf16 %v530
      %v581 = vunpack.c.l.bf16 %v533
      %v582 = vunpack.c.l.bf16 %v534
      %v583 = vunpack.c.l.bf16 %v537
      %v584 = vunpack.c.l.bf16 %v538
      %v585 = vunpack.c.l.bf16 %v541
      %v586 = vunpack.c.l.bf16 %v542
      %v587 = vunpack.c.l.bf16 %v545
      %v588 = vunpack.c.l.bf16 %v546
      %v589 = vunpack.c.l.bf16 %v549
      %v590 = vunpack.c.l.bf16 %v550
      %v591 = vunpack.c.l.bf16 %v553
      %v592 = vunpack.c.l.bf16 %v554
      %v593 = vunpack.c.l.bf16 %v557
      %v594 = vunpack.c.l.bf16 %v558
      %v595 = vunpack.c.l.bf16 %v561
      %v596 = vunpack.c.l.bf16 %v562
      %v597 = vunpack.c.l.bf16 %v565
      %v598 = vunpack.c.l.bf16 %v566
      %v599 = vunpack.c.l.bf16 %v569
      %v600 = vunpack.c.l.bf16 %v570
      %v601 = vunpack.c.l.bf16 %v519
      %v602 = vunpack.c.l.bf16 %v520
      %v603 = vunpack.c.l.bf16 %v523
      %v604 = vunpack.c.l.bf16 %v524
      %v605 = vunpack.c.l.bf16 %v527
      %v606 = vunpack.c.l.bf16 %v528
      %v607 = vunpack.c.l.bf16 %v531
      %v608 = vunpack.c.l.bf16 %v532
      %v609 = vunpack.c.l.bf16 %v535
      %v610 = vunpack.c.l.bf16 %v536
      %v611 = vunpack.c.l.bf16 %v539
      %v612 = vunpack.c.l.bf16 %v540
      %v613 = vunpack.c.l.bf16 %v543
      %v614 = vunpack.c.l.bf16 %v544
      %v615 = vunpack.c.l.bf16 %v547
      %v616 = vunpack.c.l.bf16 %v548
      %v617 = vunpack.c.l.bf16 %v551
      %v618 = vunpack.c.l.bf16 %v552
      %v619 = vunpack.c.l.bf16 %v555
      %v620 = vunpack.c.l.bf16 %v556
      %v621 = vunpack.c.l.bf16 %v559
      %v622 = vunpack.c.l.bf16 %v560
      %v623 = vunpack.c.l.bf16 %v563
      %v624 = vunpack.c.l.bf16 %v564
      %v625 = vunpack.c.l.bf16 %v567
      %v626 = vunpack.c.l.bf16 %v568
      %v627 = vunpack.c.l.bf16 %v571
      %v628 = vunpack.c.l.bf16 %v572
      %v629 = vmax.f32 %v573, %v601
      %v630 = vmax.f32 %v574, %v602
      %v631 = vmax.f32 %v575, %v603
      %v632 = vmax.f32 %v576, %v604
      %v633 = vmax.f32 %v577, %v605
      %v634 = vmax.f32 %v578, %v606
      %v635 = vmax.f32 %v579, %v607
      %v636 = vmax.f32 %v580, %v608
      %v637 = vmax.f32 %v581, %v609
      %v638 = vmax.f32 %v582, %v610
      %v639 = vmax.f32 %v583, %v611
      %v640 = vmax.f32 %v584, %v612
      %v641 = vmax.f32 %v585, %v613
      %v642 = vmax.f32 %v586, %v614
      %v643 = vmax.f32 %v587, %v615
      %v644 = vmax.f32 %v588, %v616
      %v645 = vmax.f32 %v589, %v617
      %v646 = vmax.f32 %v590, %v618
      %v647 = vmax.f32 %v591, %v619
      %v648 = vmax.f32 %v592, %v620
      %v649 = vmax.f32 %v593, %v621
      %v650 = vmax.f32 %v594, %v622
      %v651 = vmax.f32 %v595, %v623
      %v652 = vmax.f32 %v596, %v624
      %v653 = vmax.f32 %v597, %v625
      %v654 = vmax.f32 %v598, %v626
      %v655 = vmax.f32 %v599, %v627
      %v656 = vmax.f32 %v600, %v628
      %v657 = vpack.c.bf16 %v629, %v629
      %v658 = vpack.c.bf16 %v630, %v630
      %v659 = vpack.c.bf16 %v631, %v631
      %v660 = vpack.c.bf16 %v632, %v632
      %v661 = vpack.c.bf16 %v633, %v633
      %v662 = vpack.c.bf16 %v634, %v634
      %v663 = vpack.c.bf16 %v635, %v635
      %v664 = vpack.c.bf16 %v636, %v636
      %v665 = vpack.c.bf16 %v637, %v637
      %v666 = vpack.c.bf16 %v638, %v638
      %v667 = vpack.c.bf16 %v639, %v639
      %v668 = vpack.c.bf16 %v640, %v640
      %v669 = vpack.c.bf16 %v641, %v641
      %v670 = vpack.c.bf16 %v642, %v642
      %v671 = vpack.c.bf16 %v643, %v643
      %v672 = vpack.c.bf16 %v644, %v644
      %v673 = vpack.c.bf16 %v645, %v645
      %v674 = vpack.c.bf16 %v646, %v646
      %v675 = vpack.c.bf16 %v647, %v647
      %v676 = vpack.c.bf16 %v648, %v648
      %v677 = vpack.c.bf16 %v649, %v649
      %v678 = vpack.c.bf16 %v650, %v650
      %v679 = vpack.c.bf16 %v651, %v651
      %v680 = vpack.c.bf16 %v652, %v652
      %v681 = vpack.c.bf16 %v653, %v653
      %v682 = vpack.c.bf16 %v654, %v654
      %v683 = vpack.c.bf16 %v655, %v655
      %v684 = vpack.c.bf16 %v656, %v656
      %685 = vst [vmem:[%s123] sm:$0xf] %v657
      %686 = vst [vmem:[%s123 + $0x4] sm:$0x7] %v658
      %687 = vst [vmem:[%s123 + $0x8] sm:$0xf] %v659
      %688 = vst [vmem:[%s123 + $0xc] sm:$0x7] %v660
      %689 = vst [vmem:[%s123 + $0x10] sm:$0xf] %v661
      %690 = vst [vmem:[%s123 + $0x14] sm:$0x7] %v662
      %691 = vst [vmem:[%s123 + $0x18] sm:$0xf] %v663
      %692 = vst [vmem:[%s123 + $0x1c] sm:$0x7] %v664
      %693 = vst [vmem:[%s123 + $0x20] sm:$0xf] %v665
      %694 = vst [vmem:[%s123 + $0x24] sm:$0x7] %v666
      %695 = vst [vmem:[%s123 + $0x28] sm:$0xf] %v667
      %696 = vst [vmem:[%s123 + $0x2c] sm:$0x7] %v668
      %697 = vst [vmem:[%s123 + $0x30] sm:$0xf] %v669
      %698 = vst [vmem:[%s123 + $0x34] sm:$0x7] %v670
      %699 = vst [vmem:[%s123 + $0x38] sm:$0xf] %v671
      %700 = vst [vmem:[%s123 + $0x3c] sm:$0x7] %v672
      %701 = vst [vmem:[%s123 + $0x40] sm:$0xf] %v673
      %702 = vst [vmem:[%s123 + $0x44] sm:$0x7] %v674
      %703 = vst [vmem:[%s123 + $0x48] sm:$0xf] %v675
      %704 = vst [vmem:[%s123 + $0x4c] sm:$0x7] %v676
      %705 = vst [vmem:[%s123 + $0x50] sm:$0xf] %v677
      %706 = vst [vmem:[%s123 + $0x54] sm:$0x7] %v678
      %707 = vst [vmem:[%s123 + $0x58] sm:$0xf] %v679
      %708 = vst [vmem:[%s123 + $0x5c] sm:$0x7] %v680
      %709 = vst [vmem:[%s123 + $0x60] sm:$0xf] %v681
      %710 = vst [vmem:[%s123 + $0x64] sm:$0x7] %v682
      %711 = vst [vmem:[%s123 + $0x68] sm:$0xf] %v683
      %712 = vst [vmem:[%s123 + $0x6c] sm:$0x7] %v684
      %s713 = smul.u32 14, %s12
      %p714 = scmp.lt.s32.totalorder %s713, 27
      %s715 = scalar_select %p714, %s713, 27
      %s716 = smul.addr %s715, 2
      %s717 = smul.addr %s716, 4
      %s718 = scalar_lea.vmem %s1, %s717
      // Predicated region
      $region25: #{net_forward.6} parent=23 // pred_check
        %p719 = pneg %p56
      $region26: #{net_forward.6} parent=23 // pred_check_branch
        %721 = sbr.rel (%p719) target = $region28
      $region27: #{net_forward.6} parent=23 // pred_region
        %s722 = smul.u32 14, %s12
      $region28: #{net_forward.6} parent=23 // pred_fallthru
        _
    $region24: #{net_forward.6} parent=5 // pred_fallthru
      _
    %p723 = scmp.le.s32.totalorder 2, %s7
    // Predicated region
    $region29: #{net_forward.6} parent=5 // pred_check
      %p724 = pneg %p723
    $region30: #{net_forward.6} parent=5 // pred_check_branch
      %726 = sbr.rel (%p724) target = $region32
    $region31: #{net_forward.6} parent=5 // pred_region
      %s727 = ssub.s32 %s7, 2
      // Predicated region
      $region33: #{net_forward.6} parent=31 // pred_check
        %p728 = pneg %p62
      $region34: #{net_forward.6} parent=31 // pred_check_branch
        %730 = sbr.rel (%p728) target = $region36
      $region35: #{net_forward.6} parent=31 // pred_region
        %s731 = smul.u32 14, %s13
        %p732 = scmp.lt.s32.totalorder %s731, 27
        %s733 = scalar_select %p732, %s731, 27
        %s734 = smul.addr %s733, 2
        %s735 = smul.addr %s734, 4
        %s736 = scalar_lea.vmem %s1, %s735
      $region36: #{net_forward.6} parent=31 // pred_fallthru
        _
    $region32: #{net_forward.6} parent=5 // pred_fallthru
      _
  $region6: #{net_forward.6} parent=0 // loop_footer
    %s11 = sadd.s32 1, %s7
  $region7: #{net_forward.6} parent=0 // loop_footer_branch
    %6 = sbr.rel target = $region3
  $region8: #{net_forward.6} parent=0 // loop_exit
    _

// kernel: net_forward.7
$region0: #{net_forward.7}
  #allocation0 [shape = 'u32[]', space=smem, size = 0x4, offset = 0x4, fixed_abs, tag = 'smem constant byte address 0x4 - core index']
  #allocation1 [shape = 'u32[72,128]{1,0:T(1,128)}', space=vmem, size = 0x9000, scoped, tag = 'internal scratch']
  %s0 = inlined_call_operand.vmem [shape: bf16[256,256], index: 0, kind: input, shape index: {}]
  %s1 = inlined_call_operand.vmem [shape: bf16[256,128], index: 1, kind: input, shape index: {}]
  %s2 = inlined_call_operand.vmem [shape: f32[1,128], index: 2, kind: input, shape index: {}]
  %s3 = inlined_call_operand.vmem [shape: bf16[256,128], index: 3, kind: output, shape index: {}]
  %s4 = sld [smem:[#allocation0]]
  $region22: #{net_forward.7} parent=0
    _
  %s6 = ssub.s32 1, %s4
  %s7 = scalar_select 0, %s6, %s4
  // Predicated region
  $region2: #{net_forward.7} parent=0 // pred_check
    _
  $region3: #{net_forward.7} parent=0 // pred_check_branch
    %9 = sbr.rel (0) target = $region5
  $region4: #{net_forward.7} parent=0 // pred_region
    _
  $region5: #{net_forward.7} parent=0 // pred_fallthru
    _
  // Predicated region
  $region6: #{net_forward.7} parent=0 // pred_check
    _
  $region7: #{net_forward.7} parent=0 // pred_check_branch
    %11 = sbr.rel (0) target = $region9
  $region8: #{net_forward.7} parent=0 // pred_region
    _
  $region9: #{net_forward.7} parent=0 // pred_fallthru
    _
  // Predicated region
  $region10: #{net_forward.7} parent=0 // pred_check
    _
  $region11: #{net_forward.7} parent=0 // pred_check_branch
    %13 = sbr.rel (0) target = $region13
  $region12: #{net_forward.7} parent=0 // pred_region
    _
  $region13: #{net_forward.7} parent=0 // pred_fallthru
    _
  %v14 = vld [vmem:[%s0] sm:$0xff]
  %v15 = vld [vmem:[%s0 + $0x8] sm:$0xff]
  %v16 = vld [vmem:[%s0 + $0x10] sm:$0xff]
  %v17 = vld [vmem:[%s0 + $0x18] sm:$0xff]
  %v18 = vld [vmem:[%s0 + $0x20] sm:$0xff]
  %v19 = vld [vmem:[%s0 + $0x28] sm:$0xff]
  %v20 = vld [vmem:[%s0 + $0x30] sm:$0xff]
  %v21 = vld [vmem:[%s0 + $0x38] sm:$0xff]
  %v22 = vld [vmem:[%s0 + $0x40] sm:$0xff]
  %v23 = vld [vmem:[%s0 + $0x48] sm:$0xff]
  %v24 = vld [vmem:[%s0 + $0x50] sm:$0xff]
  %v25 = vld [vmem:[%s0 + $0x58] sm:$0xff]
  %v26 = vld [vmem:[%s0 + $0x60] sm:$0xff]
  %v27 = vld [vmem:[%s0 + $0x68] sm:$0xff]
  %v28 = vld [vmem:[%s0 + $0x70] sm:$0xff]
  %v29 = vld [vmem:[%s0 + $0x78] sm:$0xff]
  %v30 = vld [vmem:[%s0 + $0x80] sm:$0xff]
  %v31 = vld [vmem:[%s0 + $0x88] sm:$0xff]
  %v32 = vld [vmem:[%s0 + $0x90] sm:$0xff]
  %v33 = vld [vmem:[%s0 + $0x98] sm:$0xff]
  %v34 = vld [vmem:[%s0 + $0xa0] sm:$0xff]
  %v35 = vld [vmem:[%s0 + $0xa8] sm:$0xff]
  %v36 = vld [vmem:[%s0 + $0xb0] sm:$0xff]
  %v37 = vld [vmem:[%s0 + $0xb8] sm:$0xff]
  %v38 = vld [vmem:[%s0 + $0xc0] sm:$0xff]
  %v39 = vld [vmem:[%s0 + $0xc8] sm:$0xff]
  %v40 = vld [vmem:[%s0 + $0xd0] sm:$0xff]
  %v41 = vld [vmem:[%s0 + $0xd8] sm:$0xff]
  %v42 = vld [vmem:[%s0 + $0xe0] sm:$0xff]
  %v43 = vld [vmem:[%s0 + $0xe8] sm:$0xff]
  %v44 = vld [vmem:[%s0 + $0xf0] sm:$0xff]
  %v45 = vld [vmem:[%s0 + $0xf8] sm:$0xff]
  %v46 = vld [vmem:[%s1] sm:$0xf]
  %v47 = vld [vmem:[%s1 + $0x4] sm:$0xf]
  %v48 = vld [vmem:[%s1 + $0x8] sm:$0xf]
  %v49 = vld [vmem:[%s1 + $0xc] sm:$0xf]
  %v50 = vld [vmem:[%s1 + $0x10] sm:$0xf]
  %v51 = vld [vmem:[%s1 + $0x14] sm:$0xf]
  %v52 = vld [vmem:[%s1 + $0x18] sm:$0xf]
  %v53 = vld [vmem:[%s1 + $0x1c] sm:$0xf]
  %v54 = vld [vmem:[%s1 + $0x20] sm:$0xf]
  %v55 = vld [vmem:[%s1 + $0x24] sm:$0xf]
  %v56 = vld [vmem:[%s1 + $0x28] sm:$0xf]
  %v57 = vld [vmem:[%s1 + $0x2c] sm:$0xf]
  %v58 = vld [vmem:[%s1 + $0x30] sm:$0xf]
  %v59 = vld [vmem:[%s1 + $0x34] sm:$0xf]
  %v60 = vld [vmem:[%s1 + $0x38] sm:$0xf]
  %v61 = vld [vmem:[%s1 + $0x3c] sm:$0xf]
  %v62 = vld [vmem:[%s1 + $0x40] sm:$0xf]
  %v63 = vld [vmem:[%s1 + $0x44] sm:$0xf]
  %v64 = vld [vmem:[%s1 + $0x48] sm:$0xf]
  %v65 = vld [vmem:[%s1 + $0x4c] sm:$0xf]
  %v66 = vld [vmem:[%s1 + $0x50] sm:$0xf]
  %v67 = vld [vmem:[%s1 + $0x54] sm:$0xf]
  %v68 = vld [vmem:[%s1 + $0x58] sm:$0xf]
  %v69 = vld [vmem:[%s1 + $0x5c] sm:$0xf]
  %v70 = vld [vmem:[%s1 + $0x60] sm:$0xf]
  %v71 = vld [vmem:[%s1 + $0x64] sm:$0xf]
  %v72 = vld [vmem:[%s1 + $0x68] sm:$0xf]
  %v73 = vld [vmem:[%s1 + $0x6c] sm:$0xf]
  %v74 = vld [vmem:[%s1 + $0x70] sm:$0xf]
  %v75 = vld [vmem:[%s1 + $0x74] sm:$0xf]
  %v76 = vld [vmem:[%s1 + $0x78] sm:$0xf]
  %v77 = vld [vmem:[%s1 + $0x7c] sm:$0xf]
  %v78 = vld [vmem:[%s2] sm:$0x1]
  %v80 = vperm.slane %v78, 0
  %v114 = vunpack.c.l.b16 %v14
  %v115 = vunpack.c.h.b16 %v14
  %v116 = vunpack.c.l.b16 %v15
  %v117 = vunpack.c.h.b16 %v15
  %v118 = vunpack.c.l.b16 %v16
  %v119 = vunpack.c.h.b16 %v16
  %v120 = vunpack.c.l.b16 %v17
  %v121 = vunpack.c.h.b16 %v17
  %v122 = vunpack.c.l.b16 %v18
  %v123 = vunpack.c.h.b16 %v18
  %v124 = vunpack.c.l.b16 %v19
  %v125 = vunpack.c.h.b16 %v19
  %v126 = vunpack.c.l.b16 %v20
  %v127 = vunpack.c.h.b16 %v20
  %v128 = vunpack.c.l.b16 %v21
  %v129 = vunpack.c.h.b16 %v21
  %v130 = vunpack.c.l.b16 %v22
  %v131 = vunpack.c.h.b16 %v22
  %v132 = vunpack.c.l.b16 %v23
  %v133 = vunpack.c.h.b16 %v23
  %v134 = vunpack.c.l.b16 %v24
  %v135 = vunpack.c.h.b16 %v24
  %v136 = vunpack.c.l.b16 %v25
  %v137 = vunpack.c.h.b16 %v25
  %v138 = vunpack.c.l.b16 %v26
  %v139 = vunpack.c.h.b16 %v26
  %v140 = vunpack.c.l.b16 %v27
  %v141 = vunpack.c.h.b16 %v27
  %v142 = vunpack.c.l.b16 %v28
  %v143 = vunpack.c.h.b16 %v28
  %v144 = vunpack.c.l.b16 %v29
  %v145 = vunpack.c.h.b16 %v29
  %v146 = vunpack.c.l.b16 %v30
  %v147 = vunpack.c.h.b16 %v30
  %v148 = vunpack.c.l.b16 %v31
  %v149 = vunpack.c.h.b16 %v31
  %v150 = vunpack.c.l.b16 %v32
  %v151 = vunpack.c.h.b16 %v32
  %v152 = vunpack.c.l.b16 %v33
  %v153 = vunpack.c.h.b16 %v33
  %v154 = vunpack.c.l.b16 %v34
  %v155 = vunpack.c.h.b16 %v34
  %v156 = vunpack.c.l.b16 %v35
  %v157 = vunpack.c.h.b16 %v35
  %v158 = vunpack.c.l.b16 %v36
  %v159 = vunpack.c.h.b16 %v36
  %v160 = vunpack.c.l.b16 %v37
  %v161 = vunpack.c.h.b16 %v37
  %v162 = vunpack.c.l.b16 %v38
  %v163 = vunpack.c.h.b16 %v38
  %v164 = vunpack.c.l.b16 %v39
  %v165 = vunpack.c.h.b16 %v39
  %v166 = vunpack.c.l.b16 %v40
  %v167 = vunpack.c.h.b16 %v40
  %v168 = vunpack.c.l.b16 %v41
  %v169 = vunpack.c.h.b16 %v41
  %v170 = vunpack.c.l.b16 %v42
  %v171 = vunpack.c.h.b16 %v42
  %v172 = vunpack.c.l.b16 %v43
  %v173 = vunpack.c.h.b16 %v43
  %v174 = vunpack.c.l.b16 %v44
  %v175 = vunpack.c.h.b16 %v44
  %v176 = vunpack.c.l.b16 %v45
  %v177 = vunpack.c.h.b16 %v45
  %v178 = vpack.c.b16 %v116, %v114
  %v179 = vpack.c.b16 %v117, %v115
  %v180 = vpack.c.b16 %v120, %v118
  %v181 = vpack.c.b16 %v121, %v119
  %v182 = vpack.c.b16 %v124, %v122
  %v183 = vpack.c.b16 %v125, %v123
  %v184 = vpack.c.b16 %v128, %v126
  %v185 = vpack.c.b16 %v129, %v127
  %v186 = vpack.c.b16 %v132, %v130
  %v187 = vpack.c.b16 %v133, %v131
  %v188 = vpack.c.b16 %v136, %v134
  %v189 = vpack.c.b16 %v137, %v135
  %v190 = vpack.c.b16 %v140, %v138
  %v191 = vpack.c.b16 %v141, %v139
  %v192 = vpack.c.b16 %v144, %v142
  %v193 = vpack.c.b16 %v145, %v143
  %v194 = vpack.c.b16 %v148, %v146
  %v195 = vpack.c.b16 %v149, %v147
  %v196 = vpack.c.b16 %v152, %v150
  %v197 = vpack.c.b16 %v153, %v151
  %v198 = vpack.c.b16 %v156, %v154
  %v199 = vpack.c.b16 %v157, %v155
  %v200 = vpack.c.b16 %v160, %v158
  %v201 = vpack.c.b16 %v161, %v159
  %v202 = vpack.c.b16 %v164, %v162
  %v203 = vpack.c.b16 %v165, %v163
  %v204 = vpack.c.b16 %v168, %v166
  %v205 = vpack.c.b16 %v169, %v167
  %v206 = vpack.c.b16 %v172, %v170
  %v207 = vpack.c.b16 %v173, %v171
  %v208 = vpack.c.b16 %v176, %v174
  %v209 = vpack.c.b16 %v177, %v175
  %v274 = vunpack.c.l.b16 %v46
  %v275 = vunpack.c.l.b16 %v47
  %v276 = vunpack.c.l.b16 %v48
  %v277 = vunpack.c.l.b16 %v49
  %v278 = vunpack.c.l.b16 %v50
  %v279 = vunpack.c.l.b16 %v51
  %v280 = vunpack.c.l.b16 %v52
  %v281 = vunpack.c.l.b16 %v53
  %v282 = vunpack.c.l.b16 %v54
  %v283 = vunpack.c.l.b16 %v55
  %v284 = vunpack.c.l.b16 %v56
  %v285 = vunpack.c.l.b16 %v57
  %v286 = vunpack.c.l.b16 %v58
  %v287 = vunpack.c.l.b16 %v59
  %v288 = vunpack.c.l.b16 %v60
  %v289 = vunpack.c.l.b16 %v61
  %v290 = vunpack.c.l.b16 %v62
  %v291 = vunpack.c.l.b16 %v63
  %v292 = vunpack.c.l.b16 %v64
  %v293 = vunpack.c.l.b16 %v65
  %v294 = vunpack.c.l.b16 %v66
  %v295 = vunpack.c.l.b16 %v67
  %v296 = vunpack.c.l.b16 %v68
  %v297 = vunpack.c.l.b16 %v69
  %v298 = vunpack.c.l.b16 %v70
  %v299 = vunpack.c.l.b16 %v71
  %v300 = vunpack.c.l.b16 %v72
  %v301 = vunpack.c.l.b16 %v73
  %v302 = vunpack.c.l.b16 %v74
  %v303 = vunpack.c.l.b16 %v75
  %v304 = vunpack.c.l.b16 %v76
  %v305 = vunpack.c.l.b16 %v77
  %v306 = vpack.c.b16 %v275, %v274
  %v307 = vpack.c.b16 %v277, %v276
  %v308 = vpack.c.b16 %v279, %v278
  %v309 = vpack.c.b16 %v281, %v280
  %v310 = vpack.c.b16 %v283, %v282
  %v311 = vpack.c.b16 %v285, %v284
  %v312 = vpack.c.b16 %v287, %v286
  %v313 = vpack.c.b16 %v289, %v288
  %v314 = vpack.c.b16 %v291, %v290
  %v315 = vpack.c.b16 %v293, %v292
  %v316 = vpack.c.b16 %v295, %v294
  %v317 = vpack.c.b16 %v297, %v296
  %v318 = vpack.c.b16 %v299, %v298
  %v319 = vpack.c.b16 %v301, %v300
  %v320 = vpack.c.b16 %v303, %v302
  %v321 = vpack.c.b16 %v305, %v304
  %338 = vmatpush.bf16.msra.mxu0 %v313
  %339 = vmatpush.bf16.msra.mxu0 %v312
  %340 = vmatpush.bf16.msra.mxu0 %v311
  %341 = vmatpush.bf16.msra.mxu0 %v310
  %342 = vmatpush.bf16.msra.mxu0 %v309
  %343 = vmatpush.bf16.msra.mxu0 %v308
  %344 = vmatpush.bf16.msra.mxu0 %v307
  %345 = vmatpush.bf16.msra.mxu0 %v306
  %346 = vmatmul.bf16.gmra.mxu0 %v178
  %v347 = vpop.f32.mrf.mxu0
  %v348 = vadd.f32 %v80, %v347
  %v349 = vpop.f32.mrf.mxu0
  %v350 = vadd.f32 %v80, %v349
  %351 = vmatmul.bf16.gmra.mxu0 %v180
  %v352 = vpop.f32.mrf.mxu0
  %v353 = vadd.f32 %v80, %v352
  %v354 = vpop.f32.mrf.mxu0
  %v355 = vadd.f32 %v80, %v354
  %356 = vmatmul.bf16.gmra.mxu0 %v182
  %v357 = vpop.f32.mrf.mxu0
  %v358 = vadd.f32 %v80, %v357
  %v359 = vpop.f32.mrf.mxu0
  %v360 = vadd.f32 %v80, %v359
  %361 = vmatmul.bf16.gmra.mxu0 %v184
  %v362 = vpop.f32.mrf.mxu0
  %v363 = vadd.f32 %v80, %v362
  %v364 = vpop.f32.mrf.mxu0
  %v365 = vadd.f32 %v80, %v364
  %366 = vmatmul.bf16.gmra.mxu0 %v186
  %v367 = vpop.f32.mrf.mxu0
  %v368 = vadd.f32 %v80, %v367
  %v369 = vpop.f32.mrf.mxu0
  %v370 = vadd.f32 %v80, %v369
  %371 = vmatmul.bf16.gmra.mxu0 %v188
  %v372 = vpop.f32.mrf.mxu0
  %v373 = vadd.f32 %v80, %v372
  %v374 = vpop.f32.mrf.mxu0
  %v375 = vadd.f32 %v80, %v374
  %376 = vmatmul.bf16.gmra.mxu0 %v190
  %v377 = vpop.f32.mrf.mxu0
  %v378 = vadd.f32 %v80, %v377
  %v379 = vpop.f32.mrf.mxu0
  %v380 = vadd.f32 %v80, %v379
  %381 = vmatmul.bf16.gmra.mxu0 %v192
  %v382 = vpop.f32.mrf.mxu0
  %v383 = vadd.f32 %v80, %v382
  %v384 = vpop.f32.mrf.mxu0
  %v385 = vadd.f32 %v80, %v384
  %386 = vmatmul.bf16.gmra.mxu0 %v194
  %v387 = vpop.f32.mrf.mxu0
  %v388 = vadd.f32 %v80, %v387
  %v389 = vpop.f32.mrf.mxu0
  %v390 = vadd.f32 %v80, %v389
  %391 = vmatmul.bf16.gmra.mxu0 %v196
  %v392 = vpop.f32.mrf.mxu0
  %v393 = vadd.f32 %v80, %v392
  %v394 = vpop.f32.mrf.mxu0
  %v395 = vadd.f32 %v80, %v394
  %396 = vmatmul.bf16.gmra.mxu0 %v198
  %v397 = vpop.f32.mrf.mxu0
  %v398 = vadd.f32 %v80, %v397
  %v399 = vpop.f32.mrf.mxu0
  %v400 = vadd.f32 %v80, %v399
  %401 = vmatmul.bf16.gmra.mxu0 %v200
  %v402 = vpop.f32.mrf.mxu0
  %v403 = vadd.f32 %v80, %v402
  %v404 = vpop.f32.mrf.mxu0
  %v405 = vadd.f32 %v80, %v404
  %406 = vmatmul.bf16.gmra.mxu0 %v202
  %v407 = vpop.f32.mrf.mxu0
  %v408 = vadd.f32 %v80, %v407
  %v409 = vpop.f32.mrf.mxu0
  %v410 = vadd.f32 %v80, %v409
  %411 = vmatmul.bf16.gmra.mxu0 %v204
  %v412 = vpop.f32.mrf.mxu0
  %v413 = vadd.f32 %v80, %v412
  %v414 = vpop.f32.mrf.mxu0
  %v415 = vadd.f32 %v80, %v414
  %416 = vmatmul.bf16.gmra.mxu0 %v206
  %v417 = vpop.f32.mrf.mxu0
  %v418 = vadd.f32 %v80, %v417
  %v419 = vpop.f32.mrf.mxu0
  %v420 = vadd.f32 %v80, %v419
  %421 = vmatmul.bf16.gmra.mxu0 %v208
  %v422 = vpop.f32.mrf.mxu0
  %v423 = vadd.f32 %v80, %v422
  %v424 = vpop.f32.mrf.mxu0
  %v425 = vadd.f32 %v80, %v424
  %426 = vdwg.mxu0
  %427 = vmatpush.bf16.msra.mxu0 %v321
  %428 = vmatpush.bf16.msra.mxu0 %v320
  %429 = vmatpush.bf16.msra.mxu0 %v319
  %430 = vmatpush.bf16.msra.mxu0 %v318
  %431 = vmatpush.bf16.msra.mxu0 %v317
  %432 = vmatpush.bf16.msra.mxu0 %v316
  %433 = vmatpush.bf16.msra.mxu0 %v315
  %434 = vmatpush.bf16.msra.mxu0 %v314
  %435 = vmatmul.bf16.gmra.mxu0 %v179
  %v436 = vpop.f32.mrf.mxu0
  %v437 = vadd.f32 %v348, %v436
  %v438 = vpop.f32.mrf.mxu0
  %v439 = vadd.f32 %v350, %v438
  %440 = vmatmul.bf16.gmra.mxu0 %v181
  %v441 = vpop.f32.mrf.mxu0
  %v442 = vadd.f32 %v353, %v441
  %v443 = vpop.f32.mrf.mxu0
  %v444 = vadd.f32 %v355, %v443
  %445 = vmatmul.bf16.gmra.mxu0 %v183
  %v446 = vpop.f32.mrf.mxu0
  %v447 = vadd.f32 %v358, %v446
  %v448 = vpop.f32.mrf.mxu0
  %v449 = vadd.f32 %v360, %v448
  %450 = vmatmul.bf16.gmra.mxu0 %v185
  %v451 = vpop.f32.mrf.mxu0
  %v452 = vadd.f32 %v363, %v451
  %v453 = vpop.f32.mrf.mxu0
  %v454 = vadd.f32 %v365, %v453
  %455 = vmatmul.bf16.gmra.mxu0 %v187
  %v456 = vpop.f32.mrf.mxu0
  %v457 = vadd.f32 %v368, %v456
  %v458 = vpop.f32.mrf.mxu0
  %v459 = vadd.f32 %v370, %v458
  %460 = vmatmul.bf16.gmra.mxu0 %v189
  %v461 = vpop.f32.mrf.mxu0
  %v462 = vadd.f32 %v373, %v461
  %v463 = vpop.f32.mrf.mxu0
  %v464 = vadd.f32 %v375, %v463
  %465 = vmatmul.bf16.gmra.mxu0 %v191
  %v466 = vpop.f32.mrf.mxu0
  %v467 = vadd.f32 %v378, %v466
  %v468 = vpop.f32.mrf.mxu0
  %v469 = vadd.f32 %v380, %v468
  %470 = vmatmul.bf16.gmra.mxu0 %v193
  %v471 = vpop.f32.mrf.mxu0
  %v472 = vadd.f32 %v383, %v471
  %v473 = vpop.f32.mrf.mxu0
  %v474 = vadd.f32 %v385, %v473
  %475 = vmatmul.bf16.gmra.mxu0 %v195
  %v476 = vpop.f32.mrf.mxu0
  %v477 = vadd.f32 %v388, %v476
  %v478 = vpop.f32.mrf.mxu0
  %v479 = vadd.f32 %v390, %v478
  %480 = vmatmul.bf16.gmra.mxu0 %v197
  %v481 = vpop.f32.mrf.mxu0
  %v482 = vadd.f32 %v393, %v481
  %v483 = vpop.f32.mrf.mxu0
  %v484 = vadd.f32 %v395, %v483
  %485 = vmatmul.bf16.gmra.mxu0 %v199
  %v486 = vpop.f32.mrf.mxu0
  %v487 = vadd.f32 %v398, %v486
  %v488 = vpop.f32.mrf.mxu0
  %v489 = vadd.f32 %v400, %v488
  %490 = vmatmul.bf16.gmra.mxu0 %v201
  %v491 = vpop.f32.mrf.mxu0
  %v492 = vadd.f32 %v403, %v491
  %v493 = vpop.f32.mrf.mxu0
  %v494 = vadd.f32 %v405, %v493
  %495 = vmatmul.bf16.gmra.mxu0 %v203
  %v496 = vpop.f32.mrf.mxu0
  %v497 = vadd.f32 %v408, %v496
  %v498 = vpop.f32.mrf.mxu0
  %v499 = vadd.f32 %v410, %v498
  %500 = vmatmul.bf16.gmra.mxu0 %v205
  %v501 = vpop.f32.mrf.mxu0
  %v502 = vadd.f32 %v413, %v501
  %v503 = vpop.f32.mrf.mxu0
  %v504 = vadd.f32 %v415, %v503
  %505 = vmatmul.bf16.gmra.mxu0 %v207
  %v506 = vpop.f32.mrf.mxu0
  %v507 = vadd.f32 %v418, %v506
  %v508 = vpop.f32.mrf.mxu0
  %v509 = vadd.f32 %v420, %v508
  %510 = vmatmul.bf16.gmra.mxu0 %v209
  %v511 = vpop.f32.mrf.mxu0
  %v512 = vadd.f32 %v423, %v511
  %v513 = vpop.f32.mrf.mxu0
  %v514 = vadd.f32 %v425, %v513
  %515 = vdwg.mxu0
  %v516 = vmax.f32 %v437, 0.0
  %v517 = vmax.f32 %v439, 0.0
  %v518 = vmax.f32 %v442, 0.0
  %v519 = vmax.f32 %v444, 0.0
  %v520 = vmax.f32 %v447, 0.0
  %v521 = vmax.f32 %v449, 0.0
  %v522 = vmax.f32 %v452, 0.0
  %v523 = vmax.f32 %v454, 0.0
  %v524 = vmax.f32 %v457, 0.0
  %v525 = vmax.f32 %v459, 0.0
  %v526 = vmax.f32 %v462, 0.0
  %v527 = vmax.f32 %v464, 0.0
  %v528 = vmax.f32 %v467, 0.0
  %v529 = vmax.f32 %v469, 0.0
  %v530 = vmax.f32 %v472, 0.0
  %v531 = vmax.f32 %v474, 0.0
  %v532 = vmax.f32 %v477, 0.0
  %v533 = vmax.f32 %v479, 0.0
  %v534 = vmax.f32 %v482, 0.0
  %v535 = vmax.f32 %v484, 0.0
  %v536 = vmax.f32 %v487, 0.0
  %v537 = vmax.f32 %v489, 0.0
  %v538 = vmax.f32 %v492, 0.0
  %v539 = vmax.f32 %v494, 0.0
  %v540 = vmax.f32 %v497, 0.0
  %v541 = vmax.f32 %v499, 0.0
  %v542 = vmax.f32 %v502, 0.0
  %v543 = vmax.f32 %v504, 0.0
  %v544 = vmax.f32 %v507, 0.0
  %v545 = vmax.f32 %v509, 0.0
  %v546 = vmax.f32 %v512, 0.0
  %v547 = vmax.f32 %v514, 0.0
  %v548 = vpack.c.bf16 %v516, %v516
  %v549 = vpack.c.bf16 %v517, %v517
  %v550 = vpack.c.bf16 %v518, %v518
  %v551 = vpack.c.bf16 %v519, %v519
  %v552 = vpack.c.bf16 %v520, %v520
  %v553 = vpack.c.bf16 %v521, %v521
  %v554 = vpack.c.bf16 %v522, %v522
  %v555 = vpack.c.bf16 %v523, %v523
  %v556 = vpack.c.bf16 %v524, %v524
  %v557 = vpack.c.bf16 %v525, %v525
  %v558 = vpack.c.bf16 %v526, %v526
  %v559 = vpack.c.bf16 %v527, %v527
  %v560 = vpack.c.bf16 %v528, %v528
  %v561 = vpack.c.bf16 %v529, %v529
  %v562 = vpack.c.bf16 %v530, %v530
  %v563 = vpack.c.bf16 %v531, %v531
  %v564 = vpack.c.bf16 %v532, %v532
  %v565 = vpack.c.bf16 %v533, %v533
  %v566 = vpack.c.bf16 %v534, %v534
  %v567 = vpack.c.bf16 %v535, %v535
  %v568 = vpack.c.bf16 %v536, %v536
  %v569 = vpack.c.bf16 %v537, %v537
  %v570 = vpack.c.bf16 %v538, %v538
  %v571 = vpack.c.bf16 %v539, %v539
  %v572 = vpack.c.bf16 %v540, %v540
  %v573 = vpack.c.bf16 %v541, %v541
  %v574 = vpack.c.bf16 %v542, %v542
  %v575 = vpack.c.bf16 %v543, %v543
  %v576 = vpack.c.bf16 %v544, %v544
  %v577 = vpack.c.bf16 %v545, %v545
  %v578 = vpack.c.bf16 %v546, %v546
  %v579 = vpack.c.bf16 %v547, %v547
  %580 = vst [vmem:[%s3] sm:$0xf] %v548
  %581 = vst [vmem:[%s3 + $0x4] sm:$0xf] %v549
  %582 = vst [vmem:[%s3 + $0x8] sm:$0xf] %v550
  %583 = vst [vmem:[%s3 + $0xc] sm:$0xf] %v551
  %584 = vst [vmem:[%s3 + $0x10] sm:$0xf] %v552
  %585 = vst [vmem:[%s3 + $0x14] sm:$0xf] %v553
  %586 = vst [vmem:[%s3 + $0x18] sm:$0xf] %v554
  %587 = vst [vmem:[%s3 + $0x1c] sm:$0xf] %v555
  %588 = vst [vmem:[%s3 + $0x20] sm:$0xf] %v556
  %589 = vst [vmem:[%s3 + $0x24] sm:$0xf] %v557
  %590 = vst [vmem:[%s3 + $0x28] sm:$0xf] %v558
  %591 = vst [vmem:[%s3 + $0x2c] sm:$0xf] %v559
  %592 = vst [vmem:[%s3 + $0x30] sm:$0xf] %v560
  %593 = vst [vmem:[%s3 + $0x34] sm:$0xf] %v561
  %594 = vst [vmem:[%s3 + $0x38] sm:$0xf] %v562
  %595 = vst [vmem:[%s3 + $0x3c] sm:$0xf] %v563
  %596 = vst [vmem:[%s3 + $0x40] sm:$0xf] %v564
  %597 = vst [vmem:[%s3 + $0x44] sm:$0xf] %v565
  %598 = vst [vmem:[%s3 + $0x48] sm:$0xf] %v566
  %599 = vst [vmem:[%s3 + $0x4c] sm:$0xf] %v567
  %600 = vst [vmem:[%s3 + $0x50] sm:$0xf] %v568
  %601 = vst [vmem:[%s3 + $0x54] sm:$0xf] %v569
  %602 = vst [vmem:[%s3 + $0x58] sm:$0xf] %v570
  %603 = vst [vmem:[%s3 + $0x5c] sm:$0xf] %v571
  %604 = vst [vmem:[%s3 + $0x60] sm:$0xf] %v572
  %605 = vst [vmem:[%s3 + $0x64] sm:$0xf] %v573
  %606 = vst [vmem:[%s3 + $0x68] sm:$0xf] %v574
  %607 = vst [vmem:[%s3 + $0x6c] sm:$0xf] %v575
  %608 = vst [vmem:[%s3 + $0x70] sm:$0xf] %v576
  %609 = vst [vmem:[%s3 + $0x74] sm:$0xf] %v577
  %610 = vst [vmem:[%s3 + $0x78] sm:$0xf] %v578
  %611 = vst [vmem:[%s3 + $0x7c] sm:$0xf] %v579
  // Predicated region
  $region14: #{net_forward.7} parent=0 // pred_check
    _
  $region15: #{net_forward.7} parent=0 // pred_check_branch
    %613 = sbr.rel (0) target = $region17
  $region16: #{net_forward.7} parent=0 // pred_region
    _
  $region17: #{net_forward.7} parent=0 // pred_fallthru
    _
  // Predicated region
  $region18: #{net_forward.7} parent=0 // pred_check
    _
  $region19: #{net_forward.7} parent=0 // pred_check_branch
    %615 = sbr.rel (0) target = $region21
  $region20: #{net_forward.7} parent=0 // pred_region
    _
  $region21: #{net_forward.7} parent=0 // pred_fallthru
    _

// kernel: net_forward.8
$region0: #{net_forward.8}
  #allocation0 [shape = 'u32[]', space=smem, size = 0x4, offset = 0x4, fixed_abs, tag = 'smem constant byte address 0x4 - core index']
  #allocation1 [shape = 'u32[72,128]{1,0:T(1,128)}', space=vmem, size = 0x9000, scoped, tag = 'internal scratch']
  %s0 = inlined_call_operand.vmem [shape: bf16[20,5,256], index: 0, kind: input, shape index: {}]
  %s1 = inlined_call_operand.vmem [shape: bf16[10,5,128], index: 1, kind: output, shape index: {}]
  %s2 = sld [smem:[#allocation0]]
  $region37: #{net_forward.8} parent=0
    _
  %s4 = ssub.s32 1, %s2
  %s5 = scalar_select 0, %s4, %s2
  loop: start=0, step=1, limit=4
  $region2: #{net_forward.8} parent=0 // loop_pre_header
    _
  $region3: #{net_forward.8} parent=0 // loop_header
    %s7 = sphi 0, %s11
    %p8 = scmp.ge.s32.totalorder %s7, 4
    %s17 = sphi 0, %s19
    %s20 = sphi 0, %s17
    %s21 = sphi 0, %s20
    %s37 = sphi 0, %s21
    %s43 = sphi 0, %s45
    %s46 = sphi 0, %s43
    %s47 = sphi 0, %s46
    %s63 = sphi 0, %s47
  $region4: #{net_forward.8} parent=0 // loop_header_branch
    %10 = sbr.rel (%p8) target = $region8
  $region5: #{net_forward.8} parent=0 // loop_body
    %s12 = ssub.s32 %s7, 1
    %s13 = ssub.s32 %s7, 2
    %s14 = sadd.s32 %s7, 1
    %s15 = ssub.s32 %s7, %s14
    %p16 = scmp.eq.s32.totalorder %s15, 0
    %s18 = sadd.s32 %s17, 1
    %s19 = scalar_select %p16, %s17, %s18
    %p22 = pneg %p16
    %p23 = scmp.eq.s32.totalorder %s7, 1
    %p24 = por %p22, %p23
    %p25 = scmp.ne.s32.totalorder %s17, %s20
    %p26 = scmp.eq.s32.totalorder %s7, 0
    %p27 = por %p25, %p26
    %p28 = scmp.ne.s32.totalorder %s17, %s20
    %p29 = scmp.eq.s32.totalorder %s12, 1
    %p30 = por %p28, %p29
    %p31 = scmp.ne.s32.totalorder %s20, %s21
    %p32 = scmp.eq.s32.totalorder %s12, 0
    %p33 = por %p31, %p32
    %p34 = scmp.ne.s32.totalorder %s20, %s21
    %p35 = scmp.eq.s32.totalorder %s13, 1
    %p36 = por %p34, %p35
    %p38 = scmp.ne.s32.totalorder %s21, %s37
    %p39 = scmp.eq.s32.totalorder %s13, 0
    %p40 = por %p38, %p39
    %s41 = ssub.s32 %s7, %s14
    %p42 = scmp.eq.s32.totalorder %s41, 0
    %s44 = sadd.s32 %s43, 1
    %s45 = scalar_select %p42, %s43, %s44
    %p48 = pneg %p42
    %p49 = scmp.eq.s32.totalorder %s7, 1
    %p50 = por %p48, %p49
    %p51 = scmp.ne.s32.totalorder %s43, %s46
    %p52 = scmp.eq.s32.totalorder %s7, 0
    %p53 = por %p51, %p52
    %p54 = scmp.ne.s32.totalorder %s43, %s46
    %p55 = scmp.eq.s32.totalorder %s12, 1
    %p56 = por %p54, %p55
    %p57 = scmp.ne.s32.totalorder %s46, %s47
    %p58 = scmp.eq.s32.totalorder %s12, 0
    %p59 = por %p57, %p58
    %p60 = scmp.ne.s32.totalorder %s46, %s47
    %p61 = scmp.eq.s32.totalorder %s13, 1
    %p62 = por %p60, %p61
    %p64 = scmp.ne.s32.totalorder %s47, %s63
    %p65 = scmp.eq.s32.totalorder %s13, 0
    %p66 = por %p64, %p65
    %p67 = scmp.le.s32.totalorder 1, %s7
    %p68 = scmp.lt.s32.totalorder %s7, 3
    %p69 = pnand %p67, %p68
    %p70 = pneg %p69
    // Predicated region
    $region9: #{net_forward.8} parent=5 // pred_check
      _
    $region10: #{net_forward.8} parent=5 // pred_check_branch
      %72 = sbr.rel (%p69) target = $region12
    $region11: #{net_forward.8} parent=5 // pred_region
      %s73 = ssub.s32 %s7, 1
    $region12: #{net_forward.8} parent=5 // pred_fallthru
      _
    %p74 = scmp.lt.s32.totalorder %s7, 2
    // Predicated region
    $region13: #{net_forward.8} parent=5 // pred_check
      %p75 = pneg %p74
    $region14: #{net_forward.8} parent=5 // pred_check_branch
      %77 = sbr.rel (%p75) target = $region16
    $region15: #{net_forward.8} parent=5 // pred_region
      // Predicated region
      $region17: #{net_forward.8} parent=15 // pred_check
        %p78 = pneg %p27
      $region18: #{net_forward.8} parent=15 // pred_check_branch
        %80 = sbr.rel (%p78) target = $region20
      $region19: #{net_forward.8} parent=15 // pred_region
        %s81 = smul.u32 10, %s7
        %p82 = scmp.lt.s32.totalorder %s81, 19
        %s83 = scalar_select %p82, %s81, 19
        %s84 = smul.addr %s83, 2
        %s85 = smul.addr %s84, 4
        %s86 = scalar_lea.vmem %s0, %s85
        %s87 = smul.u32 10, %s7
      $region20: #{net_forward.8} parent=15 // pred_fallthru
        _
    $region16: #{net_forward.8} parent=5 // pred_fallthru
      _
    %p88 = scmp.le.s32.totalorder 1, %s7
    %p89 = scmp.lt.s32.totalorder %s7, 3
    %p90 = pnand %p88, %p89
    %p91 = pneg %p90
    // Predicated region
    $region21: #{net_forward.8} parent=5 // pred_check
      _
    $region22: #{net_forward.8} parent=5 // pred_check_branch
      %93 = sbr.rel (%p90) target = $region24
    $region23: #{net_forward.8} parent=5 // pred_region
      %s94 = ssub.s32 %s7, 1
      %s95 = smul.u32 10, %s12
      %p96 = scmp.lt.s32.totalorder %s95, 19
      %s97 = scalar_select %p96, %s95, 19
      %s98 = smul.addr %s97, 2
      %s99 = smul.addr %s98, 4
      %s100 = scalar_lea.vmem %s0, %s99
      %p101 = pneg %p33
      %p102 = pneg %p30
      %p103 = pneg %p59
      %p104 = pneg %p56
      %s105 = smul.u32 5, %s12
      %p106 = scmp.lt.s32.totalorder %s105, 9
      %s107 = scalar_select %p106, %s105, 9
      %s108 = smul.addr %s107, 4
      %s109 = scalar_lea.vmem %s1, %s108
      %s110 = smul.u32 10, %s12
      %p111 = scmp.lt.s32.totalorder %s110, 19
      %s112 = scalar_select %p111, %s110, 19
      %s113 = smul.addr %s112, 2
      %s114 = smul.addr %s113, 4
      %s115 = scalar_lea.vmem %s0, %s114
      %s116 = smul.u32 10, %s12
      %s117 = smul.u32 5, %s12
      %p118 = scmp.lt.s32.totalorder %s117, 9
      %s119 = scalar_select %p118, %s117, 9
      %s120 = smul.addr %s119, 4
      %s121 = scalar_lea.vmem %s1, %s120
      %s122 = smul.u32 5, %s12
      %v123 = vld [vmem:[%s115] sm:$0x77]
      %v124 = vld [vmem:[%s115 + $0x8] sm:$0x77]
      %v125 = vld [vmem:[%s115 + $0x10] sm:$0x77]
      %v126 = vld [vmem:[%s115 + $0x18] sm:$0x77]
      %v127 = vld [vmem:[%s115 + $0x20] sm:$0x77]
      %v128 = vld [vmem:[%s115 + $0x28] sm:$0x77]
      %v129 = vld [vmem:[%s115 + $0x30] sm:$0x77]
      %v130 = vld [vmem:[%s115 + $0x38] sm:$0x77]
      %v131 = vld [vmem:[%s115 + $0x40] sm:$0x77]
      %v132 = vld [vmem:[%s115 + $0x48] sm:$0x77]
      %v133 = vunpack.c.l.bf16 %v123
      %v134 = vunpack.c.l.bf16 %v124
      %v135 = vunpack.c.l.bf16 %v125
      %v136 = vunpack.c.l.bf16 %v126
      %v137 = vunpack.c.l.bf16 %v127
      %v138 = vunpack.c.l.bf16 %v128
      %v139 = vunpack.c.l.bf16 %v129
      %v140 = vunpack.c.l.bf16 %v130
      %v141 = vunpack.c.l.bf16 %v131
      %v142 = vunpack.c.l.bf16 %v132
      %v153 = vrot.slane %v123, 4
      %v154 = vrot.slane %v124, 4
      %v155 = vrot.slane %v125, 4
      %v156 = vrot.slane %v126, 4
      %v157 = vrot.slane %v127, 4
      %v158 = vrot.slane %v128, 4
      %v159 = vrot.slane %v129, 4
      %v160 = vrot.slane %v130, 4
      %v161 = vrot.slane %v131, 4
      %v162 = vrot.slane %v132, 4
      %v173 = vunpack.c.l.bf16 %v153
      %v174 = vunpack.c.l.bf16 %v154
      %v175 = vunpack.c.l.bf16 %v155
      %v176 = vunpack.c.l.bf16 %v156
      %v177 = vunpack.c.l.bf16 %v157
      %v178 = vunpack.c.l.bf16 %v158
      %v179 = vunpack.c.l.bf16 %v159
      %v180 = vunpack.c.l.bf16 %v160
      %v181 = vunpack.c.l.bf16 %v161
      %v182 = vunpack.c.l.bf16 %v162
      %v183 = vmax.f32 %v133, %v173
      %v184 = vmax.f32 %v134, %v174
      %v185 = vmax.f32 %v135, %v175
      %v186 = vmax.f32 %v136, %v176
      %v187 = vmax.f32 %v137, %v177
      %v188 = vmax.f32 %v138, %v178
      %v189 = vmax.f32 %v139, %v179
      %v190 = vmax.f32 %v140, %v180
      %v191 = vmax.f32 %v141, %v181
      %v192 = vmax.f32 %v142, %v182
      %v193 = vpack.c.bf16 %v183, %v183
      %v194 = vpack.c.bf16 %v184, %v184
      %v195 = vpack.c.bf16 %v185, %v185
      %v196 = vpack.c.bf16 %v186, %v186
      %v197 = vpack.c.bf16 %v187, %v187
      %v198 = vpack.c.bf16 %v188, %v188
      %v199 = vpack.c.bf16 %v189, %v189
      %v200 = vpack.c.bf16 %v190, %v190
      %v201 = vpack.c.bf16 %v191, %v191
      %v202 = vpack.c.bf16 %v192, %v192
      %v203 = vunpack.c.l.bf16 %v193
      %v204 = vunpack.c.l.bf16 %v195
      %v205 = vunpack.c.l.bf16 %v197
      %v206 = vunpack.c.l.bf16 %v199
      %v207 = vunpack.c.l.bf16 %v201
      %v208 = vunpack.c.l.bf16 %v194
      %v209 = vunpack.c.l.bf16 %v196
      %v210 = vunpack.c.l.bf16 %v198
      %v211 = vunpack.c.l.bf16 %v200
      %v212 = vunpack.c.l.bf16 %v202
      %v213 = vmax.f32 %v203, %v208
      %v214 = vmax.f32 %v204, %v209
      %v215 = vmax.f32 %v205, %v210
      %v216 = vmax.f32 %v206, %v211
      %v217 = vmax.f32 %v207, %v212
      %v218 = vpack.c.bf16 %v213, %v213
      %v219 = vpack.c.bf16 %v214, %v214
      %v220 = vpack.c.bf16 %v215, %v215
      %v221 = vpack.c.bf16 %v216, %v216
      %v222 = vpack.c.bf16 %v217, %v217
      %vm223 = vcmask 1042432
      %vm224 = vsmask.f32 2304
      %vm225 = vmand %vm223, %vm224
      %v226 = vld [vmem:[%s121] sm:$0x7]
      %v227 = vsel %vm225, %v218, %v226
      %228 = vst [vmem:[%s121] sm:$0x7] %v227
      %v229 = vld [vmem:[%s121 + $0x4] sm:$0x7]
      %v230 = vsel %vm225, %v219, %v229
      %231 = vst [vmem:[%s121 + $0x4] sm:$0x7] %v230
      %v232 = vld [vmem:[%s121 + $0x8] sm:$0x7]
      %v233 = vsel %vm225, %v220, %v232
      %234 = vst [vmem:[%s121 + $0x8] sm:$0x7] %v233
      %v235 = vld [vmem:[%s121 + $0xc] sm:$0x7]
      %v236 = vsel %vm225, %v221, %v235
      %237 = vst [vmem:[%s121 + $0xc] sm:$0x7] %v236
      %v238 = vld [vmem:[%s121 + $0x10] sm:$0x7]
      %v239 = vsel %vm225, %v222, %v238
      %240 = vst [vmem:[%s121 + $0x10] sm:$0x7] %v239
      %s241 = smul.u32 5, %s12
      %p242 = scmp.lt.s32.totalorder %s241, 9
      %s243 = scalar_select %p242, %s241, 9
      %s244 = smul.addr %s243, 4
      %s245 = scalar_lea.vmem %s1, %s244
      // Predicated region
      $region25: #{net_forward.8} parent=23 // pred_check
        %p246 = pneg %p56
      $region26: #{net_forward.8} parent=23 // pred_check_branch
        %248 = sbr.rel (%p246) target = $region28
      $region27: #{net_forward.8} parent=23 // pred_region
        %s249 = smul.u32 5, %s12
      $region28: #{net_forward.8} parent=23 // pred_fallthru
        _
    $region24: #{net_forward.8} parent=5 // pred_fallthru
      _
    %p250 = scmp.le.s32.totalorder 2, %s7
    // Predicated region
    $region29: #{net_forward.8} parent=5 // pred_check
      %p251 = pneg %p250
    $region30: #{net_forward.8} parent=5 // pred_check_branch
      %253 = sbr.rel (%p251) target = $region32
    $region31: #{net_forward.8} parent=5 // pred_region
      %s254 = ssub.s32 %s7, 2
      // Predicated region
      $region33: #{net_forward.8} parent=31 // pred_check
        %p255 = pneg %p62
      $region34: #{net_forward.8} parent=31 // pred_check_branch
        %257 = sbr.rel (%p255) target = $region36
      $region35: #{net_forward.8} parent=31 // pred_region
        %s258 = smul.u32 5, %s13
        %p259 = scmp.lt.s32.totalorder %s258, 9
        %s260 = scalar_select %p259, %s258, 9
        %s261 = smul.addr %s260, 4
        %s262 = scalar_lea.vmem %s1, %s261
      $region36: #{net_forward.8} parent=31 // pred_fallthru
        _
    $region32: #{net_forward.8} parent=5 // pred_fallthru
      _
  $region6: #{net_forward.8} parent=0 // loop_footer
    %s11 = sadd.s32 1, %s7
  $region7: #{net_forward.8} parent=0 // loop_footer_branch
    %6 = sbr.rel target = $region3
  $region8: #{net_forward.8} parent=0 // loop_exit
    _

// kernel: net_forward.9
$region0: #{net_forward.9}
  #allocation0 [shape = 'u32[]', space=smem, size = 0x4, offset = 0x4, fixed_abs, tag = 'smem constant byte address 0x4 - core index']
  #allocation1 [shape = 'u32[72,128]{1,0:T(1,128)}', space=vmem, size = 0x9000, scoped, tag = 'internal scratch']
  %s0 = inlined_call_operand.vmem [shape: bf16[2,3200], index: 0, kind: input, shape index: {}]
  %s1 = inlined_call_operand.vmem [shape: bf16[3200,128], index: 1, kind: input, shape index: {}]
  %s2 = inlined_call_operand.vmem [shape: f32[1,128], index: 2, kind: input, shape index: {}]
  %s3 = inlined_call_operand.vmem [shape: bf16[128,128], index: 3, kind: input, shape index: {}]
  %s4 = inlined_call_operand.vmem [shape: f32[1,128], index: 4, kind: input, shape index: {}]
  %s5 = inlined_call_operand.vmem [shape: bf16[128,128], index: 5, kind: input, shape index: {}]
  %s6 = inlined_call_operand.vmem [shape: f32[1,128], index: 6, kind: input, shape index: {}]
  %s7 = inlined_call_operand.hbm [shape: f32[2,128], index: 7, kind: output, shape index: {}]
  %s8 = sld [smem:[#allocation0]]
  $region38: #{net_forward.9} parent=0
    _
  %s10 = ssub.s32 1, %s8
  %s11 = scalar_select 0, %s10, %s8
  $region1: #{net_forward.9} parent=0
    #allocation2 [shape = 'u8[1024]{0}', space=vmem, size = 0x400, scoped, tag = 'output window, operand 0, single buffered']
    #allocation3 [shape = 's32[1]{0}', space=sflag, size = 0x4, scoped, tag = 'scoped memory for net_forward.9']
    %12 = vsyncpa [#allocation3], 0
    // Predicated region
    $region2: #{net_forward.9} parent=1 // pred_check
      _
    $region3: #{net_forward.9} parent=1 // pred_check_branch
      %14 = sbr.rel (0) target = $region5
    $region4: #{net_forward.9} parent=1 // pred_region
      _
    $region5: #{net_forward.9} parent=1 // pred_fallthru
      _
    // Predicated region
    $region6: #{net_forward.9} parent=1 // pred_check
      _
    $region7: #{net_forward.9} parent=1 // pred_check_branch
      %16 = sbr.rel (0) target = $region9
    $region8: #{net_forward.9} parent=1 // pred_region
      _
    $region9: #{net_forward.9} parent=1 // pred_fallthru
      _
    // Predicated region
    $region10: #{net_forward.9} parent=1 // pred_check
      _
    $region11: #{net_forward.9} parent=1 // pred_check_branch
      %18 = sbr.rel (0) target = $region13
    $region12: #{net_forward.9} parent=1 // pred_region
      _
    $region13: #{net_forward.9} parent=1 // pred_fallthru
      _
    // Predicated region
    $region14: #{net_forward.9} parent=1 // pred_check
      _
    $region15: #{net_forward.9} parent=1 // pred_check_branch
      %20 = sbr.rel (0) target = $region17
    $region16: #{net_forward.9} parent=1 // pred_region
      _
    $region17: #{net_forward.9} parent=1 // pred_fallthru
      _
    // Predicated region
    $region18: #{net_forward.9} parent=1 // pred_check
      _
    $region19: #{net_forward.9} parent=1 // pred_check_branch
      %22 = sbr.rel (0) target = $region21
    $region20: #{net_forward.9} parent=1 // pred_region
      _
    $region21: #{net_forward.9} parent=1 // pred_fallthru
      _
    // Predicated region
    $region22: #{net_forward.9} parent=1 // pred_check
      _
    $region23: #{net_forward.9} parent=1 // pred_check_branch
      %24 = sbr.rel (0) target = $region25
    $region24: #{net_forward.9} parent=1 // pred_region
      _
    $region25: #{net_forward.9} parent=1 // pred_fallthru
      _
    // Predicated region
    $region26: #{net_forward.9} parent=1 // pred_check
      _
    $region27: #{net_forward.9} parent=1 // pred_check_branch
      %26 = sbr.rel (0) target = $region29
    $region28: #{net_forward.9} parent=1 // pred_region
      _
    $region29: #{net_forward.9} parent=1 // pred_fallthru
      _
    %v27 = vld [vmem:[%s0] sm:$0xff]
    %v28 = vld [vmem:[%s0 + $0x8] sm:$0xff]
    %v29 = vld [vmem:[%s0 + $0x10] sm:$0xff]
    %v30 = vld [vmem:[%s0 + $0x18] sm:$0x1]
    %v31 = vld [vmem:[%s1] sm:$0xf]
    %v32 = vld [vmem:[%s1 + $0x4] sm:$0xf]
    %v33 = vld [vmem:[%s1 + $0x8] sm:$0xf]
    %v34 = vld [vmem:[%s1 + $0xc] sm:$0xf]
    %v35 = vld [vmem:[%s1 + $0x10] sm:$0xf]
    %v36 = vld [vmem:[%s1 + $0x14] sm:$0xf]
    %v37 = vld [vmem:[%s1 + $0x18] sm:$0xf]
    %v38 = vld [vmem:[%s1 + $0x1c] sm:$0xf]
    %v39 = vld [vmem:[%s1 + $0x20] sm:$0xf]
    %v40 = vld [vmem:[%s1 + $0x24] sm:$0xf]
    %v41 = vld [vmem:[%s1 + $0x28] sm:$0xf]
    %v42 = vld [vmem:[%s1 + $0x2c] sm:$0xf]
    %v43 = vld [vmem:[%s1 + $0x30] sm:$0xf]
    %v44 = vld [vmem:[%s1 + $0x34] sm:$0xf]
    %v45 = vld [vmem:[%s1 + $0x38] sm:$0xf]
    %v46 = vld [vmem:[%s1 + $0x3c] sm:$0xf]
    %v47 = vld [vmem:[%s1 + $0x40] sm:$0xf]
    %v48 = vld [vmem:[%s1 + $0x44] sm:$0xf]
    %v49 = vld [vmem:[%s1 + $0x48] sm:$0xf]
    %v50 = vld [vmem:[%s1 + $0x4c] sm:$0xf]
    %v51 = vld [vmem:[%s1 + $0x50] sm:$0xf]
    %v52 = vld [vmem:[%s1 + $0x54] sm:$0xf]
    %v53 = vld [vmem:[%s1 + $0x58] sm:$0xf]
    %v54 = vld [vmem:[%s1 + $0x5c] sm:$0xf]
    %v55 = vld [vmem:[%s1 + $0x60] sm:$0xf]
    %v56 = vld [vmem:[%s1 + $0x64] sm:$0xf]
    %v57 = vld [vmem:[%s1 + $0x68] sm:$0xf]
    %v58 = vld [vmem:[%s1 + $0x6c] sm:$0xf]
    %v59 = vld [vmem:[%s1 + $0x70] sm:$0xf]
    %v60 = vld [vmem:[%s1 + $0x74] sm:$0xf]
    %v61 = vld [vmem:[%s1 + $0x78] sm:$0xf]
    %v62 = vld [vmem:[%s1 + $0x7c] sm:$0xf]
    %v63 = vld [vmem:[%s1 + $0x80] sm:$0xf]
    %v64 = vld [vmem:[%s1 + $0x84] sm:$0xf]
    %v65 = vld [vmem:[%s1 + $0x88] sm:$0xf]
    %v66 = vld [vmem:[%s1 + $0x8c] sm:$0xf]
    %v67 = vld [vmem:[%s1 + $0x90] sm:$0xf]
    %v68 = vld [vmem:[%s1 + $0x94] sm:$0xf]
    %v69 = vld [vmem:[%s1 + $0x98] sm:$0xf]
    %v70 = vld [vmem:[%s1 + $0x9c] sm:$0xf]
    %v71 = vld [vmem:[%s1 + $0xa0] sm:$0xf]
    %v72 = vld [vmem:[%s1 + $0xa4] sm:$0xf]
    %v73 = vld [vmem:[%s1 + $0xa8] sm:$0xf]
    %v74 = vld [vmem:[%s1 + $0xac] sm:$0xf]
    %v75 = vld [vmem:[%s1 + $0xb0] sm:$0xf]
    %v76 = vld [vmem:[%s1 + $0xb4] sm:$0xf]
    %v77 = vld [vmem:[%s1 + $0xb8] sm:$0xf]
    %v78 = vld [vmem:[%s1 + $0xbc] sm:$0xf]
    %v79 = vld [vmem:[%s1 + $0xc0] sm:$0xf]
    %v80 = vld [vmem:[%s1 + $0xc4] sm:$0xf]
    %v81 = vld [vmem:[%s1 + $0xc8] sm:$0xf]
    %v82 = vld [vmem:[%s1 + $0xcc] sm:$0xf]
    %v83 = vld [vmem:[%s1 + $0xd0] sm:$0xf]
    %v84 = vld [vmem:[%s1 + $0xd4] sm:$0xf]
    %v85 = vld [vmem:[%s1 + $0xd8] sm:$0xf]
    %v86 = vld [vmem:[%s1 + $0xdc] sm:$0xf]
    %v87 = vld [vmem:[%s1 + $0xe0] sm:$0xf]
    %v88 = vld [vmem:[%s1 + $0xe4] sm:$0xf]
    %v89 = vld [vmem:[%s1 + $0xe8] sm:$0xf]
    %v90 = vld [vmem:[%s1 + $0xec] sm:$0xf]
    %v91 = vld [vmem:[%s1 + $0xf0] sm:$0xf]
    %v92 = vld [vmem:[%s1 + $0xf4] sm:$0xf]
    %v93 = vld [vmem:[%s1 + $0xf8] sm:$0xf]
    %v94 = vld [vmem:[%s1 + $0xfc] sm:$0xf]
    %v95 = vld [vmem:[%s1 + $0x100] sm:$0xf]
    %v96 = vld [vmem:[%s1 + $0x104] sm:$0xf]
    %v97 = vld [vmem:[%s1 + $0x108] sm:$0xf]
    %v98 = vld [vmem:[%s1 + $0x10c] sm:$0xf]
    %v99 = vld [vmem:[%s1 + $0x110] sm:$0xf]
    %v100 = vld [vmem:[%s1 + $0x114] sm:$0xf]
    %v101 = vld [vmem:[%s1 + $0x118] sm:$0xf]
    %v102 = vld [vmem:[%s1 + $0x11c] sm:$0xf]
    %v103 = vld [vmem:[%s1 + $0x120] sm:$0xf]
    %v104 = vld [vmem:[%s1 + $0x124] sm:$0xf]
    %v105 = vld [vmem:[%s1 + $0x128] sm:$0xf]
    %v106 = vld [vmem:[%s1 + $0x12c] sm:$0xf]
    %v107 = vld [vmem:[%s1 + $0x130] sm:$0xf]
    %v108 = vld [vmem:[%s1 + $0x134] sm:$0xf]
    %v109 = vld [vmem:[%s1 + $0x138] sm:$0xf]
    %v110 = vld [vmem:[%s1 + $0x13c] sm:$0xf]
    %v111 = vld [vmem:[%s1 + $0x140] sm:$0xf]
    %v112 = vld [vmem:[%s1 + $0x144] sm:$0xf]
    %v113 = vld [vmem:[%s1 + $0x148] sm:$0xf]
    %v114 = vld [vmem:[%s1 + $0x14c] sm:$0xf]
    %v115 = vld [vmem:[%s1 + $0x150] sm:$0xf]
    %v116 = vld [vmem:[%s1 + $0x154] sm:$0xf]
    %v117 = vld [vmem:[%s1 + $0x158] sm:$0xf]
    %v118 = vld [vmem:[%s1 + $0x15c] sm:$0xf]
    %v119 = vld [vmem:[%s1 + $0x160] sm:$0xf]
    %v120 = vld [vmem:[%s1 + $0x164] sm:$0xf]
    %v121 = vld [vmem:[%s1 + $0x168] sm:$0xf]
    %v122 = vld [vmem:[%s1 + $0x16c] sm:$0xf]
    %v123 = vld [vmem:[%s1 + $0x170] sm:$0xf]
    %v124 = vld [vmem:[%s1 + $0x174] sm:$0xf]
    %v125 = vld [vmem:[%s1 + $0x178] sm:$0xf]
    %v126 = vld [vmem:[%s1 + $0x17c] sm:$0xf]
    %v127 = vld [vmem:[%s1 + $0x180] sm:$0xf]
    %v128 = vld [vmem:[%s1 + $0x184] sm:$0xf]
    %v129 = vld [vmem:[%s1 + $0x188] sm:$0xf]
    %v130 = vld [vmem:[%s1 + $0x18c] sm:$0xf]
    %v131 = vld [vmem:[%s1 + $0x190] sm:$0xf]
    %v132 = vld [vmem:[%s1 + $0x194] sm:$0xf]
    %v133 = vld [vmem:[%s1 + $0x198] sm:$0xf]
    %v134 = vld [vmem:[%s1 + $0x19c] sm:$0xf]
    %v135 = vld [vmem:[%s1 + $0x1a0] sm:$0xf]
    %v136 = vld [vmem:[%s1 + $0x1a4] sm:$0xf]
    %v137 = vld [vmem:[%s1 + $0x1a8] sm:$0xf]
    %v138 = vld [vmem:[%s1 + $0x1ac] sm:$0xf]
    %v139 = vld [vmem:[%s1 + $0x1b0] sm:$0xf]
    %v140 = vld [vmem:[%s1 + $0x1b4] sm:$0xf]
    %v141 = vld [vmem:[%s1 + $0x1b8] sm:$0xf]
    %v142 = vld [vmem:[%s1 + $0x1bc] sm:$0xf]
    %v143 = vld [vmem:[%s1 + $0x1c0] sm:$0xf]
    %v144 = vld [vmem:[%s1 + $0x1c4] sm:$0xf]
    %v145 = vld [vmem:[%s1 + $0x1c8] sm:$0xf]
    %v146 = vld [vmem:[%s1 + $0x1cc] sm:$0xf]
    %v147 = vld [vmem:[%s1 + $0x1d0] sm:$0xf]
    %v148 = vld [vmem:[%s1 + $0x1d4] sm:$0xf]
    %v149 = vld [vmem:[%s1 + $0x1d8] sm:$0xf]
    %v150 = vld [vmem:[%s1 + $0x1dc] sm:$0xf]
    %v151 = vld [vmem:[%s1 + $0x1e0] sm:$0xf]
    %v152 = vld [vmem:[%s1 + $0x1e4] sm:$0xf]
    %v153 = vld [vmem:[%s1 + $0x1e8] sm:$0xf]
    %v154 = vld [vmem:[%s1 + $0x1ec] sm:$0xf]
    %v155 = vld [vmem:[%s1 + $0x1f0] sm:$0xf]
    %v156 = vld [vmem:[%s1 + $0x1f4] sm:$0xf]
    %v157 = vld [vmem:[%s1 + $0x1f8] sm:$0xf]
    %v158 = vld [vmem:[%s1 + $0x1fc] sm:$0xf]
    %v159 = vld [vmem:[%s1 + $0x200] sm:$0xf]
    %v160 = vld [vmem:[%s1 + $0x204] sm:$0xf]
    %v161 = vld [vmem:[%s1 + $0x208] sm:$0xf]
    %v162 = vld [vmem:[%s1 + $0x20c] sm:$0xf]
    %v163 = vld [vmem:[%s1 + $0x210] sm:$0xf]
    %v164 = vld [vmem:[%s1 + $0x214] sm:$0xf]
    %v165 = vld [vmem:[%s1 + $0x218] sm:$0xf]
    %v166 = vld [vmem:[%s1 + $0x21c] sm:$0xf]
    %v167 = vld [vmem:[%s1 + $0x220] sm:$0xf]
    %v168 = vld [vmem:[%s1 + $0x224] sm:$0xf]
    %v169 = vld [vmem:[%s1 + $0x228] sm:$0xf]
    %v170 = vld [vmem:[%s1 + $0x22c] sm:$0xf]
    %v171 = vld [vmem:[%s1 + $0x230] sm:$0xf]
    %v172 = vld [vmem:[%s1 + $0x234] sm:$0xf]
    %v173 = vld [vmem:[%s1 + $0x238] sm:$0xf]
    %v174 = vld [vmem:[%s1 + $0x23c] sm:$0xf]
    %v175 = vld [vmem:[%s1 + $0x240] sm:$0xf]
    %v176 = vld [vmem:[%s1 + $0x244] sm:$0xf]
    %v177 = vld [vmem:[%s1 + $0x248] sm:$0xf]
    %v178 = vld [vmem:[%s1 + $0x24c] sm:$0xf]
    %v179 = vld [vmem:[%s1 + $0x250] sm:$0xf]
    %v180 = vld [vmem:[%s1 + $0x254] sm:$0xf]
    %v181 = vld [vmem:[%s1 + $0x258] sm:$0xf]
    %v182 = vld [vmem:[%s1 + $0x25c] sm:$0xf]
    %v183 = vld [vmem:[%s1 + $0x260] sm:$0xf]
    %v184 = vld [vmem:[%s1 + $0x264] sm:$0xf]
    %v185 = vld [vmem:[%s1 + $0x268] sm:$0xf]
    %v186 = vld [vmem:[%s1 + $0x26c] sm:$0xf]
    %v187 = vld [vmem:[%s1 + $0x270] sm:$0xf]
    %v188 = vld [vmem:[%s1 + $0x274] sm:$0xf]
    %v189 = vld [vmem:[%s1 + $0x278] sm:$0xf]
    %v190 = vld [vmem:[%s1 + $0x27c] sm:$0xf]
    %v191 = vld [vmem:[%s1 + $0x280] sm:$0xf]
    %v192 = vld [vmem:[%s1 + $0x284] sm:$0xf]
    %v193 = vld [vmem:[%s1 + $0x288] sm:$0xf]
    %v194 = vld [vmem:[%s1 + $0x28c] sm:$0xf]
    %v195 = vld [vmem:[%s1 + $0x290] sm:$0xf]
    %v196 = vld [vmem:[%s1 + $0x294] sm:$0xf]
    %v197 = vld [vmem:[%s1 + $0x298] sm:$0xf]
    %v198 = vld [vmem:[%s1 + $0x29c] sm:$0xf]
    %v199 = vld [vmem:[%s1 + $0x2a0] sm:$0xf]
    %v200 = vld [vmem:[%s1 + $0x2a4] sm:$0xf]
    %v201 = vld [vmem:[%s1 + $0x2a8] sm:$0xf]
    %v202 = vld [vmem:[%s1 + $0x2ac] sm:$0xf]
    %v203 = vld [vmem:[%s1 + $0x2b0] sm:$0xf]
    %v204 = vld [vmem:[%s1 + $0x2b4] sm:$0xf]
    %v205 = vld [vmem:[%s1 + $0x2b8] sm:$0xf]
    %v206 = vld [vmem:[%s1 + $0x2bc] sm:$0xf]
    %v207 = vld [vmem:[%s1 + $0x2c0] sm:$0xf]
    %v208 = vld [vmem:[%s1 + $0x2c4] sm:$0xf]
    %v209 = vld [vmem:[%s1 + $0x2c8] sm:$0xf]
    %v210 = vld [vmem:[%s1 + $0x2cc] sm:$0xf]
    %v211 = vld [vmem:[%s1 + $0x2d0] sm:$0xf]
    %v212 = vld [vmem:[%s1 + $0x2d4] sm:$0xf]
    %v213 = vld [vmem:[%s1 + $0x2d8] sm:$0xf]
    %v214 = vld [vmem:[%s1 + $0x2dc] sm:$0xf]
    %v215 = vld [vmem:[%s1 + $0x2e0] sm:$0xf]
    %v216 = vld [vmem:[%s1 + $0x2e4] sm:$0xf]
    %v217 = vld [vmem:[%s1 + $0x2e8] sm:$0xf]
    %v218 = vld [vmem:[%s1 + $0x2ec] sm:$0xf]
    %v219 = vld [vmem:[%s1 + $0x2f0] sm:$0xf]
    %v220 = vld [vmem:[%s1 + $0x2f4] sm:$0xf]
    %v221 = vld [vmem:[%s1 + $0x2f8] sm:$0xf]
    %v222 = vld [vmem:[%s1 + $0x2fc] sm:$0xf]
    %v223 = vld [vmem:[%s1 + $0x300] sm:$0xf]
    %v224 = vld [vmem:[%s1 + $0x304] sm:$0xf]
    %v225 = vld [vmem:[%s1 + $0x308] sm:$0xf]
    %v226 = vld [vmem:[%s1 + $0x30c] sm:$0xf]
    %v227 = vld [vmem:[%s1 + $0x310] sm:$0xf]
    %v228 = vld [vmem:[%s1 + $0x314] sm:$0xf]
    %v229 = vld [vmem:[%s1 + $0x318] sm:$0xf]
    %v230 = vld [vmem:[%s1 + $0x31c] sm:$0xf]
    %v231 = vld [vmem:[%s1 + $0x320] sm:$0xf]
    %v232 = vld [vmem:[%s1 + $0x324] sm:$0xf]
    %v233 = vld [vmem:[%s1 + $0x328] sm:$0xf]
    %v234 = vld [vmem:[%s1 + $0x32c] sm:$0xf]
    %v235 = vld [vmem:[%s1 + $0x330] sm:$0xf]
    %v236 = vld [vmem:[%s1 + $0x334] sm:$0xf]
    %v237 = vld [vmem:[%s1 + $0x338] sm:$0xf]
    %v238 = vld [vmem:[%s1 + $0x33c] sm:$0xf]
    %v239 = vld [vmem:[%s1 + $0x340] sm:$0xf]
    %v240 = vld [vmem:[%s1 + $0x344] sm:$0xf]
    %v241 = vld [vmem:[%s1 + $0x348] sm:$0xf]
    %v242 = vld [vmem:[%s1 + $0x34c] sm:$0xf]
    %v243 = vld [vmem:[%s1 + $0x350] sm:$0xf]
    %v244 = vld [vmem:[%s1 + $0x354] sm:$0xf]
    %v245 = vld [vmem:[%s1 + $0x358] sm:$0xf]
    %v246 = vld [vmem:[%s1 + $0x35c] sm:$0xf]
    %v247 = vld [vmem:[%s1 + $0x360] sm:$0xf]
    %v248 = vld [vmem:[%s1 + $0x364] sm:$0xf]
    %v249 = vld [vmem:[%s1 + $0x368] sm:$0xf]
    %v250 = vld [vmem:[%s1 + $0x36c] sm:$0xf]
    %v251 = vld [vmem:[%s1 + $0x370] sm:$0xf]
    %v252 = vld [vmem:[%s1 + $0x374] sm:$0xf]
    %v253 = vld [vmem:[%s1 + $0x378] sm:$0xf]
    %v254 = vld [vmem:[%s1 + $0x37c] sm:$0xf]
    %v255 = vld [vmem:[%s1 + $0x380] sm:$0xf]
    %v256 = vld [vmem:[%s1 + $0x384] sm:$0xf]
    %v257 = vld [vmem:[%s1 + $0x388] sm:$0xf]
    %v258 = vld [vmem:[%s1 + $0x38c] sm:$0xf]
    %v259 = vld [vmem:[%s1 + $0x390] sm:$0xf]
    %v260 = vld [vmem:[%s1 + $0x394] sm:$0xf]
    %v261 = vld [vmem:[%s1 + $0x398] sm:$0xf]
    %v262 = vld [vmem:[%s1 + $0x39c] sm:$0xf]
    %v263 = vld [vmem:[%s1 + $0x3a0] sm:$0xf]
    %v264 = vld [vmem:[%s1 + $0x3a4] sm:$0xf]
    %v265 = vld [vmem:[%s1 + $0x3a8] sm:$0xf]
    %v266 = vld [vmem:[%s1 + $0x3ac] sm:$0xf]
    %v267 = vld [vmem:[%s1 + $0x3b0] sm:$0xf]
    %v268 = vld [vmem:[%s1 + $0x3b4] sm:$0xf]
    %v269 = vld [vmem:[%s1 + $0x3b8] sm:$0xf]
    %v270 = vld [vmem:[%s1 + $0x3bc] sm:$0xf]
    %v271 = vld [vmem:[%s1 + $0x3c0] sm:$0xf]
    %v272 = vld [vmem:[%s1 + $0x3c4] sm:$0xf]
    %v273 = vld [vmem:[%s1 + $0x3c8] sm:$0xf]
    %v274 = vld [vmem:[%s1 + $0x3cc] sm:$0xf]
    %v275 = vld [vmem:[%s1 + $0x3d0] sm:$0xf]
    %v276 = vld [vmem:[%s1 + $0x3d4] sm:$0xf]
    %v277 = vld [vmem:[%s1 + $0x3d8] sm:$0xf]
    %v278 = vld [vmem:[%s1 + $0x3dc] sm:$0xf]
    %v279 = vld [vmem:[%s1 + $0x3e0] sm:$0xf]
    %v280 = vld [vmem:[%s1 + $0x3e4] sm:$0xf]
    %v281 = vld [vmem:[%s1 + $0x3e8] sm:$0xf]
    %v282 = vld [vmem:[%s1 + $0x3ec] sm:$0xf]
    %v283 = vld [vmem:[%s1 + $0x3f0] sm:$0xf]
    %v284 = vld [vmem:[%s1 + $0x3f4] sm:$0xf]
    %v285 = vld [vmem:[%s1 + $0x3f8] sm:$0xf]
    %v286 = vld [vmem:[%s1 + $0x3fc] sm:$0xf]
    %v287 = vld [vmem:[%s1 + $0x400] sm:$0xf]
    %v288 = vld [vmem:[%s1 + $0x404] sm:$0xf]
    %v289 = vld [vmem:[%s1 + $0x408] sm:$0xf]
    %v290 = vld [vmem:[%s1 + $0x40c] sm:$0xf]
    %v291 = vld [vmem:[%s1 + $0x410] sm:$0xf]
    %v292 = vld [vmem:[%s1 + $0x414] sm:$0xf]
    %v293 = vld [vmem:[%s1 + $0x418] sm:$0xf]
    %v294 = vld [vmem:[%s1 + $0x41c] sm:$0xf]
    %v295 = vld [vmem:[%s1 + $0x420] sm:$0xf]
    %v296 = vld [vmem:[%s1 + $0x424] sm:$0xf]
    %v297 = vld [vmem:[%s1 + $0x428] sm:$0xf]
    %v298 = vld [vmem:[%s1 + $0x42c] sm:$0xf]
    %v299 = vld [vmem:[%s1 + $0x430] sm:$0xf]
    %v300 = vld [vmem:[%s1 + $0x434] sm:$0xf]
    %v301 = vld [vmem:[%s1 + $0x438] sm:$0xf]
    %v302 = vld [vmem:[%s1 + $0x43c] sm:$0xf]
    %v303 = vld [vmem:[%s1 + $0x440] sm:$0xf]
    %v304 = vld [vmem:[%s1 + $0x444] sm:$0xf]
    %v305 = vld [vmem:[%s1 + $0x448] sm:$0xf]
    %v306 = vld [vmem:[%s1 + $0x44c] sm:$0xf]
    %v307 = vld [vmem:[%s1 + $0x450] sm:$0xf]
    %v308 = vld [vmem:[%s1 + $0x454] sm:$0xf]
    %v309 = vld [vmem:[%s1 + $0x458] sm:$0xf]
    %v310 = vld [vmem:[%s1 + $0x45c] sm:$0xf]
    %v311 = vld [vmem:[%s1 + $0x460] sm:$0xf]
    %v312 = vld [vmem:[%s1 + $0x464] sm:$0xf]
    %v313 = vld [vmem:[%s1 + $0x468] sm:$0xf]
    %v314 = vld [vmem:[%s1 + $0x46c] sm:$0xf]
    %v315 = vld [vmem:[%s1 + $0x470] sm:$0xf]
    %v316 = vld [vmem:[%s1 + $0x474] sm:$0xf]
    %v317 = vld [vmem:[%s1 + $0x478] sm:$0xf]
    %v318 = vld [vmem:[%s1 + $0x47c] sm:$0xf]
    %v319 = vld [vmem:[%s1 + $0x480] sm:$0xf]
    %v320 = vld [vmem:[%s1 + $0x484] sm:$0xf]
    %v321 = vld [vmem:[%s1 + $0x488] sm:$0xf]
    %v322 = vld [vmem:[%s1 + $0x48c] sm:$0xf]
    %v323 = vld [vmem:[%s1 + $0x490] sm:$0xf]
    %v324 = vld [vmem:[%s1 + $0x494] sm:$0xf]
    %v325 = vld [vmem:[%s1 + $0x498] sm:$0xf]
    %v326 = vld [vmem:[%s1 + $0x49c] sm:$0xf]
    %v327 = vld [vmem:[%s1 + $0x4a0] sm:$0xf]
    %v328 = vld [vmem:[%s1 + $0x4a4] sm:$0xf]
    %v329 = vld [vmem:[%s1 + $0x4a8] sm:$0xf]
    %v330 = vld [vmem:[%s1 + $0x4ac] sm:$0xf]
    %v331 = vld [vmem:[%s1 + $0x4b0] sm:$0xf]
    %v332 = vld [vmem:[%s1 + $0x4b4] sm:$0xf]
    %v333 = vld [vmem:[%s1 + $0x4b8] sm:$0xf]
    %v334 = vld [vmem:[%s1 + $0x4bc] sm:$0xf]
    %v335 = vld [vmem:[%s1 + $0x4c0] sm:$0xf]
    %v336 = vld [vmem:[%s1 + $0x4c4] sm:$0xf]
    %v337 = vld [vmem:[%s1 + $0x4c8] sm:$0xf]
    %v338 = vld [vmem:[%s1 + $0x4cc] sm:$0xf]
    %v339 = vld [vmem:[%s1 + $0x4d0] sm:$0xf]
    %v340 = vld [vmem:[%s1 + $0x4d4] sm:$0xf]
    %v341 = vld [vmem:[%s1 + $0x4d8] sm:$0xf]
    %v342 = vld [vmem:[%s1 + $0x4dc] sm:$0xf]
    %v343 = vld [vmem:[%s1 + $0x4e0] sm:$0xf]
    %v344 = vld [vmem:[%s1 + $0x4e4] sm:$0xf]
    %v345 = vld [vmem:[%s1 + $0x4e8] sm:$0xf]
    %v346 = vld [vmem:[%s1 + $0x4ec] sm:$0xf]
    %v347 = vld [vmem:[%s1 + $0x4f0] sm:$0xf]
    %v348 = vld [vmem:[%s1 + $0x4f4] sm:$0xf]
    %v349 = vld [vmem:[%s1 + $0x4f8] sm:$0xf]
    %v350 = vld [vmem:[%s1 + $0x4fc] sm:$0xf]
    %v351 = vld [vmem:[%s1 + $0x500] sm:$0xf]
    %v352 = vld [vmem:[%s1 + $0x504] sm:$0xf]
    %v353 = vld [vmem:[%s1 + $0x508] sm:$0xf]
    %v354 = vld [vmem:[%s1 + $0x50c] sm:$0xf]
    %v355 = vld [vmem:[%s1 + $0x510] sm:$0xf]
    %v356 = vld [vmem:[%s1 + $0x514] sm:$0xf]
    %v357 = vld [vmem:[%s1 + $0x518] sm:$0xf]
    %v358 = vld [vmem:[%s1 + $0x51c] sm:$0xf]
    %v359 = vld [vmem:[%s1 + $0x520] sm:$0xf]
    %v360 = vld [vmem:[%s1 + $0x524] sm:$0xf]
    %v361 = vld [vmem:[%s1 + $0x528] sm:$0xf]
    %v362 = vld [vmem:[%s1 + $0x52c] sm:$0xf]
    %v363 = vld [vmem:[%s1 + $0x530] sm:$0xf]
    %v364 = vld [vmem:[%s1 + $0x534] sm:$0xf]
    %v365 = vld [vmem:[%s1 + $0x538] sm:$0xf]
    %v366 = vld [vmem:[%s1 + $0x53c] sm:$0xf]
    %v367 = vld [vmem:[%s1 + $0x540] sm:$0xf]
    %v368 = vld [vmem:[%s1 + $0x544] sm:$0xf]
    %v369 = vld [vmem:[%s1 + $0x548] sm:$0xf]
    %v370 = vld [vmem:[%s1 + $0x54c] sm:$0xf]
    %v371 = vld [vmem:[%s1 + $0x550] sm:$0xf]
    %v372 = vld [vmem:[%s1 + $0x554] sm:$0xf]
    %v373 = vld [vmem:[%s1 + $0x558] sm:$0xf]
    %v374 = vld [vmem:[%s1 + $0x55c] sm:$0xf]
    %v375 = vld [vmem:[%s1 + $0x560] sm:$0xf]
    %v376 = vld [vmem:[%s1 + $0x564] sm:$0xf]
    %v377 = vld [vmem:[%s1 + $0x568] sm:$0xf]
    %v378 = vld [vmem:[%s1 + $0x56c] sm:$0xf]
    %v379 = vld [vmem:[%s1 + $0x570] sm:$0xf]
    %v380 = vld [vmem:[%s1 + $0x574] sm:$0xf]
    %v381 = vld [vmem:[%s1 + $0x578] sm:$0xf]
    %v382 = vld [vmem:[%s1 + $0x57c] sm:$0xf]
    %v383 = vld [vmem:[%s1 + $0x580] sm:$0xf]
    %v384 = vld [vmem:[%s1 + $0x584] sm:$0xf]
    %v385 = vld [vmem:[%s1 + $0x588] sm:$0xf]
    %v386 = vld [vmem:[%s1 + $0x58c] sm:$0xf]
    %v387 = vld [vmem:[%s1 + $0x590] sm:$0xf]
    %v388 = vld [vmem:[%s1 + $0x594] sm:$0xf]
    %v389 = vld [vmem:[%s1 + $0x598] sm:$0xf]
    %v390 = vld [vmem:[%s1 + $0x59c] sm:$0xf]
    %v391 = vld [vmem:[%s1 + $0x5a0] sm:$0xf]
    %v392 = vld [vmem:[%s1 + $0x5a4] sm:$0xf]
    %v393 = vld [vmem:[%s1 + $0x5a8] sm:$0xf]
    %v394 = vld [vmem:[%s1 + $0x5ac] sm:$0xf]
    %v395 = vld [vmem:[%s1 + $0x5b0] sm:$0xf]
    %v396 = vld [vmem:[%s1 + $0x5b4] sm:$0xf]
    %v397 = vld [vmem:[%s1 + $0x5b8] sm:$0xf]
    %v398 = vld [vmem:[%s1 + $0x5bc] sm:$0xf]
    %v399 = vld [vmem:[%s1 + $0x5c0] sm:$0xf]
    %v400 = vld [vmem:[%s1 + $0x5c4] sm:$0xf]
    %v401 = vld [vmem:[%s1 + $0x5c8] sm:$0xf]
    %v402 = vld [vmem:[%s1 + $0x5cc] sm:$0xf]
    %v403 = vld [vmem:[%s1 + $0x5d0] sm:$0xf]
    %v404 = vld [vmem:[%s1 + $0x5d4] sm:$0xf]
    %v405 = vld [vmem:[%s1 + $0x5d8] sm:$0xf]
    %v406 = vld [vmem:[%s1 + $0x5dc] sm:$0xf]
    %v407 = vld [vmem:[%s1 + $0x5e0] sm:$0xf]
    %v408 = vld [vmem:[%s1 + $0x5e4] sm:$0xf]
    %v409 = vld [vmem:[%s1 + $0x5e8] sm:$0xf]
    %v410 = vld [vmem:[%s1 + $0x5ec] sm:$0xf]
    %v411 = vld [vmem:[%s1 + $0x5f0] sm:$0xf]
    %v412 = vld [vmem:[%s1 + $0x5f4] sm:$0xf]
    %v413 = vld [vmem:[%s1 + $0x5f8] sm:$0xf]
    %v414 = vld [vmem:[%s1 + $0x5fc] sm:$0xf]
    %v415 = vld [vmem:[%s1 + $0x600] sm:$0xf]
    %v416 = vld [vmem:[%s1 + $0x604] sm:$0xf]
    %v417 = vld [vmem:[%s1 + $0x608] sm:$0xf]
    %v418 = vld [vmem:[%s1 + $0x60c] sm:$0xf]
    %v419 = vld [vmem:[%s1 + $0x610] sm:$0xf]
    %v420 = vld [vmem:[%s1 + $0x614] sm:$0xf]
    %v421 = vld [vmem:[%s1 + $0x618] sm:$0xf]
    %v422 = vld [vmem:[%s1 + $0x61c] sm:$0xf]
    %v423 = vld [vmem:[%s1 + $0x620] sm:$0xf]
    %v424 = vld [vmem:[%s1 + $0x624] sm:$0xf]
    %v425 = vld [vmem:[%s1 + $0x628] sm:$0xf]
    %v426 = vld [vmem:[%s1 + $0x62c] sm:$0xf]
    %v427 = vld [vmem:[%s1 + $0x630] sm:$0xf]
    %v428 = vld [vmem:[%s1 + $0x634] sm:$0xf]
    %v429 = vld [vmem:[%s1 + $0x638] sm:$0xf]
    %v430 = vld [vmem:[%s1 + $0x63c] sm:$0xf]
    %v431 = vld [vmem:[%s2] sm:$0x1]
    %v433 = vperm.slane %v431, 0
    %436 = vst [vmem:[#allocation1] ss:$9 sm:$0xff] %v27
    %v437 = vld [vmem:[#allocation1] sm:$0xff]
    %v438 = vld [vmem:[#allocation1 + $0x9] sm:$0xff]
    %v439 = vld [vmem:[#allocation1 + $0x12] sm:$0xff]
    %v440 = vld [vmem:[#allocation1 + $0x1b] sm:$0xff]
    %v441 = vld [vmem:[#allocation1 + $0x24] sm:$0xff]
    %v442 = vld [vmem:[#allocation1 + $0x2d] sm:$0xff]
    %v443 = vld [vmem:[#allocation1 + $0x36] sm:$0xff]
    %v444 = vld [vmem:[#allocation1 + $0x3f] sm:$0xff]
    %446 = vst [vmem:[#allocation1] ss:$9 sm:$0xff] %v28
    %v447 = vld [vmem:[#allocation1] sm:$0xff]
    %v448 = vld [vmem:[#allocation1 + $0x9] sm:$0xff]
    %v449 = vld [vmem:[#allocation1 + $0x12] sm:$0xff]
    %v450 = vld [vmem:[#allocation1 + $0x1b] sm:$0xff]
    %v451 = vld [vmem:[#allocation1 + $0x24] sm:$0xff]
    %v452 = vld [vmem:[#allocation1 + $0x2d] sm:$0xff]
    %v453 = vld [vmem:[#allocation1 + $0x36] sm:$0xff]
    %v454 = vld [vmem:[#allocation1 + $0x3f] sm:$0xff]
    %456 = vst [vmem:[#allocation1] ss:$9 sm:$0xff] %v29
    %v457 = vld [vmem:[#allocation1] sm:$0xff]
    %v458 = vld [vmem:[#allocation1 + $0x9] sm:$0xff]
    %v459 = vld [vmem:[#allocation1 + $0x12] sm:$0xff]
    %v460 = vld [vmem:[#allocation1 + $0x1b] sm:$0xff]
    %v461 = vld [vmem:[#allocation1 + $0x24] sm:$0xff]
    %v462 = vld [vmem:[#allocation1 + $0x2d] sm:$0xff]
    %v463 = vld [vmem:[#allocation1 + $0x36] sm:$0xff]
    %v464 = vld [vmem:[#allocation1 + $0x3f] sm:$0xff]
    %466 = vst [vmem:[#allocation1] ss:$9 sm:$0xff] %v30
    %v467 = vld [vmem:[#allocation1] sm:$0xff]
    %v893 = vunpack.c.l.b16 %v31
    %v894 = vunpack.c.l.b16 %v32
    %v895 = vunpack.c.l.b16 %v33
    %v896 = vunpack.c.l.b16 %v34
    %v897 = vunpack.c.l.b16 %v35
    %v898 = vunpack.c.l.b16 %v36
    %v899 = vunpack.c.l.b16 %v37
    %v900 = vunpack.c.l.b16 %v38
    %v901 = vunpack.c.l.b16 %v39
    %v902 = vunpack.c.l.b16 %v40
    %v903 = vunpack.c.l.b16 %v41
    %v904 = vunpack.c.l.b16 %v42
    %v905 = vunpack.c.l.b16 %v43
    %v906 = vunpack.c.l.b16 %v44
    %v907 = vunpack.c.l.b16 %v45
    %v908 = vunpack.c.l.b16 %v46
    %v909 = vunpack.c.l.b16 %v47
    %v910 = vunpack.c.l.b16 %v48
    %v911 = vunpack.c.l.b16 %v49
    %v912 = vunpack.c.l.b16 %v50
    %v913 = vunpack.c.l.b16 %v51
    %v914 = vunpack.c.l.b16 %v52
    %v915 = vunpack.c.l.b16 %v53
    %v916 = vunpack.c.l.b16 %v54
    %v917 = vunpack.c.l.b16 %v55
    %v918 = vunpack.c.l.b16 %v56
    %v919 = vunpack.c.l.b16 %v57
    %v920 = vunpack.c.l.b16 %v58
    %v921 = vunpack.c.l.b16 %v59
    %v922 = vunpack.c.l.b16 %v60
    %v923 = vunpack.c.l.b16 %v61
    %v924 = vunpack.c.l.b16 %v62
    %v925 = vunpack.c.l.b16 %v63
    %v926 = vunpack.c.l.b16 %v64
    %v927 = vunpack.c.l.b16 %v65
    %v928 = vunpack.c.l.b16 %v66
    %v929 = vunpack.c.l.b16 %v67
    %v930 = vunpack.c.l.b16 %v68
    %v931 = vunpack.c.l.b16 %v69
    %v932 = vunpack.c.l.b16 %v70
    %v933 = vunpack.c.l.b16 %v71
    %v934 = vunpack.c.l.b16 %v72
    %v935 = vunpack.c.l.b16 %v73
    %v936 = vunpack.c.l.b16 %v74
    %v937 = vunpack.c.l.b16 %v75
    %v938 = vunpack.c.l.b16 %v76
    %v939 = vunpack.c.l.b16 %v77
    %v940 = vunpack.c.l.b16 %v78
    %v941 = vunpack.c.l.b16 %v79
    %v942 = vunpack.c.l.b16 %v80
    %v943 = vunpack.c.l.b16 %v81
    %v944 = vunpack.c.l.b16 %v82
    %v945 = vunpack.c.l.b16 %v83
    %v946 = vunpack.c.l.b16 %v84
    %v947 = vunpack.c.l.b16 %v85
    %v948 = vunpack.c.l.b16 %v86
    %v949 = vunpack.c.l.b16 %v87
    %v950 = vunpack.c.l.b16 %v88
    %v951 = vunpack.c.l.b16 %v89
    %v952 = vunpack.c.l.b16 %v90
    %v953 = vunpack.c.l.b16 %v91
    %v954 = vunpack.c.l.b16 %v92
    %v955 = vunpack.c.l.b16 %v93
    %v956 = vunpack.c.l.b16 %v94
    %v957 = vunpack.c.l.b16 %v95
    %v958 = vunpack.c.l.b16 %v96
    %v959 = vunpack.c.l.b16 %v97
    %v960 = vunpack.c.l.b16 %v98
    %v961 = vunpack.c.l.b16 %v99
    %v962 = vunpack.c.l.b16 %v100
    %v963 = vunpack.c.l.b16 %v101
    %v964 = vunpack.c.l.b16 %v102
    %v965 = vunpack.c.l.b16 %v103
    %v966 = vunpack.c.l.b16 %v104
    %v967 = vunpack.c.l.b16 %v105
    %v968 = vunpack.c.l.b16 %v106
    %v969 = vunpack.c.l.b16 %v107
    %v970 = vunpack.c.l.b16 %v108
    %v971 = vunpack.c.l.b16 %v109
    %v972 = vunpack.c.l.b16 %v110
    %v973 = vunpack.c.l.b16 %v111
    %v974 = vunpack.c.l.b16 %v112
    %v975 = vunpack.c.l.b16 %v113
    %v976 = vunpack.c.l.b16 %v114
    %v977 = vunpack.c.l.b16 %v115
    %v978 = vunpack.c.l.b16 %v116
    %v979 = vunpack.c.l.b16 %v117
    %v980 = vunpack.c.l.b16 %v118
    %v981 = vunpack.c.l.b16 %v119
    %v982 = vunpack.c.l.b16 %v120
    %v983 = vunpack.c.l.b16 %v121
    %v984 = vunpack.c.l.b16 %v122
    %v985 = vunpack.c.l.b16 %v123
    %v986 = vunpack.c.l.b16 %v124
    %v987 = vunpack.c.l.b16 %v125
    %v988 = vunpack.c.l.b16 %v126
    %v989 = vunpack.c.l.b16 %v127
    %v990 = vunpack.c.l.b16 %v128
    %v991 = vunpack.c.l.b16 %v129
    %v992 = vunpack.c.l.b16 %v130
    %v993 = vunpack.c.l.b16 %v131
    %v994 = vunpack.c.l.b16 %v132
    %v995 = vunpack.c.l.b16 %v133
    %v996 = vunpack.c.l.b16 %v134
    %v997 = vunpack.c.l.b16 %v135
    %v998 = vunpack.c.l.b16 %v136
    %v999 = vunpack.c.l.b16 %v137
    %v1000 = vunpack.c.l.b16 %v138
    %v1001 = vunpack.c.l.b16 %v139
    %v1002 = vunpack.c.l.b16 %v140
    %v1003 = vunpack.c.l.b16 %v141
    %v1004 = vunpack.c.l.b16 %v142
    %v1005 = vunpack.c.l.b16 %v143
    %v1006 = vunpack.c.l.b16 %v144
    %v1007 = vunpack.c.l.b16 %v145
    %v1008 = vunpack.c.l.b16 %v146
    %v1009 = vunpack.c.l.b16 %v147
    %v1010 = vunpack.c.l.b16 %v148
    %v1011 = vunpack.c.l.b16 %v149
    %v1012 = vunpack.c.l.b16 %v150
    %v1013 = vunpack.c.l.b16 %v151
    %v1014 = vunpack.c.l.b16 %v152
    %v1015 = vunpack.c.l.b16 %v153
    %v1016 = vunpack.c.l.b16 %v154
    %v1017 = vunpack.c.l.b16 %v155
    %v1018 = vunpack.c.l.b16 %v156
    %v1019 = vunpack.c.l.b16 %v157
    %v1020 = vunpack.c.l.b16 %v158
    %v1021 = vunpack.c.l.b16 %v159
    %v1022 = vunpack.c.l.b16 %v160
    %v1023 = vunpack.c.l.b16 %v161
    %v1024 = vunpack.c.l.b16 %v162
    %v1025 = vunpack.c.l.b16 %v163
    %v1026 = vunpack.c.l.b16 %v164
    %v1027 = vunpack.c.l.b16 %v165
    %v1028 = vunpack.c.l.b16 %v166
    %v1029 = vunpack.c.l.b16 %v167
    %v1030 = vunpack.c.l.b16 %v168
    %v1031 = vunpack.c.l.b16 %v169
    %v1032 = vunpack.c.l.b16 %v170
    %v1033 = vunpack.c.l.b16 %v171
    %v1034 = vunpack.c.l.b16 %v172
    %v1035 = vunpack.c.l.b16 %v173
    %v1036 = vunpack.c.l.b16 %v174
    %v1037 = vunpack.c.l.b16 %v175
    %v1038 = vunpack.c.l.b16 %v176
    %v1039 = vunpack.c.l.b16 %v177
    %v1040 = vunpack.c.l.b16 %v178
    %v1041 = vunpack.c.l.b16 %v179
    %v1042 = vunpack.c.l.b16 %v180
    %v1043 = vunpack.c.l.b16 %v181
    %v1044 = vunpack.c.l.b16 %v182
    %v1045 = vunpack.c.l.b16 %v183
    %v1046 = vunpack.c.l.b16 %v184
    %v1047 = vunpack.c.l.b16 %v185
    %v1048 = vunpack.c.l.b16 %v186
    %v1049 = vunpack.c.l.b16 %v187
    %v1050 = vunpack.c.l.b16 %v188
    %v1051 = vunpack.c.l.b16 %v189
    %v1052 = vunpack.c.l.b16 %v190
    %v1053 = vunpack.c.l.b16 %v191
    %v1054 = vunpack.c.l.b16 %v192
    %v1055 = vunpack.c.l.b16 %v193
    %v1056 = vunpack.c.l.b16 %v194
    %v1057 = vunpack.c.l.b16 %v195
    %v1058 = vunpack.c.l.b16 %v196
    %v1059 = vunpack.c.l.b16 %v197
    %v1060 = vunpack.c.l.b16 %v198
    %v1061 = vunpack.c.l.b16 %v199
    %v1062 = vunpack.c.l.b16 %v200
    %v1063 = vunpack.c.l.b16 %v201
    %v1064 = vunpack.c.l.b16 %v202
    %v1065 = vunpack.c.l.b16 %v203
    %v1066 = vunpack.c.l.b16 %v204
    %v1067 = vunpack.c.l.b16 %v205
    %v1068 = vunpack.c.l.b16 %v206
    %v1069 = vunpack.c.l.b16 %v207
    %v1070 = vunpack.c.l.b16 %v208
    %v1071 = vunpack.c.l.b16 %v209
    %v1072 = vunpack.c.l.b16 %v210
    %v1073 = vunpack.c.l.b16 %v211
    %v1074 = vunpack.c.l.b16 %v212
    %v1075 = vunpack.c.l.b16 %v213
    %v1076 = vunpack.c.l.b16 %v214
    %v1077 = vunpack.c.l.b16 %v215
    %v1078 = vunpack.c.l.b16 %v216
    %v1079 = vunpack.c.l.b16 %v217
    %v1080 = vunpack.c.l.b16 %v218
    %v1081 = vunpack.c.l.b16 %v219
    %v1082 = vunpack.c.l.b16 %v220
    %v1083 = vunpack.c.l.b16 %v221
    %v1084 = vunpack.c.l.b16 %v222
    %v1085 = vunpack.c.l.b16 %v223
    %v1086 = vunpack.c.l.b16 %v224
    %v1087 = vunpack.c.l.b16 %v225
    %v1088 = vunpack.c.l.b16 %v226
    %v1089 = vunpack.c.l.b16 %v227
    %v1090 = vunpack.c.l.b16 %v228
    %v1091 = vunpack.c.l.b16 %v229
    %v1092 = vunpack.c.l.b16 %v230
    %v1093 = vunpack.c.l.b16 %v231
    %v1094 = vunpack.c.l.b16 %v232
    %v1095 = vunpack.c.l.b16 %v233
    %v1096 = vunpack.c.l.b16 %v234
    %v1097 = vunpack.c.l.b16 %v235
    %v1098 = vunpack.c.l.b16 %v236
    %v1099 = vunpack.c.l.b16 %v237
    %v1100 = vunpack.c.l.b16 %v238
    %v1101 = vunpack.c.l.b16 %v239
    %v1102 = vunpack.c.l.b16 %v240
    %v1103 = vunpack.c.l.b16 %v241
    %v1104 = vunpack.c.l.b16 %v242
    %v1105 = vunpack.c.l.b16 %v243
    %v1106 = vunpack.c.l.b16 %v244
    %v1107 = vunpack.c.l.b16 %v245
    %v1108 = vunpack.c.l.b16 %v246
    %v1109 = vunpack.c.l.b16 %v247
    %v1110 = vunpack.c.l.b16 %v248
    %v1111 = vunpack.c.l.b16 %v249
    %v1112 = vunpack.c.l.b16 %v250
    %v1113 = vunpack.c.l.b16 %v251
    %v1114 = vunpack.c.l.b16 %v252
    %v1115 = vunpack.c.l.b16 %v253
    %v1116 = vunpack.c.l.b16 %v254
    %v1117 = vunpack.c.l.b16 %v255
    %v1118 = vunpack.c.l.b16 %v256
    %v1119 = vunpack.c.l.b16 %v257
    %v1120 = vunpack.c.l.b16 %v258
    %v1121 = vunpack.c.l.b16 %v259
    %v1122 = vunpack.c.l.b16 %v260
    %v1123 = vunpack.c.l.b16 %v261
    %v1124 = vunpack.c.l.b16 %v262
    %v1125 = vunpack.c.l.b16 %v263
    %v1126 = vunpack.c.l.b16 %v264
    %v1127 = vunpack.c.l.b16 %v265
    %v1128 = vunpack.c.l.b16 %v266
    %v1129 = vunpack.c.l.b16 %v267
    %v1130 = vunpack.c.l.b16 %v268
    %v1131 = vunpack.c.l.b16 %v269
    %v1132 = vunpack.c.l.b16 %v270
    %v1133 = vunpack.c.l.b16 %v271
    %v1134 = vunpack.c.l.b16 %v272
    %v1135 = vunpack.c.l.b16 %v273
    %v1136 = vunpack.c.l.b16 %v274
    %v1137 = vunpack.c.l.b16 %v275
    %v1138 = vunpack.c.l.b16 %v276
    %v1139 = vunpack.c.l.b16 %v277
    %v1140 = vunpack.c.l.b16 %v278
    %v1141 = vunpack.c.l.b16 %v279
    %v1142 = vunpack.c.l.b16 %v280
    %v1143 = vunpack.c.l.b16 %v281
    %v1144 = vunpack.c.l.b16 %v282
    %v1145 = vunpack.c.l.b16 %v283
    %v1146 = vunpack.c.l.b16 %v284
    %v1147 = vunpack.c.l.b16 %v285
    %v1148 = vunpack.c.l.b16 %v286
    %v1149 = vunpack.c.l.b16 %v287
    %v1150 = vunpack.c.l.b16 %v288
    %v1151 = vunpack.c.l.b16 %v289
    %v1152 = vunpack.c.l.b16 %v290
    %v1153 = vunpack.c.l.b16 %v291
    %v1154 = vunpack.c.l.b16 %v292
    %v1155 = vunpack.c.l.b16 %v293
    %v1156 = vunpack.c.l.b16 %v294
    %v1157 = vunpack.c.l.b16 %v295
    %v1158 = vunpack.c.l.b16 %v296
    %v1159 = vunpack.c.l.b16 %v297
    %v1160 = vunpack.c.l.b16 %v298
    %v1161 = vunpack.c.l.b16 %v299
    %v1162 = vunpack.c.l.b16 %v300
    %v1163 = vunpack.c.l.b16 %v301
    %v1164 = vunpack.c.l.b16 %v302
    %v1165 = vunpack.c.l.b16 %v303
    %v1166 = vunpack.c.l.b16 %v304
    %v1167 = vunpack.c.l.b16 %v305
    %v1168 = vunpack.c.l.b16 %v306
    %v1169 = vunpack.c.l.b16 %v307
    %v1170 = vunpack.c.l.b16 %v308
    %v1171 = vunpack.c.l.b16 %v309
    %v1172 = vunpack.c.l.b16 %v310
    %v1173 = vunpack.c.l.b16 %v311
    %v1174 = vunpack.c.l.b16 %v312
    %v1175 = vunpack.c.l.b16 %v313
    %v1176 = vunpack.c.l.b16 %v314
    %v1177 = vunpack.c.l.b16 %v315
    %v1178 = vunpack.c.l.b16 %v316
    %v1179 = vunpack.c.l.b16 %v317
    %v1180 = vunpack.c.l.b16 %v318
    %v1181 = vunpack.c.l.b16 %v319
    %v1182 = vunpack.c.l.b16 %v320
    %v1183 = vunpack.c.l.b16 %v321
    %v1184 = vunpack.c.l.b16 %v322
    %v1185 = vunpack.c.l.b16 %v323
    %v1186 = vunpack.c.l.b16 %v324
    %v1187 = vunpack.c.l.b16 %v325
    %v1188 = vunpack.c.l.b16 %v326
    %v1189 = vunpack.c.l.b16 %v327
    %v1190 = vunpack.c.l.b16 %v328
    %v1191 = vunpack.c.l.b16 %v329
    %v1192 = vunpack.c.l.b16 %v330
    %v1193 = vunpack.c.l.b16 %v331
    %v1194 = vunpack.c.l.b16 %v332
    %v1195 = vunpack.c.l.b16 %v333
    %v1196 = vunpack.c.l.b16 %v334
    %v1197 = vunpack.c.l.b16 %v335
    %v1198 = vunpack.c.l.b16 %v336
    %v1199 = vunpack.c.l.b16 %v337
    %v1200 = vunpack.c.l.b16 %v338
    %v1201 = vunpack.c.l.b16 %v339
    %v1202 = vunpack.c.l.b16 %v340
    %v1203 = vunpack.c.l.b16 %v341
    %v1204 = vunpack.c.l.b16 %v342
    %v1205 = vunpack.c.l.b16 %v343
    %v1206 = vunpack.c.l.b16 %v344
    %v1207 = vunpack.c.l.b16 %v345
    %v1208 = vunpack.c.l.b16 %v346
    %v1209 = vunpack.c.l.b16 %v347
    %v1210 = vunpack.c.l.b16 %v348
    %v1211 = vunpack.c.l.b16 %v349
    %v1212 = vunpack.c.l.b16 %v350
    %v1213 = vunpack.c.l.b16 %v351
    %v1214 = vunpack.c.l.b16 %v352
    %v1215 = vunpack.c.l.b16 %v353
    %v1216 = vunpack.c.l.b16 %v354
    %v1217 = vunpack.c.l.b16 %v355
    %v1218 = vunpack.c.l.b16 %v356
    %v1219 = vunpack.c.l.b16 %v357
    %v1220 = vunpack.c.l.b16 %v358
    %v1221 = vunpack.c.l.b16 %v359
    %v1222 = vunpack.c.l.b16 %v360
    %v1223 = vunpack.c.l.b16 %v361
    %v1224 = vunpack.c.l.b16 %v362
    %v1225 = vunpack.c.l.b16 %v363
    %v1226 = vunpack.c.l.b16 %v364
    %v1227 = vunpack.c.l.b16 %v365
    %v1228 = vunpack.c.l.b16 %v366
    %v1229 = vunpack.c.l.b16 %v367
    %v1230 = vunpack.c.l.b16 %v368
    %v1231 = vunpack.c.l.b16 %v369
    %v1232 = vunpack.c.l.b16 %v370
    %v1233 = vunpack.c.l.b16 %v371
    %v1234 = vunpack.c.l.b16 %v372
    %v1235 = vunpack.c.l.b16 %v373
    %v1236 = vunpack.c.l.b16 %v374
    %v1237 = vunpack.c.l.b16 %v375
    %v1238 = vunpack.c.l.b16 %v376
    %v1239 = vunpack.c.l.b16 %v377
    %v1240 = vunpack.c.l.b16 %v378
    %v1241 = vunpack.c.l.b16 %v379
    %v1242 = vunpack.c.l.b16 %v380
    %v1243 = vunpack.c.l.b16 %v381
    %v1244 = vunpack.c.l.b16 %v382
    %v1245 = vunpack.c.l.b16 %v383
    %v1246 = vunpack.c.l.b16 %v384
    %v1247 = vunpack.c.l.b16 %v385
    %v1248 = vunpack.c.l.b16 %v386
    %v1249 = vunpack.c.l.b16 %v387
    %v1250 = vunpack.c.l.b16 %v388
    %v1251 = vunpack.c.l.b16 %v389
    %v1252 = vunpack.c.l.b16 %v390
    %v1253 = vunpack.c.l.b16 %v391
    %v1254 = vunpack.c.l.b16 %v392
    %v1255 = vunpack.c.l.b16 %v393
    %v1256 = vunpack.c.l.b16 %v394
    %v1257 = vunpack.c.l.b16 %v395
    %v1258 = vunpack.c.l.b16 %v396
    %v1259 = vunpack.c.l.b16 %v397
    %v1260 = vunpack.c.l.b16 %v398
    %v1261 = vunpack.c.l.b16 %v399
    %v1262 = vunpack.c.l.b16 %v400
    %v1263 = vunpack.c.l.b16 %v401
    %v1264 = vunpack.c.l.b16 %v402
    %v1265 = vunpack.c.l.b16 %v403
    %v1266 = vunpack.c.l.b16 %v404
    %v1267 = vunpack.c.l.b16 %v405
    %v1268 = vunpack.c.l.b16 %v406
    %v1269 = vunpack.c.l.b16 %v407
    %v1270 = vunpack.c.l.b16 %v408
    %v1271 = vunpack.c.l.b16 %v409
    %v1272 = vunpack.c.l.b16 %v410
    %v1273 = vunpack.c.l.b16 %v411
    %v1274 = vunpack.c.l.b16 %v412
    %v1275 = vunpack.c.l.b16 %v413
    %v1276 = vunpack.c.l.b16 %v414
    %v1277 = vunpack.c.l.b16 %v415
    %v1278 = vunpack.c.l.b16 %v416
    %v1279 = vunpack.c.l.b16 %v417
    %v1280 = vunpack.c.l.b16 %v418
    %v1281 = vunpack.c.l.b16 %v419
    %v1282 = vunpack.c.l.b16 %v420
    %v1283 = vunpack.c.l.b16 %v421
    %v1284 = vunpack.c.l.b16 %v422
    %v1285 = vunpack.c.l.b16 %v423
    %v1286 = vunpack.c.l.b16 %v424
    %v1287 = vunpack.c.l.b16 %v425
    %v1288 = vunpack.c.l.b16 %v426
    %v1289 = vunpack.c.l.b16 %v427
    %v1290 = vunpack.c.l.b16 %v428
    %v1291 = vunpack.c.l.b16 %v429
    %v1292 = vunpack.c.l.b16 %v430
    %v1293 = vpack.c.b16 %v894, %v893
    %v1294 = vpack.c.b16 %v896, %v895
    %v1295 = vpack.c.b16 %v898, %v897
    %v1296 = vpack.c.b16 %v900, %v899
    %v1297 = vpack.c.b16 %v902, %v901
    %v1298 = vpack.c.b16 %v904, %v903
    %v1299 = vpack.c.b16 %v906, %v905
    %v1300 = vpack.c.b16 %v908, %v907
    %v1301 = vpack.c.b16 %v910, %v909
    %v1302 = vpack.c.b16 %v912, %v911
    %v1303 = vpack.c.b16 %v914, %v913
    %v1304 = vpack.c.b16 %v916, %v915
    %v1305 = vpack.c.b16 %v918, %v917
    %v1306 = vpack.c.b16 %v920, %v919
    %v1307 = vpack.c.b16 %v922, %v921
    %v1308 = vpack.c.b16 %v924, %v923
    %v1309 = vpack.c.b16 %v926, %v925
    %v1310 = vpack.c.b16 %v928, %v927
    %v1311 = vpack.c.b16 %v930, %v929
    %v1312 = vpack.c.b16 %v932, %v931
    %v1313 = vpack.c.b16 %v934, %v933
    %v1314 = vpack.c.b16 %v936, %v935
    %v1315 = vpack.c.b16 %v938, %v937
    %v1316 = vpack.c.b16 %v940, %v939
    %v1317 = vpack.c.b16 %v942, %v941
    %v1318 = vpack.c.b16 %v944, %v943
    %v1319 = vpack.c.b16 %v946, %v945
    %v1320 = vpack.c.b16 %v948, %v947
    %v1321 = vpack.c.b16 %v950, %v949
    %v1322 = vpack.c.b16 %v952, %v951
    %v1323 = vpack.c.b16 %v954, %v953
    %v1324 = vpack.c.b16 %v956, %v955
    %v1325 = vpack.c.b16 %v958, %v957
    %v1326 = vpack.c.b16 %v960, %v959
    %v1327 = vpack.c.b16 %v962, %v961
    %v1328 = vpack.c.b16 %v964, %v963
    %v1329 = vpack.c.b16 %v966, %v965
    %v1330 = vpack.c.b16 %v968, %v967
    %v1331 = vpack.c.b16 %v970, %v969
    %v1332 = vpack.c.b16 %v972, %v971
    %v1333 = vpack.c.b16 %v974, %v973
    %v1334 = vpack.c.b16 %v976, %v975
    %v1335 = vpack.c.b16 %v978, %v977
    %v1336 = vpack.c.b16 %v980, %v979
    %v1337 = vpack.c.b16 %v982, %v981
    %v1338 = vpack.c.b16 %v984, %v983
    %v1339 = vpack.c.b16 %v986, %v985
    %v1340 = vpack.c.b16 %v988, %v987
    %v1341 = vpack.c.b16 %v990, %v989
    %v1342 = vpack.c.b16 %v992, %v991
    %v1343 = vpack.c.b16 %v994, %v993
    %v1344 = vpack.c.b16 %v996, %v995
    %v1345 = vpack.c.b16 %v998, %v997
    %v1346 = vpack.c.b16 %v1000, %v999
    %v1347 = vpack.c.b16 %v1002, %v1001
    %v1348 = vpack.c.b16 %v1004, %v1003
    %v1349 = vpack.c.b16 %v1006, %v1005
    %v1350 = vpack.c.b16 %v1008, %v1007
    %v1351 = vpack.c.b16 %v1010, %v1009
    %v1352 = vpack.c.b16 %v1012, %v1011
    %v1353 = vpack.c.b16 %v1014, %v1013
    %v1354 = vpack.c.b16 %v1016, %v1015
    %v1355 = vpack.c.b16 %v1018, %v1017
    %v1356 = vpack.c.b16 %v1020, %v1019
    %v1357 = vpack.c.b16 %v1022, %v1021
    %v1358 = vpack.c.b16 %v1024, %v1023
    %v1359 = vpack.c.b16 %v1026, %v1025
    %v1360 = vpack.c.b16 %v1028, %v1027
    %v1361 = vpack.c.b16 %v1030, %v1029
    %v1362 = vpack.c.b16 %v1032, %v1031
    %v1363 = vpack.c.b16 %v1034, %v1033
    %v1364 = vpack.c.b16 %v1036, %v1035
    %v1365 = vpack.c.b16 %v1038, %v1037
    %v1366 = vpack.c.b16 %v1040, %v1039
    %v1367 = vpack.c.b16 %v1042, %v1041
    %v1368 = vpack.c.b16 %v1044, %v1043
    %v1369 = vpack.c.b16 %v1046, %v1045
    %v1370 = vpack.c.b16 %v1048, %v1047
    %v1371 = vpack.c.b16 %v1050, %v1049
    %v1372 = vpack.c.b16 %v1052, %v1051
    %v1373 = vpack.c.b16 %v1054, %v1053
    %v1374 = vpack.c.b16 %v1056, %v1055
    %v1375 = vpack.c.b16 %v1058, %v1057
    %v1376 = vpack.c.b16 %v1060, %v1059
    %v1377 = vpack.c.b16 %v1062, %v1061
    %v1378 = vpack.c.b16 %v1064, %v1063
    %v1379 = vpack.c.b16 %v1066, %v1065
    %v1380 = vpack.c.b16 %v1068, %v1067
    %v1381 = vpack.c.b16 %v1070, %v1069
    %v1382 = vpack.c.b16 %v1072, %v1071
    %v1383 = vpack.c.b16 %v1074, %v1073
    %v1384 = vpack.c.b16 %v1076, %v1075
    %v1385 = vpack.c.b16 %v1078, %v1077
    %v1386 = vpack.c.b16 %v1080, %v1079
    %v1387 = vpack.c.b16 %v1082, %v1081
    %v1388 = vpack.c.b16 %v1084, %v1083
    %v1389 = vpack.c.b16 %v1086, %v1085
    %v1390 = vpack.c.b16 %v1088, %v1087
    %v1391 = vpack.c.b16 %v1090, %v1089
    %v1392 = vpack.c.b16 %v1092, %v1091
    %v1393 = vpack.c.b16 %v1094, %v1093
    %v1394 = vpack.c.b16 %v1096, %v1095
    %v1395 = vpack.c.b16 %v1098, %v1097
    %v1396 = vpack.c.b16 %v1100, %v1099
    %v1397 = vpack.c.b16 %v1102, %v1101
    %v1398 = vpack.c.b16 %v1104, %v1103
    %v1399 = vpack.c.b16 %v1106, %v1105
    %v1400 = vpack.c.b16 %v1108, %v1107
    %v1401 = vpack.c.b16 %v1110, %v1109
    %v1402 = vpack.c.b16 %v1112, %v1111
    %v1403 = vpack.c.b16 %v1114, %v1113
    %v1404 = vpack.c.b16 %v1116, %v1115
    %v1405 = vpack.c.b16 %v1118, %v1117
    %v1406 = vpack.c.b16 %v1120, %v1119
    %v1407 = vpack.c.b16 %v1122, %v1121
    %v1408 = vpack.c.b16 %v1124, %v1123
    %v1409 = vpack.c.b16 %v1126, %v1125
    %v1410 = vpack.c.b16 %v1128, %v1127
    %v1411 = vpack.c.b16 %v1130, %v1129
    %v1412 = vpack.c.b16 %v1132, %v1131
    %v1413 = vpack.c.b16 %v1134, %v1133
    %v1414 = vpack.c.b16 %v1136, %v1135
    %v1415 = vpack.c.b16 %v1138, %v1137
    %v1416 = vpack.c.b16 %v1140, %v1139
    %v1417 = vpack.c.b16 %v1142, %v1141
    %v1418 = vpack.c.b16 %v1144, %v1143
    %v1419 = vpack.c.b16 %v1146, %v1145
    %v1420 = vpack.c.b16 %v1148, %v1147
    %v1421 = vpack.c.b16 %v1150, %v1149
    %v1422 = vpack.c.b16 %v1152, %v1151
    %v1423 = vpack.c.b16 %v1154, %v1153
    %v1424 = vpack.c.b16 %v1156, %v1155
    %v1425 = vpack.c.b16 %v1158, %v1157
    %v1426 = vpack.c.b16 %v1160, %v1159
    %v1427 = vpack.c.b16 %v1162, %v1161
    %v1428 = vpack.c.b16 %v1164, %v1163
    %v1429 = vpack.c.b16 %v1166, %v1165
    %v1430 = vpack.c.b16 %v1168, %v1167
    %v1431 = vpack.c.b16 %v1170, %v1169
    %v1432 = vpack.c.b16 %v1172, %v1171
    %v1433 = vpack.c.b16 %v1174, %v1173
    %v1434 = vpack.c.b16 %v1176, %v1175
    %v1435 = vpack.c.b16 %v1178, %v1177
    %v1436 = vpack.c.b16 %v1180, %v1179
    %v1437 = vpack.c.b16 %v1182, %v1181
    %v1438 = vpack.c.b16 %v1184, %v1183
    %v1439 = vpack.c.b16 %v1186, %v1185
    %v1440 = vpack.c.b16 %v1188, %v1187
    %v1441 = vpack.c.b16 %v1190, %v1189
    %v1442 = vpack.c.b16 %v1192, %v1191
    %v1443 = vpack.c.b16 %v1194, %v1193
    %v1444 = vpack.c.b16 %v1196, %v1195
    %v1445 = vpack.c.b16 %v1198, %v1197
    %v1446 = vpack.c.b16 %v1200, %v1199
    %v1447 = vpack.c.b16 %v1202, %v1201
    %v1448 = vpack.c.b16 %v1204, %v1203
    %v1449 = vpack.c.b16 %v1206, %v1205
    %v1450 = vpack.c.b16 %v1208, %v1207
    %v1451 = vpack.c.b16 %v1210, %v1209
    %v1452 = vpack.c.b16 %v1212, %v1211
    %v1453 = vpack.c.b16 %v1214, %v1213
    %v1454 = vpack.c.b16 %v1216, %v1215
    %v1455 = vpack.c.b16 %v1218, %v1217
    %v1456 = vpack.c.b16 %v1220, %v1219
    %v1457 = vpack.c.b16 %v1222, %v1221
    %v1458 = vpack.c.b16 %v1224, %v1223
    %v1459 = vpack.c.b16 %v1226, %v1225
    %v1460 = vpack.c.b16 %v1228, %v1227
    %v1461 = vpack.c.b16 %v1230, %v1229
    %v1462 = vpack.c.b16 %v1232, %v1231
    %v1463 = vpack.c.b16 %v1234, %v1233
    %v1464 = vpack.c.b16 %v1236, %v1235
    %v1465 = vpack.c.b16 %v1238, %v1237
    %v1466 = vpack.c.b16 %v1240, %v1239
    %v1467 = vpack.c.b16 %v1242, %v1241
    %v1468 = vpack.c.b16 %v1244, %v1243
    %v1469 = vpack.c.b16 %v1246, %v1245
    %v1470 = vpack.c.b16 %v1248, %v1247
    %v1471 = vpack.c.b16 %v1250, %v1249
    %v1472 = vpack.c.b16 %v1252, %v1251
    %v1473 = vpack.c.b16 %v1254, %v1253
    %v1474 = vpack.c.b16 %v1256, %v1255
    %v1475 = vpack.c.b16 %v1258, %v1257
    %v1476 = vpack.c.b16 %v1260, %v1259
    %v1477 = vpack.c.b16 %v1262, %v1261
    %v1478 = vpack.c.b16 %v1264, %v1263
    %v1479 = vpack.c.b16 %v1266, %v1265
    %v1480 = vpack.c.b16 %v1268, %v1267
    %v1481 = vpack.c.b16 %v1270, %v1269
    %v1482 = vpack.c.b16 %v1272, %v1271
    %v1483 = vpack.c.b16 %v1274, %v1273
    %v1484 = vpack.c.b16 %v1276, %v1275
    %v1485 = vpack.c.b16 %v1278, %v1277
    %v1486 = vpack.c.b16 %v1280, %v1279
    %v1487 = vpack.c.b16 %v1282, %v1281
    %v1488 = vpack.c.b16 %v1284, %v1283
    %v1489 = vpack.c.b16 %v1286, %v1285
    %v1490 = vpack.c.b16 %v1288, %v1287
    %v1491 = vpack.c.b16 %v1290, %v1289
    %v1492 = vpack.c.b16 %v1292, %v1291
    %1693 = vmatpush.bf16.msra.mxu0 %v1300
    %1694 = vmatpush.bf16.msra.mxu0 %v1299
    %1695 = vmatpush.bf16.msra.mxu0 %v1298
    %1696 = vmatpush.bf16.msra.mxu0 %v1297
    %1697 = vmatpush.bf16.msra.mxu0 %v1296
    %1698 = vmatpush.bf16.msra.mxu0 %v1295
    %1699 = vmatpush.bf16.msra.mxu0 %v1294
    %1700 = vmatpush.bf16.msra.mxu0 %v1293
    %1701 = vmatmul.bf16.gmra.mxu0 %v437
    %v1702 = vpop.f32.mrf.mxu0
    %v1703 = vadd.f32 %v433, %v1702
    %v1704 = vpop.f32.mrf.mxu0
    %1705 = vdwg.mxu0
    %1706 = vmatpush.bf16.msra.mxu0 %v1308
    %1707 = vmatpush.bf16.msra.mxu0 %v1307
    %1708 = vmatpush.bf16.msra.mxu0 %v1306
    %1709 = vmatpush.bf16.msra.mxu0 %v1305
    %1710 = vmatpush.bf16.msra.mxu0 %v1304
    %1711 = vmatpush.bf16.msra.mxu0 %v1303
    %1712 = vmatpush.bf16.msra.mxu0 %v1302
    %1713 = vmatpush.bf16.msra.mxu0 %v1301
    %1714 = vmatmul.bf16.gmra.mxu0 %v438
    %v1715 = vpop.f32.mrf.mxu0
    %v1716 = vadd.f32 %v1703, %v1715
    %v1717 = vpop.f32.mrf.mxu0
    %1718 = vdwg.mxu0
    %1719 = vmatpush.bf16.msra.mxu0 %v1316
    %1720 = vmatpush.bf16.msra.mxu0 %v1315
    %1721 = vmatpush.bf16.msra.mxu0 %v1314
    %1722 = vmatpush.bf16.msra.mxu0 %v1313
    %1723 = vmatpush.bf16.msra.mxu0 %v1312
    %1724 = vmatpush.bf16.msra.mxu0 %v1311
    %1725 = vmatpush.bf16.msra.mxu0 %v1310
    %1726 = vmatpush.bf16.msra.mxu0 %v1309
    %1727 = vmatmul.bf16.gmra.mxu0 %v439
    %v1728 = vpop.f32.mrf.mxu0
    %v1729 = vadd.f32 %v1716, %v1728
    %v1730 = vpop.f32.mrf.mxu0
    %1731 = vdwg.mxu0
    %1732 = vmatpush.bf16.msra.mxu0 %v1324
    %1733 = vmatpush.bf16.msra.mxu0 %v1323
    %1734 = vmatpush.bf16.msra.mxu0 %v1322
    %1735 = vmatpush.bf16.msra.mxu0 %v1321
    %1736 = vmatpush.bf16.msra.mxu0 %v1320
    %1737 = vmatpush.bf16.msra.mxu0 %v1319
    %1738 = vmatpush.bf16.msra.mxu0 %v1318
    %1739 = vmatpush.bf16.msra.mxu0 %v1317
    %1740 = vmatmul.bf16.gmra.mxu0 %v440
    %v1741 = vpop.f32.mrf.mxu0
    %v1742 = vadd.f32 %v1729, %v1741
    %v1743 = vpop.f32.mrf.mxu0
    %1744 = vdwg.mxu0
    %1745 = vmatpush.bf16.msra.mxu0 %v1332
    %1746 = vmatpush.bf16.msra.mxu0 %v1331
    %1747 = vmatpush.bf16.msra.mxu0 %v1330
    %1748 = vmatpush.bf16.msra.mxu0 %v1329
    %1749 = vmatpush.bf16.msra.mxu0 %v1328
    %1750 = vmatpush.bf16.msra.mxu0 %v1327
    %1751 = vmatpush.bf16.msra.mxu0 %v1326
    %1752 = vmatpush.bf16.msra.mxu0 %v1325
    %1753 = vmatmul.bf16.gmra.mxu0 %v441
    %v1754 = vpop.f32.mrf.mxu0
    %v1755 = vadd.f32 %v1742, %v1754
    %v1756 = vpop.f32.mrf.mxu0
    %1757 = vdwg.mxu0
    %1758 = vmatpush.bf16.msra.mxu0 %v1340
    %1759 = vmatpush.bf16.msra.mxu0 %v1339
    %1760 = vmatpush.bf16.msra.mxu0 %v1338
    %1761 = vmatpush.bf16.msra.mxu0 %v1337
    %1762 = vmatpush.bf16.msra.mxu0 %v1336
    %1763 = vmatpush.bf16.msra.mxu0 %v1335
    %1764 = vmatpush.bf16.msra.mxu0 %v1334
    %1765 = vmatpush.bf16.msra.mxu0 %v1333
    %1766 = vmatmul.bf16.gmra.mxu0 %v442
    %v1767 = vpop.f32.mrf.mxu0
    %v1768 = vadd.f32 %v1755, %v1767
    %v1769 = vpop.f32.mrf.mxu0
    %1770 = vdwg.mxu0
    %1771 = vmatpush.bf16.msra.mxu0 %v1348
    %1772 = vmatpush.bf16.msra.mxu0 %v1347
    %1773 = vmatpush.bf16.msra.mxu0 %v1346
    %1774 = vmatpush.bf16.msra.mxu0 %v1345
    %1775 = vmatpush.bf16.msra.mxu0 %v1344
    %1776 = vmatpush.bf16.msra.mxu0 %v1343
    %1777 = vmatpush.bf16.msra.mxu0 %v1342
    %1778 = vmatpush.bf16.msra.mxu0 %v1341
    %1779 = vmatmul.bf16.gmra.mxu0 %v443
    %v1780 = vpop.f32.mrf.mxu0
    %v1781 = vadd.f32 %v1768, %v1780
    %v1782 = vpop.f32.mrf.mxu0
    %1783 = vdwg.mxu0
    %1784 = vmatpush.bf16.msra.mxu0 %v1356
    %1785 = vmatpush.bf16.msra.mxu0 %v1355
    %1786 = vmatpush.bf16.msra.mxu0 %v1354
    %1787 = vmatpush.bf16.msra.mxu0 %v1353
    %1788 = vmatpush.bf16.msra.mxu0 %v1352
    %1789 = vmatpush.bf16.msra.mxu0 %v1351
    %1790 = vmatpush.bf16.msra.mxu0 %v1350
    %1791 = vmatpush.bf16.msra.mxu0 %v1349
    %1792 = vmatmul.bf16.gmra.mxu0 %v444
    %v1793 = vpop.f32.mrf.mxu0
    %v1794 = vadd.f32 %v1781, %v1793
    %v1795 = vpop.f32.mrf.mxu0
    %1796 = vdwg.mxu0
    %1797 = vmatpush.bf16.msra.mxu0 %v1364
    %1798 = vmatpush.bf16.msra.mxu0 %v1363
    %1799 = vmatpush.bf16.msra.mxu0 %v1362
    %1800 = vmatpush.bf16.msra.mxu0 %v1361
    %1801 = vmatpush.bf16.msra.mxu0 %v1360
    %1802 = vmatpush.bf16.msra.mxu0 %v1359
    %1803 = vmatpush.bf16.msra.mxu0 %v1358
    %1804 = vmatpush.bf16.msra.mxu0 %v1357
    %1805 = vmatmul.bf16.gmra.mxu0 %v447
    %v1806 = vpop.f32.mrf.mxu0
    %v1807 = vadd.f32 %v1794, %v1806
    %v1808 = vpop.f32.mrf.mxu0
    %1809 = vdwg.mxu0
    %1810 = vmatpush.bf16.msra.mxu0 %v1372
    %1811 = vmatpush.bf16.msra.mxu0 %v1371
    %1812 = vmatpush.bf16.msra.mxu0 %v1370
    %1813 = vmatpush.bf16.msra.mxu0 %v1369
    %1814 = vmatpush.bf16.msra.mxu0 %v1368
    %1815 = vmatpush.bf16.msra.mxu0 %v1367
    %1816 = vmatpush.bf16.msra.mxu0 %v1366
    %1817 = vmatpush.bf16.msra.mxu0 %v1365
    %1818 = vmatmul.bf16.gmra.mxu0 %v448
    %v1819 = vpop.f32.mrf.mxu0
    %v1820 = vadd.f32 %v1807, %v1819
    %v1821 = vpop.f32.mrf.mxu0
    %1822 = vdwg.mxu0
    %1823 = vmatpush.bf16.msra.mxu0 %v1380
    %1824 = vmatpush.bf16.msra.mxu0 %v1379
    %1825 = vmatpush.bf16.msra.mxu0 %v1378
    %1826 = vmatpush.bf16.msra.mxu0 %v1377
    %1827 = vmatpush.bf16.msra.mxu0 %v1376
    %1828 = vmatpush.bf16.msra.mxu0 %v1375
    %1829 = vmatpush.bf16.msra.mxu0 %v1374
    %1830 = vmatpush.bf16.msra.mxu0 %v1373
    %1831 = vmatmul.bf16.gmra.mxu0 %v449
    %v1832 = vpop.f32.mrf.mxu0
    %v1833 = vadd.f32 %v1820, %v1832
    %v1834 = vpop.f32.mrf.mxu0
    %1835 = vdwg.mxu0
    %1836 = vmatpush.bf16.msra.mxu0 %v1388
    %1837 = vmatpush.bf16.msra.mxu0 %v1387
    %1838 = vmatpush.bf16.msra.mxu0 %v1386
    %1839 = vmatpush.bf16.msra.mxu0 %v1385
    %1840 = vmatpush.bf16.msra.mxu0 %v1384
    %1841 = vmatpush.bf16.msra.mxu0 %v1383
    %1842 = vmatpush.bf16.msra.mxu0 %v1382
    %1843 = vmatpush.bf16.msra.mxu0 %v1381
    %1844 = vmatmul.bf16.gmra.mxu0 %v450
    %v1845 = vpop.f32.mrf.mxu0
    %v1846 = vadd.f32 %v1833, %v1845
    %v1847 = vpop.f32.mrf.mxu0
    %1848 = vdwg.mxu0
    %1849 = vmatpush.bf16.msra.mxu0 %v1396
    %1850 = vmatpush.bf16.msra.mxu0 %v1395
    %1851 = vmatpush.bf16.msra.mxu0 %v1394
    %1852 = vmatpush.bf16.msra.mxu0 %v1393
    %1853 = vmatpush.bf16.msra.mxu0 %v1392
    %1854 = vmatpush.bf16.msra.mxu0 %v1391
    %1855 = vmatpush.bf16.msra.mxu0 %v1390
    %1856 = vmatpush.bf16.msra.mxu0 %v1389
    %1857 = vmatmul.bf16.gmra.mxu0 %v451
    %v1858 = vpop.f32.mrf.mxu0
    %v1859 = vadd.f32 %v1846, %v1858
    %v1860 = vpop.f32.mrf.mxu0
    %1861 = vdwg.mxu0
    %1862 = vmatpush.bf16.msra.mxu0 %v1404
    %1863 = vmatpush.bf16.msra.mxu0 %v1403
    %1864 = vmatpush.bf16.msra.mxu0 %v1402
    %1865 = vmatpush.bf16.msra.mxu0 %v1401
    %1866 = vmatpush.bf16.msra.mxu0 %v1400
    %1867 = vmatpush.bf16.msra.mxu0 %v1399
    %1868 = vmatpush.bf16.msra.mxu0 %v1398
    %1869 = vmatpush.bf16.msra.mxu0 %v1397
    %1870 = vmatmul.bf16.gmra.mxu0 %v452
    %v1871 = vpop.f32.mrf.mxu0
    %v1872 = vadd.f32 %v1859, %v1871
    %v1873 = vpop.f32.mrf.mxu0
    %1874 = vdwg.mxu0
    %1875 = vmatpush.bf16.msra.mxu0 %v1412
    %1876 = vmatpush.bf16.msra.mxu0 %v1411
    %1877 = vmatpush.bf16.msra.mxu0 %v1410
    %1878 = vmatpush.bf16.msra.mxu0 %v1409
    %1879 = vmatpush.bf16.msra.mxu0 %v1408
    %1880 = vmatpush.bf16.msra.mxu0 %v1407
    %1881 = vmatpush.bf16.msra.mxu0 %v1406
    %1882 = vmatpush.bf16.msra.mxu0 %v1405
    %1883 = vmatmul.bf16.gmra.mxu0 %v453
    %v1884 = vpop.f32.mrf.mxu0
    %v1885 = vadd.f32 %v1872, %v1884
    %v1886 = vpop.f32.mrf.mxu0
    %1887 = vdwg.mxu0
    %1888 = vmatpush.bf16.msra.mxu0 %v1420
    %1889 = vmatpush.bf16.msra.mxu0 %v1419
    %1890 = vmatpush.bf16.msra.mxu0 %v1418
    %1891 = vmatpush.bf16.msra.mxu0 %v1417
    %1892 = vmatpush.bf16.msra.mxu0 %v1416
    %1893 = vmatpush.bf16.msra.mxu0 %v1415
    %1894 = vmatpush.bf16.msra.mxu0 %v1414
    %1895 = vmatpush.bf16.msra.mxu0 %v1413
    %1896 = vmatmul.bf16.gmra.mxu0 %v454
    %v1897 = vpop.f32.mrf.mxu0
    %v1898 = vadd.f32 %v1885, %v1897
    %v1899 = vpop.f32.mrf.mxu0
    %1900 = vdwg.mxu0
    %1901 = vmatpush.bf16.msra.mxu0 %v1428
    %1902 = vmatpush.bf16.msra.mxu0 %v1427
    %1903 = vmatpush.bf16.msra.mxu0 %v1426
    %1904 = vmatpush.bf16.msra.mxu0 %v1425
    %1905 = vmatpush.bf16.msra.mxu0 %v1424
    %1906 = vmatpush.bf16.msra.mxu0 %v1423
    %1907 = vmatpush.bf16.msra.mxu0 %v1422
    %1908 = vmatpush.bf16.msra.mxu0 %v1421
    %1909 = vmatmul.bf16.gmra.mxu0 %v457
    %v1910 = vpop.f32.mrf.mxu0
    %v1911 = vadd.f32 %v1898, %v1910
    %v1912 = vpop.f32.mrf.mxu0
    %1913 = vdwg.mxu0
    %1914 = vmatpush.bf16.msra.mxu0 %v1436
    %1915 = vmatpush.bf16.msra.mxu0 %v1435
    %1916 = vmatpush.bf16.msra.mxu0 %v1434
    %1917 = vmatpush.bf16.msra.mxu0 %v1433
    %1918 = vmatpush.bf16.msra.mxu0 %v1432
    %1919 = vmatpush.bf16.msra.mxu0 %v1431
    %1920 = vmatpush.bf16.msra.mxu0 %v1430
    %1921 = vmatpush.bf16.msra.mxu0 %v1429
    %1922 = vmatmul.bf16.gmra.mxu0 %v458
    %v1923 = vpop.f32.mrf.mxu0
    %v1924 = vadd.f32 %v1911, %v1923
    %v1925 = vpop.f32.mrf.mxu0
    %1926 = vdwg.mxu0
    %1927 = vmatpush.bf16.msra.mxu0 %v1444
    %1928 = vmatpush.bf16.msra.mxu0 %v1443
    %1929 = vmatpush.bf16.msra.mxu0 %v1442
    %1930 = vmatpush.bf16.msra.mxu0 %v1441
    %1931 = vmatpush.bf16.msra.mxu0 %v1440
    %1932 = vmatpush.bf16.msra.mxu0 %v1439
    %1933 = vmatpush.bf16.msra.mxu0 %v1438
    %1934 = vmatpush.bf16.msra.mxu0 %v1437
    %1935 = vmatmul.bf16.gmra.mxu0 %v459
    %v1936 = vpop.f32.mrf.mxu0
    %v1937 = vadd.f32 %v1924, %v1936
    %v1938 = vpop.f32.mrf.mxu0
    %1939 = vdwg.mxu0
    %1940 = vmatpush.bf16.msra.mxu0 %v1452
    %1941 = vmatpush.bf16.msra.mxu0 %v1451
    %1942 = vmatpush.bf16.msra.mxu0 %v1450
    %1943 = vmatpush.bf16.msra.mxu0 %v1449
    %1944 = vmatpush.bf16.msra.mxu0 %v1448
    %1945 = vmatpush.bf16.msra.mxu0 %v1447
    %1946 = vmatpush.bf16.msra.mxu0 %v1446
    %1947 = vmatpush.bf16.msra.mxu0 %v1445
    %1948 = vmatmul.bf16.gmra.mxu0 %v460
    %v1949 = vpop.f32.mrf.mxu0
    %v1950 = vadd.f32 %v1937, %v1949
    %v1951 = vpop.f32.mrf.mxu0
    %1952 = vdwg.mxu0
    %1953 = vmatpush.bf16.msra.mxu0 %v1460
    %1954 = vmatpush.bf16.msra.mxu0 %v1459
    %1955 = vmatpush.bf16.msra.mxu0 %v1458
    %1956 = vmatpush.bf16.msra.mxu0 %v1457
    %1957 = vmatpush.bf16.msra.mxu0 %v1456
    %1958 = vmatpush.bf16.msra.mxu0 %v1455
    %1959 = vmatpush.bf16.msra.mxu0 %v1454
    %1960 = vmatpush.bf16.msra.mxu0 %v1453
    %1961 = vmatmul.bf16.gmra.mxu0 %v461
    %v1962 = vpop.f32.mrf.mxu0
    %v1963 = vadd.f32 %v1950, %v1962
    %v1964 = vpop.f32.mrf.mxu0
    %1965 = vdwg.mxu0
    %1966 = vmatpush.bf16.msra.mxu0 %v1468
    %1967 = vmatpush.bf16.msra.mxu0 %v1467
    %1968 = vmatpush.bf16.msra.mxu0 %v1466
    %1969 = vmatpush.bf16.msra.mxu0 %v1465
    %1970 = vmatpush.bf16.msra.mxu0 %v1464
    %1971 = vmatpush.bf16.msra.mxu0 %v1463
    %1972 = vmatpush.bf16.msra.mxu0 %v1462
    %1973 = vmatpush.bf16.msra.mxu0 %v1461
    %1974 = vmatmul.bf16.gmra.mxu0 %v462
    %v1975 = vpop.f32.mrf.mxu0
    %v1976 = vadd.f32 %v1963, %v1975
    %v1977 = vpop.f32.mrf.mxu0
    %1978 = vdwg.mxu0
    %1979 = vmatpush.bf16.msra.mxu0 %v1476
    %1980 = vmatpush.bf16.msra.mxu0 %v1475
    %1981 = vmatpush.bf16.msra.mxu0 %v1474
    %1982 = vmatpush.bf16.msra.mxu0 %v1473
    %1983 = vmatpush.bf16.msra.mxu0 %v1472
    %1984 = vmatpush.bf16.msra.mxu0 %v1471
    %1985 = vmatpush.bf16.msra.mxu0 %v1470
    %1986 = vmatpush.bf16.msra.mxu0 %v1469
    %1987 = vmatmul.bf16.gmra.mxu0 %v463
    %v1988 = vpop.f32.mrf.mxu0
    %v1989 = vadd.f32 %v1976, %v1988
    %v1990 = vpop.f32.mrf.mxu0
    %1991 = vdwg.mxu0
    %1992 = vmatpush.bf16.msra.mxu0 %v1484
    %1993 = vmatpush.bf16.msra.mxu0 %v1483
    %1994 = vmatpush.bf16.msra.mxu0 %v1482
    %1995 = vmatpush.bf16.msra.mxu0 %v1481
    %1996 = vmatpush.bf16.msra.mxu0 %v1480
    %1997 = vmatpush.bf16.msra.mxu0 %v1479
    %1998 = vmatpush.bf16.msra.mxu0 %v1478
    %1999 = vmatpush.bf16.msra.mxu0 %v1477
    %2000 = vmatmul.bf16.gmra.mxu0 %v464
    %v2001 = vpop.f32.mrf.mxu0
    %v2002 = vadd.f32 %v1989, %v2001
    %v2003 = vpop.f32.mrf.mxu0
    %2004 = vdwg.mxu0
    %2005 = vmatpush.bf16.msra.mxu0 %v1492
    %2006 = vmatpush.bf16.msra.mxu0 %v1491
    %2007 = vmatpush.bf16.msra.mxu0 %v1490
    %2008 = vmatpush.bf16.msra.mxu0 %v1489
    %2009 = vmatpush.bf16.msra.mxu0 %v1488
    %2010 = vmatpush.bf16.msra.mxu0 %v1487
    %2011 = vmatpush.bf16.msra.mxu0 %v1486
    %2012 = vmatpush.bf16.msra.mxu0 %v1485
    %2013 = vmatmul.bf16.gmra.mxu0 %v467
    %v2014 = vpop.f32.mrf.mxu0
    %v2015 = vadd.f32 %v2002, %v2014
    %v2016 = vpop.f32.mrf.mxu0
    %2017 = vdwg.mxu0
    %v2018 = vmax.f32 %v2015, 0.0
    %v2019 = vpack.c.bf16 %v2018, %v2018
    %v2020 = vld [vmem:[%s3] sm:$0xf]
    %v2021 = vld [vmem:[%s3 + $0x4] sm:$0xf]
    %v2022 = vld [vmem:[%s3 + $0x8] sm:$0xf]
    %v2023 = vld [vmem:[%s3 + $0xc] sm:$0xf]
    %v2024 = vld [vmem:[%s3 + $0x10] sm:$0xf]
    %v2025 = vld [vmem:[%s3 + $0x14] sm:$0xf]
    %v2026 = vld [vmem:[%s3 + $0x18] sm:$0xf]
    %v2027 = vld [vmem:[%s3 + $0x1c] sm:$0xf]
    %v2028 = vld [vmem:[%s3 + $0x20] sm:$0xf]
    %v2029 = vld [vmem:[%s3 + $0x24] sm:$0xf]
    %v2030 = vld [vmem:[%s3 + $0x28] sm:$0xf]
    %v2031 = vld [vmem:[%s3 + $0x2c] sm:$0xf]
    %v2032 = vld [vmem:[%s3 + $0x30] sm:$0xf]
    %v2033 = vld [vmem:[%s3 + $0x34] sm:$0xf]
    %v2034 = vld [vmem:[%s3 + $0x38] sm:$0xf]
    %v2035 = vld [vmem:[%s3 + $0x3c] sm:$0xf]
    %v2036 = vld [vmem:[%s4] sm:$0x1]
    %v2038 = vperm.slane %v2036, 0
    %v2056 = vunpack.c.l.b16 %v2020
    %v2057 = vunpack.c.l.b16 %v2021
    %v2058 = vunpack.c.l.b16 %v2022
    %v2059 = vunpack.c.l.b16 %v2023
    %v2060 = vunpack.c.l.b16 %v2024
    %v2061 = vunpack.c.l.b16 %v2025
    %v2062 = vunpack.c.l.b16 %v2026
    %v2063 = vunpack.c.l.b16 %v2027
    %v2064 = vunpack.c.l.b16 %v2028
    %v2065 = vunpack.c.l.b16 %v2029
    %v2066 = vunpack.c.l.b16 %v2030
    %v2067 = vunpack.c.l.b16 %v2031
    %v2068 = vunpack.c.l.b16 %v2032
    %v2069 = vunpack.c.l.b16 %v2033
    %v2070 = vunpack.c.l.b16 %v2034
    %v2071 = vunpack.c.l.b16 %v2035
    %v2072 = vpack.c.b16 %v2057, %v2056
    %v2073 = vpack.c.b16 %v2059, %v2058
    %v2074 = vpack.c.b16 %v2061, %v2060
    %v2075 = vpack.c.b16 %v2063, %v2062
    %v2076 = vpack.c.b16 %v2065, %v2064
    %v2077 = vpack.c.b16 %v2067, %v2066
    %v2078 = vpack.c.b16 %v2069, %v2068
    %v2079 = vpack.c.b16 %v2071, %v2070
    %2088 = vmatpush.bf16.msra.mxu0 %v2079
    %2089 = vmatpush.bf16.msra.mxu0 %v2078
    %2090 = vmatpush.bf16.msra.mxu0 %v2077
    %2091 = vmatpush.bf16.msra.mxu0 %v2076
    %2092 = vmatpush.bf16.msra.mxu0 %v2075
    %2093 = vmatpush.bf16.msra.mxu0 %v2074
    %2094 = vmatpush.bf16.msra.mxu0 %v2073
    %2095 = vmatpush.bf16.msra.mxu0 %v2072
    %2096 = vmatmul.bf16.gmra.mxu0 %v2019
    %v2097 = vpop.f32.mrf.mxu0
    %v2098 = vadd.f32 %v2038, %v2097
    %v2099 = vpop.f32.mrf.mxu0
    %2100 = vdwg.mxu0
    %v2101 = vmax.f32 %v2098, 0.0
    %v2102 = vpack.c.bf16 %v2101, %v2101
    %v2103 = vld [vmem:[%s5] sm:$0xf]
    %v2104 = vld [vmem:[%s5 + $0x4] sm:$0xf]
    %v2105 = vld [vmem:[%s5 + $0x8] sm:$0xf]
    %v2106 = vld [vmem:[%s5 + $0xc] sm:$0xf]
    %v2107 = vld [vmem:[%s5 + $0x10] sm:$0xf]
    %v2108 = vld [vmem:[%s5 + $0x14] sm:$0xf]
    %v2109 = vld [vmem:[%s5 + $0x18] sm:$0xf]
    %v2110 = vld [vmem:[%s5 + $0x1c] sm:$0xf]
    %v2111 = vld [vmem:[%s5 + $0x20] sm:$0xf]
    %v2112 = vld [vmem:[%s5 + $0x24] sm:$0xf]
    %v2113 = vld [vmem:[%s5 + $0x28] sm:$0xf]
    %v2114 = vld [vmem:[%s5 + $0x2c] sm:$0xf]
    %v2115 = vld [vmem:[%s5 + $0x30] sm:$0xf]
    %v2116 = vld [vmem:[%s5 + $0x34] sm:$0xf]
    %v2117 = vld [vmem:[%s5 + $0x38] sm:$0xf]
    %v2118 = vld [vmem:[%s5 + $0x3c] sm:$0xf]
    %v2119 = vld [vmem:[%s6] sm:$0x1]
    %v2121 = vperm.slane %v2119, 0
    %v2139 = vunpack.c.l.b16 %v2103
    %v2140 = vunpack.c.l.b16 %v2104
    %v2141 = vunpack.c.l.b16 %v2105
    %v2142 = vunpack.c.l.b16 %v2106
    %v2143 = vunpack.c.l.b16 %v2107
    %v2144 = vunpack.c.l.b16 %v2108
    %v2145 = vunpack.c.l.b16 %v2109
    %v2146 = vunpack.c.l.b16 %v2110
    %v2147 = vunpack.c.l.b16 %v2111
    %v2148 = vunpack.c.l.b16 %v2112
    %v2149 = vunpack.c.l.b16 %v2113
    %v2150 = vunpack.c.l.b16 %v2114
    %v2151 = vunpack.c.l.b16 %v2115
    %v2152 = vunpack.c.l.b16 %v2116
    %v2153 = vunpack.c.l.b16 %v2117
    %v2154 = vunpack.c.l.b16 %v2118
    %v2155 = vpack.c.b16 %v2140, %v2139
    %v2156 = vpack.c.b16 %v2142, %v2141
    %v2157 = vpack.c.b16 %v2144, %v2143
    %v2158 = vpack.c.b16 %v2146, %v2145
    %v2159 = vpack.c.b16 %v2148, %v2147
    %v2160 = vpack.c.b16 %v2150, %v2149
    %v2161 = vpack.c.b16 %v2152, %v2151
    %v2162 = vpack.c.b16 %v2154, %v2153
    %2171 = vmatpush.bf16.msra.mxu0 %v2162
    %2172 = vmatpush.bf16.msra.mxu0 %v2161
    %2173 = vmatpush.bf16.msra.mxu0 %v2160
    %2174 = vmatpush.bf16.msra.mxu0 %v2159
    %2175 = vmatpush.bf16.msra.mxu0 %v2158
    %2176 = vmatpush.bf16.msra.mxu0 %v2157
    %2177 = vmatpush.bf16.msra.mxu0 %v2156
    %2178 = vmatpush.bf16.msra.mxu0 %v2155
    %2179 = vmatmul.bf16.gmra.mxu0 %v2102
    %v2180 = vpop.f32.mrf.mxu0
    %v2181 = vadd.f32 %v2121, %v2180
    %v2182 = vpop.f32.mrf.mxu0
    %2183 = vdwg.mxu0
    %2184 = vst [vmem:[#allocation2] sm:$0x3] %v2181
    // Predicated region
    $region30: #{net_forward.9} parent=1 // pred_check
      _
    $region31: #{net_forward.9} parent=1 // pred_check_branch
      %2186 = sbr.rel (0) target = $region33
    $region32: #{net_forward.9} parent=1 // pred_region
      %2188 = vsyncadd [#allocation3], 0
      %s2190 = sshll.u32 [#allocation2], 4
      %s2191 = int_to_ptr.vmem [resolvable:$true] %s2190
      %s2192 = sshll.u32 %s7, 4
      %s2193 = int_to_ptr.hbm [resolvable:$true] %s2192
      %2195 = dma.vmem_to_hbm [thread:$0]  %s2191, 32, %s2193, [#allocation3]
    $region33: #{net_forward.9} parent=1 // pred_fallthru
      _
    // Predicated region
    $region34: #{net_forward.9} parent=1 // pred_check
      _
    $region35: #{net_forward.9} parent=1 // pred_check_branch
      %2197 = sbr.rel (0) target = $region37
    $region36: #{net_forward.9} parent=1 // pred_region
      %2199 = dma.done [#allocation3], 32
    $region37: #{net_forward.9} parent=1 // pred_fallthru
      _
    %2200 = vsyncpa [#allocation3], 1

</llo_original>
